<compile_context>
chip_gen: v7x
topology: tpu7x:2x2x1
jax: 0.10.0
libtpu: 0.0.40
codegen_flags: <defaults>
</compile_context>

<pallas_src>
import functools

import jax
import jax.numpy as jnp
from jax.experimental import pallas as pl
from jax.experimental.pallas import tpu as pltpu

# ----------------------------- config (small) -----------------------------
VOCAB = 30
MAX_POS = 16
TYPE_VOCAB = 2
HIDDEN = 32
NUM_HEADS = 4
HEAD_DIM = HIDDEN // NUM_HEADS
INTERMEDIATE = 4 * HIDDEN
NUM_LAYERS = 2
CLASS_NUM = 9
CLASS_PAD = 128          # classifier output padded to a full lane tile (lane-dense matmul)
LN_EPS = 1e-12
IGNORE_INDEX = -100


# ------------------------- fused forward kernel ----------------------------
def _bert_ner_kernel(
    emb_ref, mask_ref, labels_ref, emb_g_ref, emb_b_ref,
    wqkv_ref, bqkv_ref, wo_ref, bo_ref, ln1_g_ref, ln1_b_ref,
    w1_ref, b1_ref, w2_ref, b2_ref, ln2_g_ref, ln2_b_ref,
    cls_w_ref, cls_b_ref,
    loss_ref, preds_ref,
    *, layers, heads, head_dim, class_num, eps):
  """Single invocation: embeddings-LN -> unrolled encoder -> classifier -> CE + argmax.

  Activations are (B*S, H); attention per-sequence is enforced by the block-diagonal
  additive mask `mask_ref` of shape (B*S, B*S).
  """
  hidden = heads * head_dim
  bf16 = jnp.bfloat16

  def layer_norm(h, g, b):
    mu = jnp.mean(h, axis=-1, keepdims=True)
    c = h - mu
    var = jnp.mean(c * c, axis=-1, keepdims=True)
    return c * jax.lax.rsqrt(var + eps) * g + b

  # ---- embedding LayerNorm (dropout is a no-op at inference) ----
  x = layer_norm(emb_ref[...], emb_g_ref[...], emb_b_ref[...])      # (BS, H) f32

  add_mask = mask_ref[...]                                          # (BS, BS) f32, hoisted
  scale = 1.0 / (head_dim ** 0.5)

  for l in range(layers):                                           # static unroll (L=2)
    # ---- self-attention: fused QKV projection (one MXU pass), per-head softmax ----
    qkv = jnp.dot(x.astype(bf16), wqkv_ref[l],
                  preferred_element_type=jnp.float32) + bqkv_ref[l]  # (BS, 3H) f32
    q_all = qkv[:, :hidden] * scale            # scale folded in once per layer
    k_all = qkv[:, hidden:2 * hidden]
    v_all = qkv[:, 2 * hidden:]

    wo = wo_ref[l]                                                   # (H, H) bf16
    attn = jnp.zeros_like(x)
    for h in range(heads):                                           # static unroll (4)
      lo, hi = h * head_dim, (h + 1) * head_dim
      q = q_all[:, lo:hi].astype(bf16)
      k = k_all[:, lo:hi].astype(bf16)
      v = v_all[:, lo:hi].astype(bf16)
      s = jax.lax.dot_general(q, k, (((1,), (1,)), ((), ())),
                              preferred_element_type=jnp.float32)    # (BS, BS)
      s = s + add_mask                                               # padding + block-diag
      s = s - jnp.max(s, axis=-1, keepdims=True)
      p = jnp.exp(s)
      p = p / jnp.sum(p, axis=-1, keepdims=True)                     # exact softmax
      ctx_h = jnp.dot(p.astype(bf16), v,
                      preferred_element_type=jnp.float32)            # (BS, dh)
      # fold head context straight into the output projection (no lane concat)
      attn = attn + jnp.dot(ctx_h.astype(bf16), wo[lo:hi, :],
                            preferred_element_type=jnp.float32)
    attn = attn + bo_ref[l]
    x = layer_norm(attn + x, ln1_g_ref[l], ln1_b_ref[l])

    # ---- FFN ----
    # TODO(synk): HF BERT uses erf-GELU; tanh approximation is used here (EUP friendly).
    h1 = jnp.dot(x.astype(bf16), w1_ref[l],
                 preferred_element_type=jnp.float32) + b1_ref[l]     # (BS, I)
    h1 = 0.5 * h1 * (1.0 + jnp.tanh(0.7978845608028654 *
                                    (h1 + 0.044715 * h1 * h1 * h1)))
    ffn = jnp.dot(h1.astype(bf16), w2_ref[l],
                  preferred_element_type=jnp.float32) + b2_ref[l]
    x = layer_norm(ffn + x, ln2_g_ref[l], ln2_b_ref[l])

  # ---- classifier + cross-entropy + argmax (lane-dense padded logits) ----
  logits = jnp.dot(x.astype(bf16), cls_w_ref[...],
                   preferred_element_type=jnp.float32) + cls_b_ref[...]   # (BS, CLASS_PAD)
  n, cpad = logits.shape
  col = jax.lax.broadcasted_iota(jnp.int32, (n, cpad), 1)
  in_range = col < class_num
  masked_logits = jnp.where(in_range, logits, -1e30)

  # argmax over the real classes (first-max tie-break, like torch.argmax).
  row_max = jnp.max(masked_logits, axis=-1, keepdims=True)
  first_idx = jnp.min(jnp.where(masked_logits == row_max, col, cpad),
                      axis=-1, keepdims=True)                             # (BS, 1) int32
  preds_ref[...] = first_idx
  # TODO(synk): on v5e a (BS,1) int32 store is a masked vst; a lane-row (1,BS) layout
  #             would be denser but needs a sublane->lane relayout; skipped at this size.

  # CrossEntropyLoss(ignore_index=-100, reduction='mean') over all B*S tokens.
  labels = labels_ref[...]                                                # (BS, 1) int32
  lse = jnp.log(jnp.sum(jnp.exp(masked_logits - row_max),
                        axis=-1, keepdims=True)) + row_max
  logp = logits - lse
  onehot = (col == labels).astype(jnp.float32)
  picked = jnp.sum(onehot * logp, axis=-1, keepdims=True)                 # (BS, 1)
  valid = (labels != IGNORE_INDEX).astype(jnp.float32)                    # (BS, 1)
  loss_sum = jnp.sum(-picked * valid)
  count = jnp.sum(valid)
  # matches torch: mean over valid tokens (NaN if every label is ignore_index)
  loss_ref[0] = loss_sum / count


# ------------------------------ parameters ---------------------------------
def init_params(key):
  def nrm(k, shape, dtype=jnp.float32):
    return (0.02 * jax.random.normal(k, shape, dtype=jnp.float32)).astype(dtype)

  keys = jax.random.split(key, 8)
  L, H, I, C = NUM_LAYERS, HIDDEN, INTERMEDIATE, CLASS_NUM
  bf16 = jnp.bfloat16
  return {
      "word_emb": nrm(keys[0], (VOCAB, H)),
      "pos_emb": nrm(keys[1], (MAX_POS, H)),
      "type_emb": nrm(keys[2], (TYPE_VOCAB, H)),
      "emb_ln_g": jnp.ones((1, H), jnp.float32),
      "emb_ln_b": jnp.zeros((1, H), jnp.float32),
      # per-layer weights stacked along a leading layer axis; matmul weights in bf16
      "wqkv": nrm(keys[3], (L, H, 3 * H), bf16),
      "bqkv": jnp.zeros((L, 1, 3 * H), jnp.float32),
      "wo": nrm(keys[4], (L, H, H), bf16),
      "bo": jnp.zeros((L, 1, H), jnp.float32),
      "ln1_g": jnp.ones((L, 1, H), jnp.float32),
      "ln1_b": jnp.zeros((L, 1, H), jnp.float32),
      "w1": nrm(keys[5], (L, H, I), bf16),
      "b1": jnp.zeros((L, 1, I), jnp.float32),
      "w2": nrm(keys[6], (L, I, H), bf16),
      "b2": jnp.zeros((L, 1, H), jnp.float32),
      "ln2_g": jnp.ones((L, 1, H), jnp.float32),
      "ln2_b": jnp.zeros((L, 1, H), jnp.float32),
      "cls_w": nrm(keys[7], (H, C), bf16),
      "cls_b": jnp.zeros((C,), jnp.float32),
  }


# ------------------------------- forward ------------------------------------
def _forward_impl(params, input_ids, attention_mask, token_type_ids, labels):
  B, S = input_ids.shape
  H = HIDDEN
  BS = B * S

  # --- embeddings (gathers are XLA glue; LN happens inside the fused kernel) ---
  emb = (params["word_emb"][input_ids]
         + params["pos_emb"][:S][None, :, :]
         + params["type_emb"][token_type_ids]).astype(jnp.float32)   # (B, S, H)
  emb = emb.reshape(BS, H)

  # block-diagonal additive mask: -10000 for padded keys AND cross-sequence positions
  bidx = jnp.arange(BS, dtype=jnp.int32) // S
  key_valid = attention_mask.reshape(BS) > 0
  allowed = (bidx[:, None] == bidx[None, :]) & key_valid[None, :]
  add_mask = jnp.where(allowed, 0.0, -10000.0).astype(jnp.float32)   # (BS, BS)

  labels2 = labels.astype(jnp.int32).reshape(BS, 1)

  # classifier weight/bias zero-padded to 128 lanes; pad columns masked in-kernel
  cls_w = jnp.zeros((H, CLASS_PAD), jnp.bfloat16).at[:, :CLASS_NUM].set(params["cls_w"])
  cls_b = jnp.zeros((1, CLASS_PAD), jnp.float32).at[0, :CLASS_NUM].set(params["cls_b"])

  kernel = functools.partial(
      _bert_ner_kernel, layers=NUM_LAYERS, heads=NUM_HEADS, head_dim=HEAD_DIM,
      class_num=CLASS_NUM, eps=LN_EPS)

  loss_vec, preds2 = pl.pallas_call(
      kernel,
      # no grid: single invocation, every input is a full-array VMEM ref
      out_shape=(
          jax.ShapeDtypeStruct((1,), jnp.float32),     # scalar loss (SMEM)
          jax.ShapeDtypeStruct((BS, 1), jnp.int32),    # argmax predictions
      ),
      out_specs=(
          pl.BlockSpec(memory_space=pltpu.MemorySpace.SMEM),
          pl.BlockSpec(memory_space=pltpu.MemorySpace.VMEM),
      ),
  )(emb, add_mask, labels2, params["emb_ln_g"], params["emb_ln_b"],
    params["wqkv"], params["bqkv"], params["wo"], params["bo"],
    params["ln1_g"], params["ln1_b"], params["w1"], params["b1"],
    params["w2"], params["b2"], params["ln2_g"], params["ln2_b"],
    cls_w, cls_b)

  return loss_vec[0], preds2.reshape(B, S)


_forward_jit = jax.jit(_forward_impl)


def torch_model_forward(params, input_ids, attention_mask, token_type_ids, labels=None):
  """Same semantics as TorchModel.forward with use_crf=False."""
  if labels is None:
    dummy = jnp.full(input_ids.shape, IGNORE_INDEX, jnp.int32)
    _, preds = _forward_jit(params, input_ids, attention_mask, token_type_ids, dummy)
    return preds
  loss, _ = _forward_jit(params, input_ids, attention_mask, token_type_ids, labels)
  return loss


# --------------------------------- main --------------------------------------
if __name__ == "__main__":
  key = jax.random.PRNGKey(0)
  pkey, ikey, lkey = jax.random.split(key, 3)
  params = init_params(pkey)

  B, S = 2, 8
  input_ids = jax.random.randint(ikey, (B, S), 0, VOCAB, dtype=jnp.int32)
  seq_lens = jnp.array([[S], [5]], dtype=jnp.int32)
  attention_mask = (jnp.arange(S)[None, :] < seq_lens).astype(jnp.int32)   # (B, S)
  token_type_ids = jnp.zeros((B, S), dtype=jnp.int32)
  labels = jax.random.randint(lkey, (B, S), 0, CLASS_NUM, dtype=jnp.int32)
  labels = jnp.where(attention_mask == 1, labels, IGNORE_INDEX)            # pad -> ignore

  # One fused forward pass produces BOTH the training loss and the argmax decode.
  loss, preds = _forward_jit(params, input_ids, attention_mask, token_type_ids, labels)
  jax.block_until_ready((loss, preds))

  assert loss.shape == () and preds.shape == (B, S)
  assert bool(jnp.isfinite(loss))
  assert bool(jnp.all(preds >= 0)) and bool(jnp.all(preds < CLASS_NUM))
  print("KERNEL_OK")
</pallas_src>

<mosaic_0001>
module attributes {stable_mosaic.version = 11 : i64} {
  func.func @_bert_ner_kernel(%arg0: memref<16x32xf32, #tpu.memory_space<vmem>>, %arg1: memref<16x16xf32, #tpu.memory_space<vmem>>, %arg2: memref<16x1xi32, #tpu.memory_space<vmem>>, %arg3: memref<1x32xf32, #tpu.memory_space<vmem>>, %arg4: memref<1x32xf32, #tpu.memory_space<vmem>>, %arg5: memref<2x32x96xbf16, #tpu.memory_space<vmem>>, %arg6: memref<2x1x96xf32, #tpu.memory_space<vmem>>, %arg7: memref<2x32x32xbf16, #tpu.memory_space<vmem>>, %arg8: memref<2x1x32xf32, #tpu.memory_space<vmem>>, %arg9: memref<2x1x32xf32, #tpu.memory_space<vmem>>, %arg10: memref<2x1x32xf32, #tpu.memory_space<vmem>>, %arg11: memref<2x32x128xbf16, #tpu.memory_space<vmem>>, %arg12: memref<2x1x128xf32, #tpu.memory_space<vmem>>, %arg13: memref<2x128x32xbf16, #tpu.memory_space<vmem>>, %arg14: memref<2x1x32xf32, #tpu.memory_space<vmem>>, %arg15: memref<2x1x32xf32, #tpu.memory_space<vmem>>, %arg16: memref<2x1x32xf32, #tpu.memory_space<vmem>>, %arg17: memref<32x128xbf16, #tpu.memory_space<vmem>>, %arg18: memref<1x128xf32, #tpu.memory_space<vmem>>, %arg19: memref<1xf32, #tpu.memory_space<smem>>, %arg20: memref<16x1xi32, #tpu.memory_space<vmem>>) attributes {dimension_semantics = [], scalar_prefetch = 0 : i64, scratch_operands = 0 : i64, tpu.core_type = #tpu.core_type<tc>} {
    %c0 = arith.constant 0 : index
    %c0_0 = arith.constant 0 : index
    %0 = vector.load %arg0[%c0, %c0_0] : memref<16x32xf32, #tpu.memory_space<vmem>>, vector<16x32xf32>
    %c0_1 = arith.constant 0 : index
    %c0_2 = arith.constant 0 : index
    %1 = vector.load %arg3[%c0_1, %c0_2] : memref<1x32xf32, #tpu.memory_space<vmem>>, vector<1x32xf32>
    %c0_3 = arith.constant 0 : index
    %c0_4 = arith.constant 0 : index
    %2 = vector.load %arg4[%c0_3, %c0_4] : memref<1x32xf32, #tpu.memory_space<vmem>>, vector<1x32xf32>
    %cst = arith.constant dense<0.000000e+00> : vector<16xf32>
    %3 = vector.multi_reduction <add>, %0, %cst [1] : vector<16x32xf32> to vector<16xf32>
    %4 = vector.shape_cast %3 : vector<16xf32> to vector<16x1xf32>
    %cst_5 = arith.constant 3.200000e+01 : f32
    %5 = vector.broadcast %cst_5 : f32 to vector<16x1xf32>
    %6 = arith.divf %4, %5 : vector<16x1xf32>
    %7 = vector.broadcast %6 : vector<16x1xf32> to vector<16x32xf32>
    %8 = arith.subf %0, %7 : vector<16x32xf32>
    %9 = arith.mulf %8, %8 : vector<16x32xf32>
    %cst_6 = arith.constant dense<0.000000e+00> : vector<16xf32>
    %10 = vector.multi_reduction <add>, %9, %cst_6 [1] : vector<16x32xf32> to vector<16xf32>
    %11 = vector.shape_cast %10 : vector<16xf32> to vector<16x1xf32>
    %cst_7 = arith.constant 3.200000e+01 : f32
    %12 = vector.broadcast %cst_7 : f32 to vector<16x1xf32>
    %13 = arith.divf %11, %12 : vector<16x1xf32>
    %cst_8 = arith.constant 9.99999996E-13 : f32
    %14 = vector.broadcast %cst_8 : f32 to vector<16x1xf32>
    %15 = arith.addf %13, %14 : vector<16x1xf32>
    %16 = math.rsqrt %15 : vector<16x1xf32>
    %17 = vector.broadcast %16 : vector<16x1xf32> to vector<16x32xf32>
    %18 = arith.mulf %8, %17 : vector<16x32xf32>
    %19 = vector.broadcast %1 : vector<1x32xf32> to vector<16x32xf32>
    %20 = arith.mulf %18, %19 : vector<16x32xf32>
    %21 = vector.broadcast %2 : vector<1x32xf32> to vector<16x32xf32>
    %22 = arith.addf %20, %21 : vector<16x32xf32>
    %c0_9 = arith.constant 0 : index
    %c0_10 = arith.constant 0 : index
    %23 = vector.load %arg1[%c0_9, %c0_10] : memref<16x16xf32, #tpu.memory_space<vmem>>, vector<16x16xf32>
    %24 = arith.truncf %22 : vector<16x32xf32> to vector<16x32xbf16>
    %c0_11 = arith.constant 0 : index
    %c0_12 = arith.constant 0 : index
    %c0_13 = arith.constant 0 : index
    %25 = vector.load %arg5[%c0_11, %c0_12, %c0_13] : memref<2x32x96xbf16, #tpu.memory_space<vmem>>, vector<1x32x96xbf16>
    %26 = vector.shape_cast %25 : vector<1x32x96xbf16> to vector<32x96xbf16>
    %cst_14 = arith.constant dense<0.000000e+00> : vector<16x96xf32>
    %27 = tpu.matmul %24, %26, %cst_14 {dimension_numbers = #tpu.dot_dimension_numbers<[1], [0], [0], [1], [0, 0, 1, 1], [], []>} : vector<16x32xbf16>, vector<32x96xbf16>, vector<16x96xf32> -> vector<16x96xf32>
    %c0_15 = arith.constant 0 : index
    %c0_16 = arith.constant 0 : index
    %c0_17 = arith.constant 0 : index
    %28 = vector.load %arg6[%c0_15, %c0_16, %c0_17] : memref<2x1x96xf32, #tpu.memory_space<vmem>>, vector<1x1x96xf32>
    %29 = vector.shape_cast %28 : vector<1x1x96xf32> to vector<1x96xf32>
    %30 = vector.broadcast %29 : vector<1x96xf32> to vector<16x96xf32>
    %31 = arith.addf %27, %30 : vector<16x96xf32>
    %32 = vector.extract_strided_slice %31 {offsets = [0, 0], sizes = [16, 32], strides = [1, 1]} : vector<16x96xf32> to vector<16x32xf32>
    %cst_18 = arith.constant 0.353553385 : f32
    %33 = vector.broadcast %cst_18 : f32 to vector<16x32xf32>
    %34 = arith.mulf %32, %33 : vector<16x32xf32>
    %35 = vector.extract_strided_slice %31 {offsets = [0, 32], sizes = [16, 32], strides = [1, 1]} : vector<16x96xf32> to vector<16x32xf32>
    %36 = vector.extract_strided_slice %31 {offsets = [0, 64], sizes = [16, 32], strides = [1, 1]} : vector<16x96xf32> to vector<16x32xf32>
    %c0_19 = arith.constant 0 : index
    %c0_20 = arith.constant 0 : index
    %c0_21 = arith.constant 0 : index
    %37 = vector.load %arg7[%c0_19, %c0_20, %c0_21] : memref<2x32x32xbf16, #tpu.memory_space<vmem>>, vector<1x32x32xbf16>
    %38 = vector.shape_cast %37 : vector<1x32x32xbf16> to vector<32x32xbf16>
    %cst_22 = arith.constant 0.000000e+00 : f32
    %39 = vector.broadcast %cst_22 : f32 to vector<16x32xf32>
    %40 = vector.extract_strided_slice %34 {offsets = [0, 0], sizes = [16, 8], strides = [1, 1]} : vector<16x32xf32> to vector<16x8xf32>
    %41 = arith.truncf %40 : vector<16x8xf32> to vector<16x8xbf16>
    %42 = vector.extract_strided_slice %35 {offsets = [0, 0], sizes = [16, 8], strides = [1, 1]} : vector<16x32xf32> to vector<16x8xf32>
    %43 = arith.truncf %42 : vector<16x8xf32> to vector<16x8xbf16>
    %44 = vector.extract_strided_slice %36 {offsets = [0, 0], sizes = [16, 8], strides = [1, 1]} : vector<16x32xf32> to vector<16x8xf32>
    %45 = arith.truncf %44 : vector<16x8xf32> to vector<16x8xbf16>
    %cst_23 = arith.constant dense<0.000000e+00> : vector<16x16xf32>
    %46 = tpu.matmul %41, %43, %cst_23 {dimension_numbers = #tpu.dot_dimension_numbers<[1], [1], [0], [0], [0, 0, 1, 0], [], []>} : vector<16x8xbf16>, vector<16x8xbf16>, vector<16x16xf32> -> vector<16x16xf32>
    %47 = arith.addf %46, %23 : vector<16x16xf32>
    %cst_24 = arith.constant dense<0xFF800000> : vector<16xf32>
    %48 = vector.multi_reduction <maximumf>, %47, %cst_24 [1] : vector<16x16xf32> to vector<16xf32>
    %49 = vector.shape_cast %48 : vector<16xf32> to vector<16x1xf32>
    %50 = vector.broadcast %49 : vector<16x1xf32> to vector<16x16xf32>
    %51 = arith.subf %47, %50 : vector<16x16xf32>
    %52 = math.exp %51 : vector<16x16xf32>
    %cst_25 = arith.constant dense<0.000000e+00> : vector<16xf32>
    %53 = vector.multi_reduction <add>, %52, %cst_25 [1] : vector<16x16xf32> to vector<16xf32>
    %54 = vector.shape_cast %53 : vector<16xf32> to vector<16x1xf32>
    %55 = vector.broadcast %54 : vector<16x1xf32> to vector<16x16xf32>
    %56 = arith.divf %52, %55 : vector<16x16xf32>
    %57 = arith.truncf %56 : vector<16x16xf32> to vector<16x16xbf16>
    %cst_26 = arith.constant dense<0.000000e+00> : vector<16x8xf32>
    %58 = tpu.matmul %57, %45, %cst_26 {dimension_numbers = #tpu.dot_dimension_numbers<[1], [0], [0], [1], [0, 0, 1, 1], [], []>} : vector<16x16xbf16>, vector<16x8xbf16>, vector<16x8xf32> -> vector<16x8xf32>
    %59 = arith.truncf %58 : vector<16x8xf32> to vector<16x8xbf16>
    %60 = vector.extract_strided_slice %38 {offsets = [0, 0], sizes = [8, 32], strides = [1, 1]} : vector<32x32xbf16> to vector<8x32xbf16>
    %cst_27 = arith.constant dense<0.000000e+00> : vector<16x32xf32>
    %61 = tpu.matmul %59, %60, %cst_27 {dimension_numbers = #tpu.dot_dimension_numbers<[1], [0], [0], [1], [0, 0, 1, 1], [], []>} : vector<16x8xbf16>, vector<8x32xbf16>, vector<16x32xf32> -> vector<16x32xf32>
    %62 = arith.addf %39, %61 : vector<16x32xf32>
    %63 = vector.extract_strided_slice %34 {offsets = [0, 8], sizes = [16, 8], strides = [1, 1]} : vector<16x32xf32> to vector<16x8xf32>
    %64 = arith.truncf %63 : vector<16x8xf32> to vector<16x8xbf16>
    %65 = vector.extract_strided_slice %35 {offsets = [0, 8], sizes = [16, 8], strides = [1, 1]} : vector<16x32xf32> to vector<16x8xf32>
    %66 = arith.truncf %65 : vector<16x8xf32> to vector<16x8xbf16>
    %67 = vector.extract_strided_slice %36 {offsets = [0, 8], sizes = [16, 8], strides = [1, 1]} : vector<16x32xf32> to vector<16x8xf32>
    %68 = arith.truncf %67 : vector<16x8xf32> to vector<16x8xbf16>
    %cst_28 = arith.constant dense<0.000000e+00> : vector<16x16xf32>
    %69 = tpu.matmul %64, %66, %cst_28 {dimension_numbers = #tpu.dot_dimension_numbers<[1], [1], [0], [0], [0, 0, 1, 0], [], []>} : vector<16x8xbf16>, vector<16x8xbf16>, vector<16x16xf32> -> vector<16x16xf32>
    %70 = arith.addf %69, %23 : vector<16x16xf32>
    %cst_29 = arith.constant dense<0xFF800000> : vector<16xf32>
    %71 = vector.multi_reduction <maximumf>, %70, %cst_29 [1] : vector<16x16xf32> to vector<16xf32>
    %72 = vector.shape_cast %71 : vector<16xf32> to vector<16x1xf32>
    %73 = vector.broadcast %72 : vector<16x1xf32> to vector<16x16xf32>
    %74 = arith.subf %70, %73 : vector<16x16xf32>
    %75 = math.exp %74 : vector<16x16xf32>
    %cst_30 = arith.constant dense<0.000000e+00> : vector<16xf32>
    %76 = vector.multi_reduction <add>, %75, %cst_30 [1] : vector<16x16xf32> to vector<16xf32>
    %77 = vector.shape_cast %76 : vector<16xf32> to vector<16x1xf32>
    %78 = vector.broadcast %77 : vector<16x1xf32> to vector<16x16xf32>
    %79 = arith.divf %75, %78 : vector<16x16xf32>
    %80 = arith.truncf %79 : vector<16x16xf32> to vector<16x16xbf16>
    %cst_31 = arith.constant dense<0.000000e+00> : vector<16x8xf32>
    %81 = tpu.matmul %80, %68, %cst_31 {dimension_numbers = #tpu.dot_dimension_numbers<[1], [0], [0], [1], [0, 0, 1, 1], [], []>} : vector<16x16xbf16>, vector<16x8xbf16>, vector<16x8xf32> -> vector<16x8xf32>
    %82 = arith.truncf %81 : vector<16x8xf32> to vector<16x8xbf16>
    %83 = vector.extract_strided_slice %38 {offsets = [8, 0], sizes = [8, 32], strides = [1, 1]} : vector<32x32xbf16> to vector<8x32xbf16>
    %cst_32 = arith.constant dense<0.000000e+00> : vector<16x32xf32>
    %84 = tpu.matmul %82, %83, %cst_32 {dimension_numbers = #tpu.dot_dimension_numbers<[1], [0], [0], [1], [0, 0, 1, 1], [], []>} : vector<16x8xbf16>, vector<8x32xbf16>, vector<16x32xf32> -> vector<16x32xf32>
    %85 = arith.addf %62, %84 : vector<16x32xf32>
    %86 = vector.extract_strided_slice %34 {offsets = [0, 16], sizes = [16, 8], strides = [1, 1]} : vector<16x32xf32> to vector<16x8xf32>
    %87 = arith.truncf %86 : vector<16x8xf32> to vector<16x8xbf16>
    %88 = vector.extract_strided_slice %35 {offsets = [0, 16], sizes = [16, 8], strides = [1, 1]} : vector<16x32xf32> to vector<16x8xf32>
    %89 = arith.truncf %88 : vector<16x8xf32> to vector<16x8xbf16>
    %90 = vector.extract_strided_slice %36 {offsets = [0, 16], sizes = [16, 8], strides = [1, 1]} : vector<16x32xf32> to vector<16x8xf32>
    %91 = arith.truncf %90 : vector<16x8xf32> to vector<16x8xbf16>
    %cst_33 = arith.constant dense<0.000000e+00> : vector<16x16xf32>
    %92 = tpu.matmul %87, %89, %cst_33 {dimension_numbers = #tpu.dot_dimension_numbers<[1], [1], [0], [0], [0, 0, 1, 0], [], []>} : vector<16x8xbf16>, vector<16x8xbf16>, vector<16x16xf32> -> vector<16x16xf32>
    %93 = arith.addf %92, %23 : vector<16x16xf32>
    %cst_34 = arith.constant dense<0xFF800000> : vector<16xf32>
    %94 = vector.multi_reduction <maximumf>, %93, %cst_34 [1] : vector<16x16xf32> to vector<16xf32>
    %95 = vector.shape_cast %94 : vector<16xf32> to vector<16x1xf32>
    %96 = vector.broadcast %95 : vector<16x1xf32> to vector<16x16xf32>
    %97 = arith.subf %93, %96 : vector<16x16xf32>
    %98 = math.exp %97 : vector<16x16xf32>
    %cst_35 = arith.constant dense<0.000000e+00> : vector<16xf32>
    %99 = vector.multi_reduction <add>, %98, %cst_35 [1] : vector<16x16xf32> to vector<16xf32>
    %100 = vector.shape_cast %99 : vector<16xf32> to vector<16x1xf32>
    %101 = vector.broadcast %100 : vector<16x1xf32> to vector<16x16xf32>
    %102 = arith.divf %98, %101 : vector<16x16xf32>
    %103 = arith.truncf %102 : vector<16x16xf32> to vector<16x16xbf16>
    %cst_36 = arith.constant dense<0.000000e+00> : vector<16x8xf32>
    %104 = tpu.matmul %103, %91, %cst_36 {dimension_numbers = #tpu.dot_dimension_numbers<[1], [0], [0], [1], [0, 0, 1, 1], [], []>} : vector<16x16xbf16>, vector<16x8xbf16>, vector<16x8xf32> -> vector<16x8xf32>
    %105 = arith.truncf %104 : vector<16x8xf32> to vector<16x8xbf16>
    %106 = vector.extract_strided_slice %38 {offsets = [16, 0], sizes = [8, 32], strides = [1, 1]} : vector<32x32xbf16> to vector<8x32xbf16>
    %cst_37 = arith.constant dense<0.000000e+00> : vector<16x32xf32>
    %107 = tpu.matmul %105, %106, %cst_37 {dimension_numbers = #tpu.dot_dimension_numbers<[1], [0], [0], [1], [0, 0, 1, 1], [], []>} : vector<16x8xbf16>, vector<8x32xbf16>, vector<16x32xf32> -> vector<16x32xf32>
    %108 = arith.addf %85, %107 : vector<16x32xf32>
    %109 = vector.extract_strided_slice %34 {offsets = [0, 24], sizes = [16, 8], strides = [1, 1]} : vector<16x32xf32> to vector<16x8xf32>
    %110 = arith.truncf %109 : vector<16x8xf32> to vector<16x8xbf16>
    %111 = vector.extract_strided_slice %35 {offsets = [0, 24], sizes = [16, 8], strides = [1, 1]} : vector<16x32xf32> to vector<16x8xf32>
    %112 = arith.truncf %111 : vector<16x8xf32> to vector<16x8xbf16>
    %113 = vector.extract_strided_slice %36 {offsets = [0, 24], sizes = [16, 8], strides = [1, 1]} : vector<16x32xf32> to vector<16x8xf32>
    %114 = arith.truncf %113 : vector<16x8xf32> to vector<16x8xbf16>
    %cst_38 = arith.constant dense<0.000000e+00> : vector<16x16xf32>
    %115 = tpu.matmul %110, %112, %cst_38 {dimension_numbers = #tpu.dot_dimension_numbers<[1], [1], [0], [0], [0, 0, 1, 0], [], []>} : vector<16x8xbf16>, vector<16x8xbf16>, vector<16x16xf32> -> vector<16x16xf32>
    %116 = arith.addf %115, %23 : vector<16x16xf32>
    %cst_39 = arith.constant dense<0xFF800000> : vector<16xf32>
    %117 = vector.multi_reduction <maximumf>, %116, %cst_39 [1] : vector<16x16xf32> to vector<16xf32>
    %118 = vector.shape_cast %117 : vector<16xf32> to vector<16x1xf32>
    %119 = vector.broadcast %118 : vector<16x1xf32> to vector<16x16xf32>
    %120 = arith.subf %116, %119 : vector<16x16xf32>
    %121 = math.exp %120 : vector<16x16xf32>
    %cst_40 = arith.constant dense<0.000000e+00> : vector<16xf32>
    %122 = vector.multi_reduction <add>, %121, %cst_40 [1] : vector<16x16xf32> to vector<16xf32>
    %123 = vector.shape_cast %122 : vector<16xf32> to vector<16x1xf32>
    %124 = vector.broadcast %123 : vector<16x1xf32> to vector<16x16xf32>
    %125 = arith.divf %121, %124 : vector<16x16xf32>
    %126 = arith.truncf %125 : vector<16x16xf32> to vector<16x16xbf16>
    %cst_41 = arith.constant dense<0.000000e+00> : vector<16x8xf32>
    %127 = tpu.matmul %126, %114, %cst_41 {dimension_numbers = #tpu.dot_dimension_numbers<[1], [0], [0], [1], [0, 0, 1, 1], [], []>} : vector<16x16xbf16>, vector<16x8xbf16>, vector<16x8xf32> -> vector<16x8xf32>
    %128 = arith.truncf %127 : vector<16x8xf32> to vector<16x8xbf16>
    %129 = vector.extract_strided_slice %38 {offsets = [24, 0], sizes = [8, 32], strides = [1, 1]} : vector<32x32xbf16> to vector<8x32xbf16>
    %cst_42 = arith.constant dense<0.000000e+00> : vector<16x32xf32>
    %130 = tpu.matmul %128, %129, %cst_42 {dimension_numbers = #tpu.dot_dimension_numbers<[1], [0], [0], [1], [0, 0, 1, 1], [], []>} : vector<16x8xbf16>, vector<8x32xbf16>, vector<16x32xf32> -> vector<16x32xf32>
    %131 = arith.addf %108, %130 : vector<16x32xf32>
    %c0_43 = arith.constant 0 : index
    %c0_44 = arith.constant 0 : index
    %c0_45 = arith.constant 0 : index
    %132 = vector.load %arg8[%c0_43, %c0_44, %c0_45] : memref<2x1x32xf32, #tpu.memory_space<vmem>>, vector<1x1x32xf32>
    %133 = vector.shape_cast %132 : vector<1x1x32xf32> to vector<1x32xf32>
    %134 = vector.broadcast %133 : vector<1x32xf32> to vector<16x32xf32>
    %135 = arith.addf %131, %134 : vector<16x32xf32>
    %136 = arith.addf %135, %22 : vector<16x32xf32>
    %c0_46 = arith.constant 0 : index
    %c0_47 = arith.constant 0 : index
    %c0_48 = arith.constant 0 : index
    %137 = vector.load %arg9[%c0_46, %c0_47, %c0_48] : memref<2x1x32xf32, #tpu.memory_space<vmem>>, vector<1x1x32xf32>
    %138 = vector.shape_cast %137 : vector<1x1x32xf32> to vector<1x32xf32>
    %c0_49 = arith.constant 0 : index
    %c0_50 = arith.constant 0 : index
    %c0_51 = arith.constant 0 : index
    %139 = vector.load %arg10[%c0_49, %c0_50, %c0_51] : memref<2x1x32xf32, #tpu.memory_space<vmem>>, vector<1x1x32xf32>
    %140 = vector.shape_cast %139 : vector<1x1x32xf32> to vector<1x32xf32>
    %cst_52 = arith.constant dense<0.000000e+00> : vector<16xf32>
    %141 = vector.multi_reduction <add>, %136, %cst_52 [1] : vector<16x32xf32> to vector<16xf32>
    %142 = vector.shape_cast %141 : vector<16xf32> to vector<16x1xf32>
    %cst_53 = arith.constant 3.200000e+01 : f32
    %143 = vector.broadcast %cst_53 : f32 to vector<16x1xf32>
    %144 = arith.divf %142, %143 : vector<16x1xf32>
    %145 = vector.broadcast %144 : vector<16x1xf32> to vector<16x32xf32>
    %146 = arith.subf %136, %145 : vector<16x32xf32>
    %147 = arith.mulf %146, %146 : vector<16x32xf32>
    %cst_54 = arith.constant dense<0.000000e+00> : vector<16xf32>
    %148 = vector.multi_reduction <add>, %147, %cst_54 [1] : vector<16x32xf32> to vector<16xf32>
    %149 = vector.shape_cast %148 : vector<16xf32> to vector<16x1xf32>
    %cst_55 = arith.constant 3.200000e+01 : f32
    %150 = vector.broadcast %cst_55 : f32 to vector<16x1xf32>
    %151 = arith.divf %149, %150 : vector<16x1xf32>
    %cst_56 = arith.constant 9.99999996E-13 : f32
    %152 = vector.broadcast %cst_56 : f32 to vector<16x1xf32>
    %153 = arith.addf %151, %152 : vector<16x1xf32>
    %154 = math.rsqrt %153 : vector<16x1xf32>
    %155 = vector.broadcast %154 : vector<16x1xf32> to vector<16x32xf32>
    %156 = arith.mulf %146, %155 : vector<16x32xf32>
    %157 = vector.broadcast %138 : vector<1x32xf32> to vector<16x32xf32>
    %158 = arith.mulf %156, %157 : vector<16x32xf32>
    %159 = vector.broadcast %140 : vector<1x32xf32> to vector<16x32xf32>
    %160 = arith.addf %158, %159 : vector<16x32xf32>
    %161 = arith.truncf %160 : vector<16x32xf32> to vector<16x32xbf16>
    %c0_57 = arith.constant 0 : index
    %c0_58 = arith.constant 0 : index
    %c0_59 = arith.constant 0 : index
    %162 = vector.load %arg11[%c0_57, %c0_58, %c0_59] : memref<2x32x128xbf16, #tpu.memory_space<vmem>>, vector<1x32x128xbf16>
    %163 = vector.shape_cast %162 : vector<1x32x128xbf16> to vector<32x128xbf16>
    %cst_60 = arith.constant dense<0.000000e+00> : vector<16x128xf32>
    %164 = tpu.matmul %161, %163, %cst_60 {dimension_numbers = #tpu.dot_dimension_numbers<[1], [0], [0], [1], [0, 0, 1, 1], [], []>} : vector<16x32xbf16>, vector<32x128xbf16>, vector<16x128xf32> -> vector<16x128xf32>
    %c0_61 = arith.constant 0 : index
    %c0_62 = arith.constant 0 : index
    %c0_63 = arith.constant 0 : index
    %165 = vector.load %arg12[%c0_61, %c0_62, %c0_63] : memref<2x1x128xf32, #tpu.memory_space<vmem>>, vector<1x1x128xf32>
    %166 = vector.shape_cast %165 : vector<1x1x128xf32> to vector<1x128xf32>
    %167 = vector.broadcast %166 : vector<1x128xf32> to vector<16x128xf32>
    %168 = arith.addf %164, %167 : vector<16x128xf32>
    %cst_64 = arith.constant 5.000000e-01 : f32
    %169 = vector.broadcast %cst_64 : f32 to vector<16x128xf32>
    %170 = arith.mulf %169, %168 : vector<16x128xf32>
    %cst_65 = arith.constant 4.471500e-02 : f32
    %171 = vector.broadcast %cst_65 : f32 to vector<16x128xf32>
    %172 = arith.mulf %171, %168 : vector<16x128xf32>
    %173 = arith.mulf %172, %168 : vector<16x128xf32>
    %174 = arith.mulf %173, %168 : vector<16x128xf32>
    %175 = arith.addf %168, %174 : vector<16x128xf32>
    %cst_66 = arith.constant 0.797884583 : f32
    %176 = vector.broadcast %cst_66 : f32 to vector<16x128xf32>
    %177 = arith.mulf %176, %175 : vector<16x128xf32>
    %178 = math.tanh %177 : vector<16x128xf32>
    %cst_67 = arith.constant 1.000000e+00 : f32
    %179 = vector.broadcast %cst_67 : f32 to vector<16x128xf32>
    %180 = arith.addf %179, %178 : vector<16x128xf32>
    %181 = arith.mulf %170, %180 : vector<16x128xf32>
    %182 = arith.truncf %181 : vector<16x128xf32> to vector<16x128xbf16>
    %c0_68 = arith.constant 0 : index
    %c0_69 = arith.constant 0 : index
    %c0_70 = arith.constant 0 : index
    %183 = vector.load %arg13[%c0_68, %c0_69, %c0_70] : memref<2x128x32xbf16, #tpu.memory_space<vmem>>, vector<1x128x32xbf16>
    %184 = vector.shape_cast %183 : vector<1x128x32xbf16> to vector<128x32xbf16>
    %cst_71 = arith.constant dense<0.000000e+00> : vector<16x32xf32>
    %185 = tpu.matmul %182, %184, %cst_71 {dimension_numbers = #tpu.dot_dimension_numbers<[1], [0], [0], [1], [0, 0, 1, 1], [], []>} : vector<16x128xbf16>, vector<128x32xbf16>, vector<16x32xf32> -> vector<16x32xf32>
    %c0_72 = arith.constant 0 : index
    %c0_73 = arith.constant 0 : index
    %c0_74 = arith.constant 0 : index
    %186 = vector.load %arg14[%c0_72, %c0_73, %c0_74] : memref<2x1x32xf32, #tpu.memory_space<vmem>>, vector<1x1x32xf32>
    %187 = vector.shape_cast %186 : vector<1x1x32xf32> to vector<1x32xf32>
    %188 = vector.broadcast %187 : vector<1x32xf32> to vector<16x32xf32>
    %189 = arith.addf %185, %188 : vector<16x32xf32>
    %190 = arith.addf %189, %160 : vector<16x32xf32>
    %c0_75 = arith.constant 0 : index
    %c0_76 = arith.constant 0 : index
    %c0_77 = arith.constant 0 : index
    %191 = vector.load %arg15[%c0_75, %c0_76, %c0_77] : memref<2x1x32xf32, #tpu.memory_space<vmem>>, vector<1x1x32xf32>
    %192 = vector.shape_cast %191 : vector<1x1x32xf32> to vector<1x32xf32>
    %c0_78 = arith.constant 0 : index
    %c0_79 = arith.constant 0 : index
    %c0_80 = arith.constant 0 : index
    %193 = vector.load %arg16[%c0_78, %c0_79, %c0_80] : memref<2x1x32xf32, #tpu.memory_space<vmem>>, vector<1x1x32xf32>
    %194 = vector.shape_cast %193 : vector<1x1x32xf32> to vector<1x32xf32>
    %cst_81 = arith.constant dense<0.000000e+00> : vector<16xf32>
    %195 = vector.multi_reduction <add>, %190, %cst_81 [1] : vector<16x32xf32> to vector<16xf32>
    %196 = vector.shape_cast %195 : vector<16xf32> to vector<16x1xf32>
    %cst_82 = arith.constant 3.200000e+01 : f32
    %197 = vector.broadcast %cst_82 : f32 to vector<16x1xf32>
    %198 = arith.divf %196, %197 : vector<16x1xf32>
    %199 = vector.broadcast %198 : vector<16x1xf32> to vector<16x32xf32>
    %200 = arith.subf %190, %199 : vector<16x32xf32>
    %201 = arith.mulf %200, %200 : vector<16x32xf32>
    %cst_83 = arith.constant dense<0.000000e+00> : vector<16xf32>
    %202 = vector.multi_reduction <add>, %201, %cst_83 [1] : vector<16x32xf32> to vector<16xf32>
    %203 = vector.shape_cast %202 : vector<16xf32> to vector<16x1xf32>
    %cst_84 = arith.constant 3.200000e+01 : f32
    %204 = vector.broadcast %cst_84 : f32 to vector<16x1xf32>
    %205 = arith.divf %203, %204 : vector<16x1xf32>
    %cst_85 = arith.constant 9.99999996E-13 : f32
    %206 = vector.broadcast %cst_85 : f32 to vector<16x1xf32>
    %207 = arith.addf %205, %206 : vector<16x1xf32>
    %208 = math.rsqrt %207 : vector<16x1xf32>
    %209 = vector.broadcast %208 : vector<16x1xf32> to vector<16x32xf32>
    %210 = arith.mulf %200, %209 : vector<16x32xf32>
    %211 = vector.broadcast %192 : vector<1x32xf32> to vector<16x32xf32>
    %212 = arith.mulf %210, %211 : vector<16x32xf32>
    %213 = vector.broadcast %194 : vector<1x32xf32> to vector<16x32xf32>
    %214 = arith.addf %212, %213 : vector<16x32xf32>
    %215 = arith.truncf %214 : vector<16x32xf32> to vector<16x32xbf16>
    %c1 = arith.constant 1 : index
    %c0_86 = arith.constant 0 : index
    %c0_87 = arith.constant 0 : index
    %216 = vector.load %arg5[%c1, %c0_86, %c0_87] : memref<2x32x96xbf16, #tpu.memory_space<vmem>>, vector<1x32x96xbf16>
    %217 = vector.shape_cast %216 : vector<1x32x96xbf16> to vector<32x96xbf16>
    %cst_88 = arith.constant dense<0.000000e+00> : vector<16x96xf32>
    %218 = tpu.matmul %215, %217, %cst_88 {dimension_numbers = #tpu.dot_dimension_numbers<[1], [0], [0], [1], [0, 0, 1, 1], [], []>} : vector<16x32xbf16>, vector<32x96xbf16>, vector<16x96xf32> -> vector<16x96xf32>
    %c1_89 = arith.constant 1 : index
    %c0_90 = arith.constant 0 : index
    %c0_91 = arith.constant 0 : index
    %219 = vector.load %arg6[%c1_89, %c0_90, %c0_91] : memref<2x1x96xf32, #tpu.memory_space<vmem>>, vector<1x1x96xf32>
    %220 = vector.shape_cast %219 : vector<1x1x96xf32> to vector<1x96xf32>
    %221 = vector.broadcast %220 : vector<1x96xf32> to vector<16x96xf32>
    %222 = arith.addf %218, %221 : vector<16x96xf32>
    %223 = vector.extract_strided_slice %222 {offsets = [0, 0], sizes = [16, 32], strides = [1, 1]} : vector<16x96xf32> to vector<16x32xf32>
    %cst_92 = arith.constant 0.353553385 : f32
    %224 = vector.broadcast %cst_92 : f32 to vector<16x32xf32>
    %225 = arith.mulf %223, %224 : vector<16x32xf32>
    %226 = vector.extract_strided_slice %222 {offsets = [0, 32], sizes = [16, 32], strides = [1, 1]} : vector<16x96xf32> to vector<16x32xf32>
    %227 = vector.extract_strided_slice %222 {offsets = [0, 64], sizes = [16, 32], strides = [1, 1]} : vector<16x96xf32> to vector<16x32xf32>
    %c1_93 = arith.constant 1 : index
    %c0_94 = arith.constant 0 : index
    %c0_95 = arith.constant 0 : index
    %228 = vector.load %arg7[%c1_93, %c0_94, %c0_95] : memref<2x32x32xbf16, #tpu.memory_space<vmem>>, vector<1x32x32xbf16>
    %229 = vector.shape_cast %228 : vector<1x32x32xbf16> to vector<32x32xbf16>
    %cst_96 = arith.constant 0.000000e+00 : f32
    %230 = vector.broadcast %cst_96 : f32 to vector<16x32xf32>
    %231 = vector.extract_strided_slice %225 {offsets = [0, 0], sizes = [16, 8], strides = [1, 1]} : vector<16x32xf32> to vector<16x8xf32>
    %232 = arith.truncf %231 : vector<16x8xf32> to vector<16x8xbf16>
    %233 = vector.extract_strided_slice %226 {offsets = [0, 0], sizes = [16, 8], strides = [1, 1]} : vector<16x32xf32> to vector<16x8xf32>
    %234 = arith.truncf %233 : vector<16x8xf32> to vector<16x8xbf16>
    %235 = vector.extract_strided_slice %227 {offsets = [0, 0], sizes = [16, 8], strides = [1, 1]} : vector<16x32xf32> to vector<16x8xf32>
    %236 = arith.truncf %235 : vector<16x8xf32> to vector<16x8xbf16>
    %cst_97 = arith.constant dense<0.000000e+00> : vector<16x16xf32>
    %237 = tpu.matmul %232, %234, %cst_97 {dimension_numbers = #tpu.dot_dimension_numbers<[1], [1], [0], [0], [0, 0, 1, 0], [], []>} : vector<16x8xbf16>, vector<16x8xbf16>, vector<16x16xf32> -> vector<16x16xf32>
    %238 = arith.addf %237, %23 : vector<16x16xf32>
    %cst_98 = arith.constant dense<0xFF800000> : vector<16xf32>
    %239 = vector.multi_reduction <maximumf>, %238, %cst_98 [1] : vector<16x16xf32> to vector<16xf32>
    %240 = vector.shape_cast %239 : vector<16xf32> to vector<16x1xf32>
    %241 = vector.broadcast %240 : vector<16x1xf32> to vector<16x16xf32>
    %242 = arith.subf %238, %241 : vector<16x16xf32>
    %243 = math.exp %242 : vector<16x16xf32>
    %cst_99 = arith.constant dense<0.000000e+00> : vector<16xf32>
    %244 = vector.multi_reduction <add>, %243, %cst_99 [1] : vector<16x16xf32> to vector<16xf32>
    %245 = vector.shape_cast %244 : vector<16xf32> to vector<16x1xf32>
    %246 = vector.broadcast %245 : vector<16x1xf32> to vector<16x16xf32>
    %247 = arith.divf %243, %246 : vector<16x16xf32>
    %248 = arith.truncf %247 : vector<16x16xf32> to vector<16x16xbf16>
    %cst_100 = arith.constant dense<0.000000e+00> : vector<16x8xf32>
    %249 = tpu.matmul %248, %236, %cst_100 {dimension_numbers = #tpu.dot_dimension_numbers<[1], [0], [0], [1], [0, 0, 1, 1], [], []>} : vector<16x16xbf16>, vector<16x8xbf16>, vector<16x8xf32> -> vector<16x8xf32>
    %250 = arith.truncf %249 : vector<16x8xf32> to vector<16x8xbf16>
    %251 = vector.extract_strided_slice %229 {offsets = [0, 0], sizes = [8, 32], strides = [1, 1]} : vector<32x32xbf16> to vector<8x32xbf16>
    %cst_101 = arith.constant dense<0.000000e+00> : vector<16x32xf32>
    %252 = tpu.matmul %250, %251, %cst_101 {dimension_numbers = #tpu.dot_dimension_numbers<[1], [0], [0], [1], [0, 0, 1, 1], [], []>} : vector<16x8xbf16>, vector<8x32xbf16>, vector<16x32xf32> -> vector<16x32xf32>
    %253 = arith.addf %230, %252 : vector<16x32xf32>
    %254 = vector.extract_strided_slice %225 {offsets = [0, 8], sizes = [16, 8], strides = [1, 1]} : vector<16x32xf32> to vector<16x8xf32>
    %255 = arith.truncf %254 : vector<16x8xf32> to vector<16x8xbf16>
    %256 = vector.extract_strided_slice %226 {offsets = [0, 8], sizes = [16, 8], strides = [1, 1]} : vector<16x32xf32> to vector<16x8xf32>
    %257 = arith.truncf %256 : vector<16x8xf32> to vector<16x8xbf16>
    %258 = vector.extract_strided_slice %227 {offsets = [0, 8], sizes = [16, 8], strides = [1, 1]} : vector<16x32xf32> to vector<16x8xf32>
    %259 = arith.truncf %258 : vector<16x8xf32> to vector<16x8xbf16>
    %cst_102 = arith.constant dense<0.000000e+00> : vector<16x16xf32>
    %260 = tpu.matmul %255, %257, %cst_102 {dimension_numbers = #tpu.dot_dimension_numbers<[1], [1], [0], [0], [0, 0, 1, 0], [], []>} : vector<16x8xbf16>, vector<16x8xbf16>, vector<16x16xf32> -> vector<16x16xf32>
    %261 = arith.addf %260, %23 : vector<16x16xf32>
    %cst_103 = arith.constant dense<0xFF800000> : vector<16xf32>
    %262 = vector.multi_reduction <maximumf>, %261, %cst_103 [1] : vector<16x16xf32> to vector<16xf32>
    %263 = vector.shape_cast %262 : vector<16xf32> to vector<16x1xf32>
    %264 = vector.broadcast %263 : vector<16x1xf32> to vector<16x16xf32>
    %265 = arith.subf %261, %264 : vector<16x16xf32>
    %266 = math.exp %265 : vector<16x16xf32>
    %cst_104 = arith.constant dense<0.000000e+00> : vector<16xf32>
    %267 = vector.multi_reduction <add>, %266, %cst_104 [1] : vector<16x16xf32> to vector<16xf32>
    %268 = vector.shape_cast %267 : vector<16xf32> to vector<16x1xf32>
    %269 = vector.broadcast %268 : vector<16x1xf32> to vector<16x16xf32>
    %270 = arith.divf %266, %269 : vector<16x16xf32>
    %271 = arith.truncf %270 : vector<16x16xf32> to vector<16x16xbf16>
    %cst_105 = arith.constant dense<0.000000e+00> : vector<16x8xf32>
    %272 = tpu.matmul %271, %259, %cst_105 {dimension_numbers = #tpu.dot_dimension_numbers<[1], [0], [0], [1], [0, 0, 1, 1], [], []>} : vector<16x16xbf16>, vector<16x8xbf16>, vector<16x8xf32> -> vector<16x8xf32>
    %273 = arith.truncf %272 : vector<16x8xf32> to vector<16x8xbf16>
    %274 = vector.extract_strided_slice %229 {offsets = [8, 0], sizes = [8, 32], strides = [1, 1]} : vector<32x32xbf16> to vector<8x32xbf16>
    %cst_106 = arith.constant dense<0.000000e+00> : vector<16x32xf32>
    %275 = tpu.matmul %273, %274, %cst_106 {dimension_numbers = #tpu.dot_dimension_numbers<[1], [0], [0], [1], [0, 0, 1, 1], [], []>} : vector<16x8xbf16>, vector<8x32xbf16>, vector<16x32xf32> -> vector<16x32xf32>
    %276 = arith.addf %253, %275 : vector<16x32xf32>
    %277 = vector.extract_strided_slice %225 {offsets = [0, 16], sizes = [16, 8], strides = [1, 1]} : vector<16x32xf32> to vector<16x8xf32>
    %278 = arith.truncf %277 : vector<16x8xf32> to vector<16x8xbf16>
    %279 = vector.extract_strided_slice %226 {offsets = [0, 16], sizes = [16, 8], strides = [1, 1]} : vector<16x32xf32> to vector<16x8xf32>
    %280 = arith.truncf %279 : vector<16x8xf32> to vector<16x8xbf16>
    %281 = vector.extract_strided_slice %227 {offsets = [0, 16], sizes = [16, 8], strides = [1, 1]} : vector<16x32xf32> to vector<16x8xf32>
    %282 = arith.truncf %281 : vector<16x8xf32> to vector<16x8xbf16>
    %cst_107 = arith.constant dense<0.000000e+00> : vector<16x16xf32>
    %283 = tpu.matmul %278, %280, %cst_107 {dimension_numbers = #tpu.dot_dimension_numbers<[1], [1], [0], [0], [0, 0, 1, 0], [], []>} : vector<16x8xbf16>, vector<16x8xbf16>, vector<16x16xf32> -> vector<16x16xf32>
    %284 = arith.addf %283, %23 : vector<16x16xf32>
    %cst_108 = arith.constant dense<0xFF800000> : vector<16xf32>
    %285 = vector.multi_reduction <maximumf>, %284, %cst_108 [1] : vector<16x16xf32> to vector<16xf32>
    %286 = vector.shape_cast %285 : vector<16xf32> to vector<16x1xf32>
    %287 = vector.broadcast %286 : vector<16x1xf32> to vector<16x16xf32>
    %288 = arith.subf %284, %287 : vector<16x16xf32>
    %289 = math.exp %288 : vector<16x16xf32>
    %cst_109 = arith.constant dense<0.000000e+00> : vector<16xf32>
    %290 = vector.multi_reduction <add>, %289, %cst_109 [1] : vector<16x16xf32> to vector<16xf32>
    %291 = vector.shape_cast %290 : vector<16xf32> to vector<16x1xf32>
    %292 = vector.broadcast %291 : vector<16x1xf32> to vector<16x16xf32>
    %293 = arith.divf %289, %292 : vector<16x16xf32>
    %294 = arith.truncf %293 : vector<16x16xf32> to vector<16x16xbf16>
    %cst_110 = arith.constant dense<0.000000e+00> : vector<16x8xf32>
    %295 = tpu.matmul %294, %282, %cst_110 {dimension_numbers = #tpu.dot_dimension_numbers<[1], [0], [0], [1], [0, 0, 1, 1], [], []>} : vector<16x16xbf16>, vector<16x8xbf16>, vector<16x8xf32> -> vector<16x8xf32>
    %296 = arith.truncf %295 : vector<16x8xf32> to vector<16x8xbf16>
    %297 = vector.extract_strided_slice %229 {offsets = [16, 0], sizes = [8, 32], strides = [1, 1]} : vector<32x32xbf16> to vector<8x32xbf16>
    %cst_111 = arith.constant dense<0.000000e+00> : vector<16x32xf32>
    %298 = tpu.matmul %296, %297, %cst_111 {dimension_numbers = #tpu.dot_dimension_numbers<[1], [0], [0], [1], [0, 0, 1, 1], [], []>} : vector<16x8xbf16>, vector<8x32xbf16>, vector<16x32xf32> -> vector<16x32xf32>
    %299 = arith.addf %276, %298 : vector<16x32xf32>
    %300 = vector.extract_strided_slice %225 {offsets = [0, 24], sizes = [16, 8], strides = [1, 1]} : vector<16x32xf32> to vector<16x8xf32>
    %301 = arith.truncf %300 : vector<16x8xf32> to vector<16x8xbf16>
    %302 = vector.extract_strided_slice %226 {offsets = [0, 24], sizes = [16, 8], strides = [1, 1]} : vector<16x32xf32> to vector<16x8xf32>
    %303 = arith.truncf %302 : vector<16x8xf32> to vector<16x8xbf16>
    %304 = vector.extract_strided_slice %227 {offsets = [0, 24], sizes = [16, 8], strides = [1, 1]} : vector<16x32xf32> to vector<16x8xf32>
    %305 = arith.truncf %304 : vector<16x8xf32> to vector<16x8xbf16>
    %cst_112 = arith.constant dense<0.000000e+00> : vector<16x16xf32>
    %306 = tpu.matmul %301, %303, %cst_112 {dimension_numbers = #tpu.dot_dimension_numbers<[1], [1], [0], [0], [0, 0, 1, 0], [], []>} : vector<16x8xbf16>, vector<16x8xbf16>, vector<16x16xf32> -> vector<16x16xf32>
    %307 = arith.addf %306, %23 : vector<16x16xf32>
    %cst_113 = arith.constant dense<0xFF800000> : vector<16xf32>
    %308 = vector.multi_reduction <maximumf>, %307, %cst_113 [1] : vector<16x16xf32> to vector<16xf32>
    %309 = vector.shape_cast %308 : vector<16xf32> to vector<16x1xf32>
    %310 = vector.broadcast %309 : vector<16x1xf32> to vector<16x16xf32>
    %311 = arith.subf %307, %310 : vector<16x16xf32>
    %312 = math.exp %311 : vector<16x16xf32>
    %cst_114 = arith.constant dense<0.000000e+00> : vector<16xf32>
    %313 = vector.multi_reduction <add>, %312, %cst_114 [1] : vector<16x16xf32> to vector<16xf32>
    %314 = vector.shape_cast %313 : vector<16xf32> to vector<16x1xf32>
    %315 = vector.broadcast %314 : vector<16x1xf32> to vector<16x16xf32>
    %316 = arith.divf %312, %315 : vector<16x16xf32>
    %317 = arith.truncf %316 : vector<16x16xf32> to vector<16x16xbf16>
    %cst_115 = arith.constant dense<0.000000e+00> : vector<16x8xf32>
    %318 = tpu.matmul %317, %305, %cst_115 {dimension_numbers = #tpu.dot_dimension_numbers<[1], [0], [0], [1], [0, 0, 1, 1], [], []>} : vector<16x16xbf16>, vector<16x8xbf16>, vector<16x8xf32> -> vector<16x8xf32>
    %319 = arith.truncf %318 : vector<16x8xf32> to vector<16x8xbf16>
    %320 = vector.extract_strided_slice %229 {offsets = [24, 0], sizes = [8, 32], strides = [1, 1]} : vector<32x32xbf16> to vector<8x32xbf16>
    %cst_116 = arith.constant dense<0.000000e+00> : vector<16x32xf32>
    %321 = tpu.matmul %319, %320, %cst_116 {dimension_numbers = #tpu.dot_dimension_numbers<[1], [0], [0], [1], [0, 0, 1, 1], [], []>} : vector<16x8xbf16>, vector<8x32xbf16>, vector<16x32xf32> -> vector<16x32xf32>
    %322 = arith.addf %299, %321 : vector<16x32xf32>
    %c1_117 = arith.constant 1 : index
    %c0_118 = arith.constant 0 : index
    %c0_119 = arith.constant 0 : index
    %323 = vector.load %arg8[%c1_117, %c0_118, %c0_119] : memref<2x1x32xf32, #tpu.memory_space<vmem>>, vector<1x1x32xf32>
    %324 = vector.shape_cast %323 : vector<1x1x32xf32> to vector<1x32xf32>
    %325 = vector.broadcast %324 : vector<1x32xf32> to vector<16x32xf32>
    %326 = arith.addf %322, %325 : vector<16x32xf32>
    %327 = arith.addf %326, %214 : vector<16x32xf32>
    %c1_120 = arith.constant 1 : index
    %c0_121 = arith.constant 0 : index
    %c0_122 = arith.constant 0 : index
    %328 = vector.load %arg9[%c1_120, %c0_121, %c0_122] : memref<2x1x32xf32, #tpu.memory_space<vmem>>, vector<1x1x32xf32>
    %329 = vector.shape_cast %328 : vector<1x1x32xf32> to vector<1x32xf32>
    %c1_123 = arith.constant 1 : index
    %c0_124 = arith.constant 0 : index
    %c0_125 = arith.constant 0 : index
    %330 = vector.load %arg10[%c1_123, %c0_124, %c0_125] : memref<2x1x32xf32, #tpu.memory_space<vmem>>, vector<1x1x32xf32>
    %331 = vector.shape_cast %330 : vector<1x1x32xf32> to vector<1x32xf32>
    %cst_126 = arith.constant dense<0.000000e+00> : vector<16xf32>
    %332 = vector.multi_reduction <add>, %327, %cst_126 [1] : vector<16x32xf32> to vector<16xf32>
    %333 = vector.shape_cast %332 : vector<16xf32> to vector<16x1xf32>
    %cst_127 = arith.constant 3.200000e+01 : f32
    %334 = vector.broadcast %cst_127 : f32 to vector<16x1xf32>
    %335 = arith.divf %333, %334 : vector<16x1xf32>
    %336 = vector.broadcast %335 : vector<16x1xf32> to vector<16x32xf32>
    %337 = arith.subf %327, %336 : vector<16x32xf32>
    %338 = arith.mulf %337, %337 : vector<16x32xf32>
    %cst_128 = arith.constant dense<0.000000e+00> : vector<16xf32>
    %339 = vector.multi_reduction <add>, %338, %cst_128 [1] : vector<16x32xf32> to vector<16xf32>
    %340 = vector.shape_cast %339 : vector<16xf32> to vector<16x1xf32>
    %cst_129 = arith.constant 3.200000e+01 : f32
    %341 = vector.broadcast %cst_129 : f32 to vector<16x1xf32>
    %342 = arith.divf %340, %341 : vector<16x1xf32>
    %cst_130 = arith.constant 9.99999996E-13 : f32
    %343 = vector.broadcast %cst_130 : f32 to vector<16x1xf32>
    %344 = arith.addf %342, %343 : vector<16x1xf32>
    %345 = math.rsqrt %344 : vector<16x1xf32>
    %346 = vector.broadcast %345 : vector<16x1xf32> to vector<16x32xf32>
    %347 = arith.mulf %337, %346 : vector<16x32xf32>
    %348 = vector.broadcast %329 : vector<1x32xf32> to vector<16x32xf32>
    %349 = arith.mulf %347, %348 : vector<16x32xf32>
    %350 = vector.broadcast %331 : vector<1x32xf32> to vector<16x32xf32>
    %351 = arith.addf %349, %350 : vector<16x32xf32>
    %352 = arith.truncf %351 : vector<16x32xf32> to vector<16x32xbf16>
    %c1_131 = arith.constant 1 : index
    %c0_132 = arith.constant 0 : index
    %c0_133 = arith.constant 0 : index
    %353 = vector.load %arg11[%c1_131, %c0_132, %c0_133] : memref<2x32x128xbf16, #tpu.memory_space<vmem>>, vector<1x32x128xbf16>
    %354 = vector.shape_cast %353 : vector<1x32x128xbf16> to vector<32x128xbf16>
    %cst_134 = arith.constant dense<0.000000e+00> : vector<16x128xf32>
    %355 = tpu.matmul %352, %354, %cst_134 {dimension_numbers = #tpu.dot_dimension_numbers<[1], [0], [0], [1], [0, 0, 1, 1], [], []>} : vector<16x32xbf16>, vector<32x128xbf16>, vector<16x128xf32> -> vector<16x128xf32>
    %c1_135 = arith.constant 1 : index
    %c0_136 = arith.constant 0 : index
    %c0_137 = arith.constant 0 : index
    %356 = vector.load %arg12[%c1_135, %c0_136, %c0_137] : memref<2x1x128xf32, #tpu.memory_space<vmem>>, vector<1x1x128xf32>
    %357 = vector.shape_cast %356 : vector<1x1x128xf32> to vector<1x128xf32>
    %358 = vector.broadcast %357 : vector<1x128xf32> to vector<16x128xf32>
    %359 = arith.addf %355, %358 : vector<16x128xf32>
    %cst_138 = arith.constant 5.000000e-01 : f32
    %360 = vector.broadcast %cst_138 : f32 to vector<16x128xf32>
    %361 = arith.mulf %360, %359 : vector<16x128xf32>
    %cst_139 = arith.constant 4.471500e-02 : f32
    %362 = vector.broadcast %cst_139 : f32 to vector<16x128xf32>
    %363 = arith.mulf %362, %359 : vector<16x128xf32>
    %364 = arith.mulf %363, %359 : vector<16x128xf32>
    %365 = arith.mulf %364, %359 : vector<16x128xf32>
    %366 = arith.addf %359, %365 : vector<16x128xf32>
    %cst_140 = arith.constant 0.797884583 : f32
    %367 = vector.broadcast %cst_140 : f32 to vector<16x128xf32>
    %368 = arith.mulf %367, %366 : vector<16x128xf32>
    %369 = math.tanh %368 : vector<16x128xf32>
    %cst_141 = arith.constant 1.000000e+00 : f32
    %370 = vector.broadcast %cst_141 : f32 to vector<16x128xf32>
    %371 = arith.addf %370, %369 : vector<16x128xf32>
    %372 = arith.mulf %361, %371 : vector<16x128xf32>
    %373 = arith.truncf %372 : vector<16x128xf32> to vector<16x128xbf16>
    %c1_142 = arith.constant 1 : index
    %c0_143 = arith.constant 0 : index
    %c0_144 = arith.constant 0 : index
    %374 = vector.load %arg13[%c1_142, %c0_143, %c0_144] : memref<2x128x32xbf16, #tpu.memory_space<vmem>>, vector<1x128x32xbf16>
    %375 = vector.shape_cast %374 : vector<1x128x32xbf16> to vector<128x32xbf16>
    %cst_145 = arith.constant dense<0.000000e+00> : vector<16x32xf32>
    %376 = tpu.matmul %373, %375, %cst_145 {dimension_numbers = #tpu.dot_dimension_numbers<[1], [0], [0], [1], [0, 0, 1, 1], [], []>} : vector<16x128xbf16>, vector<128x32xbf16>, vector<16x32xf32> -> vector<16x32xf32>
    %c1_146 = arith.constant 1 : index
    %c0_147 = arith.constant 0 : index
    %c0_148 = arith.constant 0 : index
    %377 = vector.load %arg14[%c1_146, %c0_147, %c0_148] : memref<2x1x32xf32, #tpu.memory_space<vmem>>, vector<1x1x32xf32>
    %378 = vector.shape_cast %377 : vector<1x1x32xf32> to vector<1x32xf32>
    %379 = vector.broadcast %378 : vector<1x32xf32> to vector<16x32xf32>
    %380 = arith.addf %376, %379 : vector<16x32xf32>
    %381 = arith.addf %380, %351 : vector<16x32xf32>
    %c1_149 = arith.constant 1 : index
    %c0_150 = arith.constant 0 : index
    %c0_151 = arith.constant 0 : index
    %382 = vector.load %arg15[%c1_149, %c0_150, %c0_151] : memref<2x1x32xf32, #tpu.memory_space<vmem>>, vector<1x1x32xf32>
    %383 = vector.shape_cast %382 : vector<1x1x32xf32> to vector<1x32xf32>
    %c1_152 = arith.constant 1 : index
    %c0_153 = arith.constant 0 : index
    %c0_154 = arith.constant 0 : index
    %384 = vector.load %arg16[%c1_152, %c0_153, %c0_154] : memref<2x1x32xf32, #tpu.memory_space<vmem>>, vector<1x1x32xf32>
    %385 = vector.shape_cast %384 : vector<1x1x32xf32> to vector<1x32xf32>
    %cst_155 = arith.constant dense<0.000000e+00> : vector<16xf32>
    %386 = vector.multi_reduction <add>, %381, %cst_155 [1] : vector<16x32xf32> to vector<16xf32>
    %387 = vector.shape_cast %386 : vector<16xf32> to vector<16x1xf32>
    %cst_156 = arith.constant 3.200000e+01 : f32
    %388 = vector.broadcast %cst_156 : f32 to vector<16x1xf32>
    %389 = arith.divf %387, %388 : vector<16x1xf32>
    %390 = vector.broadcast %389 : vector<16x1xf32> to vector<16x32xf32>
    %391 = arith.subf %381, %390 : vector<16x32xf32>
    %392 = arith.mulf %391, %391 : vector<16x32xf32>
    %cst_157 = arith.constant dense<0.000000e+00> : vector<16xf32>
    %393 = vector.multi_reduction <add>, %392, %cst_157 [1] : vector<16x32xf32> to vector<16xf32>
    %394 = vector.shape_cast %393 : vector<16xf32> to vector<16x1xf32>
    %cst_158 = arith.constant 3.200000e+01 : f32
    %395 = vector.broadcast %cst_158 : f32 to vector<16x1xf32>
    %396 = arith.divf %394, %395 : vector<16x1xf32>
    %cst_159 = arith.constant 9.99999996E-13 : f32
    %397 = vector.broadcast %cst_159 : f32 to vector<16x1xf32>
    %398 = arith.addf %396, %397 : vector<16x1xf32>
    %399 = math.rsqrt %398 : vector<16x1xf32>
    %400 = vector.broadcast %399 : vector<16x1xf32> to vector<16x32xf32>
    %401 = arith.mulf %391, %400 : vector<16x32xf32>
    %402 = vector.broadcast %383 : vector<1x32xf32> to vector<16x32xf32>
    %403 = arith.mulf %401, %402 : vector<16x32xf32>
    %404 = vector.broadcast %385 : vector<1x32xf32> to vector<16x32xf32>
    %405 = arith.addf %403, %404 : vector<16x32xf32>
    %406 = arith.truncf %405 : vector<16x32xf32> to vector<16x32xbf16>
    %c0_160 = arith.constant 0 : index
    %c0_161 = arith.constant 0 : index
    %407 = vector.load %arg17[%c0_160, %c0_161] : memref<32x128xbf16, #tpu.memory_space<vmem>>, vector<32x128xbf16>
    %cst_162 = arith.constant dense<0.000000e+00> : vector<16x128xf32>
    %408 = tpu.matmul %406, %407, %cst_162 {dimension_numbers = #tpu.dot_dimension_numbers<[1], [0], [0], [1], [0, 0, 1, 1], [], []>} : vector<16x32xbf16>, vector<32x128xbf16>, vector<16x128xf32> -> vector<16x128xf32>
    %c0_163 = arith.constant 0 : index
    %c0_164 = arith.constant 0 : index
    %409 = vector.load %arg18[%c0_163, %c0_164] : memref<1x128xf32, #tpu.memory_space<vmem>>, vector<1x128xf32>
    %410 = vector.broadcast %409 : vector<1x128xf32> to vector<16x128xf32>
    %411 = arith.addf %408, %410 : vector<16x128xf32>
    %412 = tpu.iota {dimensions = array<i32: 1>} : vector<16x128xi32>
    %c9_i32 = arith.constant 9 : i32
    %413 = vector.broadcast %c9_i32 : i32 to vector<16x128xi32>
    %414 = arith.cmpi slt, %412, %413 : vector<16x128xi32>
    %cst_165 = arith.constant -1.000000e+30 : f32
    %415 = vector.broadcast %cst_165 : f32 to vector<16x128xf32>
    %416 = arith.select %414, %411, %415 : vector<16x128xi1>, vector<16x128xf32>
    %cst_166 = arith.constant dense<0xFF800000> : vector<16xf32>
    %417 = vector.multi_reduction <maximumf>, %416, %cst_166 [1] : vector<16x128xf32> to vector<16xf32>
    %418 = vector.shape_cast %417 : vector<16xf32> to vector<16x1xf32>
    %419 = vector.broadcast %418 : vector<16x1xf32> to vector<16x128xf32>
    %420 = arith.cmpf oeq, %416, %419 : vector<16x128xf32>
    %c128_i32 = arith.constant 128 : i32
    %421 = vector.broadcast %c128_i32 : i32 to vector<16x128xi32>
    %422 = arith.select %420, %412, %421 : vector<16x128xi1>, vector<16x128xi32>
    %cst_167 = arith.constant dense<2147483647> : vector<16xi32>
    %423 = vector.multi_reduction <minsi>, %422, %cst_167 [1] : vector<16x128xi32> to vector<16xi32>
    %424 = vector.shape_cast %423 : vector<16xi32> to vector<16x1xi32>
    %c0_168 = arith.constant 0 : index
    %c0_169 = arith.constant 0 : index
    %425 = vector.load %arg20[%c0_168, %c0_169] : memref<16x1xi32, #tpu.memory_space<vmem>>, vector<16x1xi32>
    tpu.vector_store %arg20[%c0_168, %c0_169], %424 {strides = array<i32>} : memref<16x1xi32, #tpu.memory_space<vmem>>, vector<16x1xi32>,
    %c0_170 = arith.constant 0 : index
    %c0_171 = arith.constant 0 : index
    %426 = vector.load %arg2[%c0_170, %c0_171] : memref<16x1xi32, #tpu.memory_space<vmem>>, vector<16x1xi32>
    %427 = vector.broadcast %418 : vector<16x1xf32> to vector<16x128xf32>
    %428 = arith.subf %416, %427 : vector<16x128xf32>
    %429 = math.exp %428 : vector<16x128xf32>
    %cst_172 = arith.constant dense<0.000000e+00> : vector<16xf32>
    %430 = vector.multi_reduction <add>, %429, %cst_172 [1] : vector<16x128xf32> to vector<16xf32>
    %431 = vector.shape_cast %430 : vector<16xf32> to vector<16x1xf32>
    %432 = math.log %431 : vector<16x1xf32>
    %433 = arith.addf %432, %418 : vector<16x1xf32>
    %434 = vector.broadcast %433 : vector<16x1xf32> to vector<16x128xf32>
    %435 = arith.subf %411, %434 : vector<16x128xf32>
    %436 = vector.broadcast %426 : vector<16x1xi32> to vector<16x128xi32>
    %437 = arith.cmpi eq, %412, %436 : vector<16x128xi32>
    %438 = arith.extui %437 : vector<16x128xi1> to vector<16x128xi32>
    %439 = arith.sitofp %438 : vector<16x128xi32> to vector<16x128xf32>
    %440 = arith.mulf %439, %435 : vector<16x128xf32>
    %cst_173 = arith.constant dense<0.000000e+00> : vector<16xf32>
    %441 = vector.multi_reduction <add>, %440, %cst_173 [1] : vector<16x128xf32> to vector<16xf32>
    %442 = vector.shape_cast %441 : vector<16xf32> to vector<16x1xf32>
    %c-100_i32 = arith.constant -100 : i32
    %443 = vector.broadcast %c-100_i32 : i32 to vector<16x1xi32>
    %444 = arith.cmpi ne, %426, %443 : vector<16x1xi32>
    %445 = arith.extui %444 : vector<16x1xi1> to vector<16x1xi32>
    %446 = arith.sitofp %445 : vector<16x1xi32> to vector<16x1xf32>
    %cst_174 = arith.constant 0.000000e+00 : f32
    %447 = vector.broadcast %cst_174 : f32 to vector<16x1xf32>
    %448 = arith.subf %447, %442 : vector<16x1xf32>
    %449 = arith.mulf %448, %446 : vector<16x1xf32>
    %450 = vector.shape_cast %449 : vector<16x1xf32> to vector<1x16x1xf32>
    %cst_175 = arith.constant dense<0.000000e+00> : vector<1xf32>
    %451 = vector.multi_reduction <add>, %450, %cst_175 [1, 2] : vector<1x16x1xf32> to vector<1xf32>
    %452 = vector.shape_cast %451 : vector<1xf32> to vector<1x1x1xf32>
    %453 = vector.extract %452[0, 0, 0] : f32 from vector<1x1x1xf32>
    %454 = vector.shape_cast %446 : vector<16x1xf32> to vector<1x16x1xf32>
    %cst_176 = arith.constant dense<0.000000e+00> : vector<1xf32>
    %455 = vector.multi_reduction <add>, %454, %cst_176 [1, 2] : vector<1x16x1xf32> to vector<1xf32>
    %456 = vector.shape_cast %455 : vector<1xf32> to vector<1x1x1xf32>
    %457 = vector.extract %456[0, 0, 0] : f32 from vector<1x1x1xf32>
    %458 = arith.divf %453, %457 : f32
    %c0_177 = arith.constant 0 : index
    %459 = memref.load %arg19[%c0_177] : memref<1xf32, #tpu.memory_space<smem>>
    memref.store %458, %arg19[%c0_177] : memref<1xf32, #tpu.memory_space<smem>>
    return
  }
}

</mosaic_0001>

<llo_original>
// kernel: _forward_impl.1
$region0: #{_forward_impl.1}
  #allocation0 [shape = 'u32[]', space=smem, size = 0x4, offset = 0x4, fixed_abs, tag = 'smem constant byte address 0x4 - core index']
  #allocation1 [shape = 'u32[144,128]{1,0:T(1,128)}', space=vmem, size = 0x12000, scoped, tag = 'internal scratch']
  %s0 = inlined_call_operand.vmem [shape: f32[16,32], index: 0, kind: input, shape index: {}]
  %s1 = inlined_call_operand.vmem [shape: f32[16,16], index: 1, kind: input, shape index: {}]
  %s2 = inlined_call_operand.vmem [shape: s32[16,1], index: 2, kind: input, shape index: {}]
  %s3 = inlined_call_operand.vmem [shape: f32[1,32], index: 3, kind: input, shape index: {}]
  %s4 = inlined_call_operand.vmem [shape: f32[1,32], index: 4, kind: input, shape index: {}]
  %s5 = inlined_call_operand.vmem [shape: bf16[2,32,96], index: 5, kind: input, shape index: {}]
  %s6 = inlined_call_operand.vmem [shape: f32[2,1,96], index: 6, kind: input, shape index: {}]
  %s7 = inlined_call_operand.vmem [shape: bf16[2,32,32], index: 7, kind: input, shape index: {}]
  %s8 = inlined_call_operand.vmem [shape: f32[2,1,32], index: 8, kind: input, shape index: {}]
  %s9 = inlined_call_operand.vmem [shape: f32[2,1,32], index: 9, kind: input, shape index: {}]
  %s10 = inlined_call_operand.vmem [shape: f32[2,1,32], index: 10, kind: input, shape index: {}]
  %s11 = inlined_call_operand.vmem [shape: bf16[2,32,128], index: 11, kind: input, shape index: {}]
  %s12 = inlined_call_operand.vmem [shape: f32[2,1,128], index: 12, kind: input, shape index: {}]
  %s13 = inlined_call_operand.vmem [shape: bf16[2,128,32], index: 13, kind: input, shape index: {}]
  %s14 = inlined_call_operand.vmem [shape: f32[2,1,32], index: 14, kind: input, shape index: {}]
  %s15 = inlined_call_operand.vmem [shape: f32[2,1,32], index: 15, kind: input, shape index: {}]
  %s16 = inlined_call_operand.vmem [shape: f32[2,1,32], index: 16, kind: input, shape index: {}]
  %s17 = inlined_call_operand.vmem [shape: bf16[32,128], index: 17, kind: input, shape index: {}]
  %s18 = inlined_call_operand.vmem [shape: f32[1,128], index: 18, kind: input, shape index: {}]
  %s19 = inlined_call_operand.hbm [shape: f32[1], index: 19, kind: output, shape index: {0}]
  %s20 = inlined_call_operand.vmem [shape: s32[16,1], index: 20, kind: output, shape index: {1}]
  %21 = xla_tuple %s19, %s20
  %s22 = sld [smem:[#allocation0]]
  $region94: #{_forward_impl.1} parent=0
    _
  %s24 = ssub.s32 1, %s22
  %s25 = scalar_select 0, %s24, %s22
  $region1: #{_forward_impl.1} parent=0
    #allocation2 [shape = 'u8[512]{0}', space=smem, size = 0x200, scoped, tag = 'output window, operand 0, single buffered']
    #allocation3 [shape = 's32[1]{0}', space=sflag, size = 0x4, scoped, tag = 'scoped memory for _forward_impl.1']
    %26 = vsyncpa [#allocation3], 0
    // Predicated region
    $region2: #{_forward_impl.1} parent=1 // pred_check
      _
    $region3: #{_forward_impl.1} parent=1 // pred_check_branch
      %28 = sbr.rel (0) target = $region5
    $region4: #{_forward_impl.1} parent=1 // pred_region
      _
    $region5: #{_forward_impl.1} parent=1 // pred_fallthru
      _
    // Predicated region
    $region6: #{_forward_impl.1} parent=1 // pred_check
      _
    $region7: #{_forward_impl.1} parent=1 // pred_check_branch
      %30 = sbr.rel (0) target = $region9
    $region8: #{_forward_impl.1} parent=1 // pred_region
      _
    $region9: #{_forward_impl.1} parent=1 // pred_fallthru
      _
    // Predicated region
    $region10: #{_forward_impl.1} parent=1 // pred_check
      _
    $region11: #{_forward_impl.1} parent=1 // pred_check_branch
      %32 = sbr.rel (0) target = $region13
    $region12: #{_forward_impl.1} parent=1 // pred_region
      _
    $region13: #{_forward_impl.1} parent=1 // pred_fallthru
      _
    // Predicated region
    $region14: #{_forward_impl.1} parent=1 // pred_check
      _
    $region15: #{_forward_impl.1} parent=1 // pred_check_branch
      %34 = sbr.rel (0) target = $region17
    $region16: #{_forward_impl.1} parent=1 // pred_region
      _
    $region17: #{_forward_impl.1} parent=1 // pred_fallthru
      _
    // Predicated region
    $region18: #{_forward_impl.1} parent=1 // pred_check
      _
    $region19: #{_forward_impl.1} parent=1 // pred_check_branch
      %36 = sbr.rel (0) target = $region21
    $region20: #{_forward_impl.1} parent=1 // pred_region
      _
    $region21: #{_forward_impl.1} parent=1 // pred_fallthru
      _
    // Predicated region
    $region22: #{_forward_impl.1} parent=1 // pred_check
      _
    $region23: #{_forward_impl.1} parent=1 // pred_check_branch
      %38 = sbr.rel (0) target = $region25
    $region24: #{_forward_impl.1} parent=1 // pred_region
      _
    $region25: #{_forward_impl.1} parent=1 // pred_fallthru
      _
    // Predicated region
    $region26: #{_forward_impl.1} parent=1 // pred_check
      _
    $region27: #{_forward_impl.1} parent=1 // pred_check_branch
      %40 = sbr.rel (0) target = $region29
    $region28: #{_forward_impl.1} parent=1 // pred_region
      _
    $region29: #{_forward_impl.1} parent=1 // pred_fallthru
      _
    // Predicated region
    $region30: #{_forward_impl.1} parent=1 // pred_check
      _
    $region31: #{_forward_impl.1} parent=1 // pred_check_branch
      %42 = sbr.rel (0) target = $region33
    $region32: #{_forward_impl.1} parent=1 // pred_region
      _
    $region33: #{_forward_impl.1} parent=1 // pred_fallthru
      _
    // Predicated region
    $region34: #{_forward_impl.1} parent=1 // pred_check
      _
    $region35: #{_forward_impl.1} parent=1 // pred_check_branch
      %44 = sbr.rel (0) target = $region37
    $region36: #{_forward_impl.1} parent=1 // pred_region
      _
    $region37: #{_forward_impl.1} parent=1 // pred_fallthru
      _
    // Predicated region
    $region38: #{_forward_impl.1} parent=1 // pred_check
      _
    $region39: #{_forward_impl.1} parent=1 // pred_check_branch
      %46 = sbr.rel (0) target = $region41
    $region40: #{_forward_impl.1} parent=1 // pred_region
      _
    $region41: #{_forward_impl.1} parent=1 // pred_fallthru
      _
    // Predicated region
    $region42: #{_forward_impl.1} parent=1 // pred_check
      _
    $region43: #{_forward_impl.1} parent=1 // pred_check_branch
      %48 = sbr.rel (0) target = $region45
    $region44: #{_forward_impl.1} parent=1 // pred_region
      _
    $region45: #{_forward_impl.1} parent=1 // pred_fallthru
      _
    // Predicated region
    $region46: #{_forward_impl.1} parent=1 // pred_check
      _
    $region47: #{_forward_impl.1} parent=1 // pred_check_branch
      %50 = sbr.rel (0) target = $region49
    $region48: #{_forward_impl.1} parent=1 // pred_region
      _
    $region49: #{_forward_impl.1} parent=1 // pred_fallthru
      _
    // Predicated region
    $region50: #{_forward_impl.1} parent=1 // pred_check
      _
    $region51: #{_forward_impl.1} parent=1 // pred_check_branch
      %52 = sbr.rel (0) target = $region53
    $region52: #{_forward_impl.1} parent=1 // pred_region
      _
    $region53: #{_forward_impl.1} parent=1 // pred_fallthru
      _
    // Predicated region
    $region54: #{_forward_impl.1} parent=1 // pred_check
      _
    $region55: #{_forward_impl.1} parent=1 // pred_check_branch
      %54 = sbr.rel (0) target = $region57
    $region56: #{_forward_impl.1} parent=1 // pred_region
      _
    $region57: #{_forward_impl.1} parent=1 // pred_fallthru
      _
    // Predicated region
    $region58: #{_forward_impl.1} parent=1 // pred_check
      _
    $region59: #{_forward_impl.1} parent=1 // pred_check_branch
      %56 = sbr.rel (0) target = $region61
    $region60: #{_forward_impl.1} parent=1 // pred_region
      _
    $region61: #{_forward_impl.1} parent=1 // pred_fallthru
      _
    // Predicated region
    $region62: #{_forward_impl.1} parent=1 // pred_check
      _
    $region63: #{_forward_impl.1} parent=1 // pred_check_branch
      %58 = sbr.rel (0) target = $region65
    $region64: #{_forward_impl.1} parent=1 // pred_region
      _
    $region65: #{_forward_impl.1} parent=1 // pred_fallthru
      _
    // Predicated region
    $region66: #{_forward_impl.1} parent=1 // pred_check
      _
    $region67: #{_forward_impl.1} parent=1 // pred_check_branch
      %60 = sbr.rel (0) target = $region69
    $region68: #{_forward_impl.1} parent=1 // pred_region
      _
    $region69: #{_forward_impl.1} parent=1 // pred_fallthru
      _
    // Predicated region
    $region70: #{_forward_impl.1} parent=1 // pred_check
      _
    $region71: #{_forward_impl.1} parent=1 // pred_check_branch
      %62 = sbr.rel (0) target = $region73
    $region72: #{_forward_impl.1} parent=1 // pred_region
      _
    $region73: #{_forward_impl.1} parent=1 // pred_fallthru
      _
    // Predicated region
    $region74: #{_forward_impl.1} parent=1 // pred_check
      _
    $region75: #{_forward_impl.1} parent=1 // pred_check_branch
      %64 = sbr.rel (0) target = $region77
    $region76: #{_forward_impl.1} parent=1 // pred_region
      _
    $region77: #{_forward_impl.1} parent=1 // pred_fallthru
      _
    %v66 = vld [vmem:[%s0] sm:$0xff]
    %v67 = vld [vmem:[%s0 + $0x8] sm:$0xff]
    %v68 = vld [vmem:[%s3] sm:$0x1]
    %v69 = vld [vmem:[%s4] sm:$0x1]
    %vm70 = vcmask 261120
    %v71 = vsel %vm70, %v66, 0.0
    %72 = vadd.xlane.f32.xlu0 %v71
    %v73 = vpop.xlane.xlu0 %72
    %v74 = vsel %vm70, %v67, 0.0
    %75 = vadd.xlane.f32.xlu0 %v74
    %v76 = vpop.xlane.xlu0 %75
    %v77 = vrcp.pop 32.0
    %v78 = vmul.f32 %v73, %v77
    %v79 = vmul.f32 %v76, %v77
    %v80 = vsub.f32 %v66, %v78
    %v81 = vsub.f32 %v67, %v79
    %v82 = vmul.f32 %v80, %v80
    %v83 = vmul.f32 %v81, %v81
    %v84 = vsel %vm70, %v82, 0.0
    %85 = vadd.xlane.f32.xlu0 %v84
    %v86 = vpop.xlane.xlu0 %85
    %v87 = vsel %vm70, %v83, 0.0
    %88 = vadd.xlane.f32.xlu0 %v87
    %v89 = vpop.xlane.xlu0 %88
    %v90 = vmul.f32 %v86, %v77
    %v91 = vmul.f32 %v89, %v77
    %v92 = vadd.f32 %v90, 1e-12
    %v93 = vadd.f32 %v91, 1e-12
    %v94 = vrsqrt.pop %v92
    %v95 = vrsqrt.pop %v93
    %v96 = vmul.f32 %v80, %v94
    %v97 = vmul.f32 %v81, %v95
    %v99 = vlaneseq
    %v100 = vshrl.u32 %v99, 7
    %v101 = vsub.s32 0, %v100
    %v102 = vrot.slane %v68, %v101
    %v104 = vmul.f32 %v96, %v102
    %v105 = vmul.f32 %v97, %v102
    %v107 = vlaneseq
    %v108 = vshrl.u32 %v107, 7
    %v109 = vsub.s32 0, %v108
    %v110 = vrot.slane %v69, %v109
    %v112 = vadd.f32 %v104, %v110
    %v113 = vadd.f32 %v105, %v110
    %v114 = vld [vmem:[%s1] sm:$0xff]
    %v115 = vld [vmem:[%s1 + $0x8] sm:$0xff]
    %v116 = vpack.c.bf16 %v113, %v112
    %v117 = vld [vmem:[%s5] sm:$0xf]
    %v118 = vld [vmem:[%s5 + $0x4] sm:$0xf]
    %v119 = vld [vmem:[%s5 + $0x8] sm:$0xf]
    %v120 = vld [vmem:[%s5 + $0xc] sm:$0xf]
    %v121 = vld [vmem:[%s6] sm:$0x1]
    %v123 = vlaneseq
    %v124 = vshrl.u32 %v123, 7
    %v125 = vsub.s32 0, %v124
    %v126 = vrot.slane %v121, %v125
    %v132 = vunpack.c.l.b16 %v117
    %v133 = vunpack.c.l.b16 %v118
    %v134 = vunpack.c.l.b16 %v119
    %v135 = vunpack.c.l.b16 %v120
    %v136 = vpack.c.b16 %v133, %v132
    %v137 = vpack.c.b16 %v135, %v134
    %v141 = vsel %vm70, %v116, 0
    %143 = vmatprep.subr.bf16.mxu0 0
    %144 = vmatpush1.bf16.msra.mxu0 %v136
    %145 = vmatprep.subr.bf16.mxu0 0
    %146 = vmatpush1.bf16.msra.mxu0 %v137
    %147 = vmatprep.subr.bf16.mxu0 0
    %148 = vmatpush1.bf16.msra.mxu0 0
    %149 = vmatprep.subr.bf16.mxu0 0
    %150 = vmatpush1.bf16.msra.mxu0 0
    %151 = vmatprep.subr.bf16.mxu0 0
    %152 = vmatpush1.bf16.msra.mxu0 0
    %153 = vmatprep.subr.bf16.mxu0 0
    %154 = vmatpush1.bf16.msra.mxu0 0
    %155 = vmatprep.subr.bf16.mxu0 0
    %156 = vmatpush1.bf16.msra.mxu0 0
    %157 = vmatprep.subr.bf16.mxu0 0
    %158 = vmatpush1.bf16.msra.mxu0 0
    %159 = vmatprep.subr.bf16.mxu0 0
    %160 = vmatpush1.bf16.msra.mxu0 0
    %161 = vmatprep.subr.bf16.mxu0 0
    %162 = vmatpush1.bf16.msra.mxu0 0
    %163 = vmatprep.subr.bf16.mxu0 0
    %164 = vmatpush1.bf16.msra.mxu0 0
    %165 = vmatprep.subr.bf16.mxu0 0
    %166 = vmatpush1.bf16.msra.mxu0 0
    %167 = vmatprep.subr.bf16.mxu0 0
    %168 = vmatpush1.bf16.msra.mxu0 0
    %169 = vmatprep.subr.bf16.mxu0 0
    %170 = vmatpush1.bf16.msra.mxu0 0
    %171 = vmatprep.subr.bf16.mxu0 0
    %172 = vmatpush1.bf16.msra.mxu0 0
    %173 = vmatprep.subr.bf16.mxu0 0
    %174 = vmatpush1.bf16.msra.mxu0 0
    %175 = vmatprep.mubr.bf16.mxu0 0
    %176 = vmatmul.mubr.bf16.gmra.mrb[0].mxu0 %v141
    %v177 = vpop.f32.mrb[0].mxu0
    %v178 = vadd.f32 %v126, %v177
    %v179 = vpop.f32.mrb[0].mxu0
    %v180 = vpop.f32.mrb[0].mxu0
    %v181 = vadd.f32 %v126, %v180
    %v182 = vpop.f32.mrb[0].mxu0
    %183 = vdwg.mxu0
    %v184 = vmul.f32 %v178, 0.35355338
    %v185 = vmul.f32 %v181, 0.35355338
    %v186 = vld [vmem:[%s7] sm:$0xf]
    %v187 = vld [vmem:[%s7 + $0x4] sm:$0xf]
    %v188 = vld [vmem:[%s7 + $0x8] sm:$0xf]
    %v189 = vld [vmem:[%s7 + $0xc] sm:$0xf]
    %v190 = vpack.c.bf16 %v185, %v184
    %v191 = vpack.c.bf16 %v181, %v178
    %193 = vrot.lane.b32.xlu0 %v191, 96
    %v194 = vpop.permute.xlu0 %193
    %vm195 = vcmask 64512
    %v197 = vsel %vm195, %v190, 0
    %v200 = vsel %vm195, %v194, 0
    %202 = vmatprep.subr.bf16.mxu0 0
    %203 = vmatpush1.bf16.xpose.msra.mxu0 %v200
    %204 = vmatprep.subr.bf16.mxu0 0
    %205 = vmatpush1.bf16.xpose.msra.mxu0 0
    %206 = vmatprep.subr.bf16.mxu0 0
    %207 = vmatpush1.bf16.xpose.msra.mxu0 0
    %208 = vmatprep.subr.bf16.mxu0 0
    %209 = vmatpush1.bf16.xpose.msra.mxu0 0
    %210 = vmatprep.subr.bf16.mxu0 0
    %211 = vmatpush1.bf16.xpose.msra.mxu0 0
    %212 = vmatprep.subr.bf16.mxu0 0
    %213 = vmatpush1.bf16.xpose.msra.mxu0 0
    %214 = vmatprep.subr.bf16.mxu0 0
    %215 = vmatpush1.bf16.xpose.msra.mxu0 0
    %216 = vmatprep.subr.bf16.mxu0 0
    %217 = vmatpush1.bf16.xpose.msra.mxu0 0
    %218 = vmatprep.subr.bf16.mxu0 0
    %219 = vmatpush1.bf16.xpose.msra.mxu0 0
    %220 = vmatprep.subr.bf16.mxu0 0
    %221 = vmatpush1.bf16.xpose.msra.mxu0 0
    %222 = vmatprep.subr.bf16.mxu0 0
    %223 = vmatpush1.bf16.xpose.msra.mxu0 0
    %224 = vmatprep.subr.bf16.mxu0 0
    %225 = vmatpush1.bf16.xpose.msra.mxu0 0
    %226 = vmatprep.subr.bf16.mxu0 0
    %227 = vmatpush1.bf16.xpose.msra.mxu0 0
    %228 = vmatprep.subr.bf16.mxu0 0
    %229 = vmatpush1.bf16.xpose.msra.mxu0 0
    %230 = vmatprep.subr.bf16.mxu0 0
    %231 = vmatpush1.bf16.xpose.msra.mxu0 0
    %232 = vmatprep.subr.bf16.mxu0 0
    %233 = vmatpush1.bf16.xpose.msra.mxu0 0
    %234 = vmatprep.mubr.bf16.mxu0 0
    %235 = vmatmul.mubr.bf16.gmra.mrb[0].mxu0 %v197
    %v236 = vpop.f32.mrb[0].mxu0
    %v237 = vadd.f32 %v114, %v236
    %v238 = vpop.f32.mrb[0].mxu0
    %v239 = vpop.f32.mrb[0].mxu0
    %v240 = vadd.f32 %v115, %v239
    %v241 = vpop.f32.mrb[0].mxu0
    %242 = vdwg.mxu0
    %vm243 = vcmask 130048
    %v244 = vsel %vm243, %v237, -inf
    %245 = vmax.xlane.f32.xlu0 %v244
    %v246 = vpop.xlane.xlu0 %245
    %v247 = vsel %vm243, %v240, -inf
    %248 = vmax.xlane.f32.xlu0 %v247
    %v249 = vpop.xlane.xlu0 %248
    %v250 = vsub.f32 %v237, %v246
    %v251 = vsub.f32 %v240, %v249
    %v252 = vmul.f32 %v250, 1.442695
    %v253 = vpow.pop %v252
    %v254 = vmul.f32 %v251, 1.442695
    %v255 = vpow.pop %v254
    %v256 = vsel %vm243, %v253, 0.0
    %257 = vadd.xlane.f32.xlu0 %v256
    %v258 = vpop.xlane.xlu0 %257
    %v259 = vsel %vm243, %v255, 0.0
    %260 = vadd.xlane.f32.xlu0 %v259
    %v261 = vpop.xlane.xlu0 %260
    %v262 = vrcp.pop %v258
    %v263 = vmul.f32 %v253, %v262
    %v264 = vrcp.pop %v261
    %v265 = vmul.f32 %v255, %v264
    %v266 = vpack.c.bf16 %v265, %v263
    %267 = vrot.lane.b32.xlu0 %v191, 64
    %v268 = vpop.permute.xlu0 %267
    %v271 = vsel %vm243, %v266, 0
    %273 = vmatprep.subr.bf16.mxu0 0
    %274 = vmatpush1.bf16.msra.mxu0 %v268
    %275 = vmatprep.subr.bf16.mxu0 0
    %276 = vmatpush1.bf16.msra.mxu0 0
    %277 = vmatprep.subr.bf16.mxu0 0
    %278 = vmatpush1.bf16.msra.mxu0 0
    %279 = vmatprep.subr.bf16.mxu0 0
    %280 = vmatpush1.bf16.msra.mxu0 0
    %281 = vmatprep.subr.bf16.mxu0 0
    %282 = vmatpush1.bf16.msra.mxu0 0
    %283 = vmatprep.subr.bf16.mxu0 0
    %284 = vmatpush1.bf16.msra.mxu0 0
    %285 = vmatprep.subr.bf16.mxu0 0
    %286 = vmatpush1.bf16.msra.mxu0 0
    %287 = vmatprep.subr.bf16.mxu0 0
    %288 = vmatpush1.bf16.msra.mxu0 0
    %289 = vmatprep.subr.bf16.mxu0 0
    %290 = vmatpush1.bf16.msra.mxu0 0
    %291 = vmatprep.subr.bf16.mxu0 0
    %292 = vmatpush1.bf16.msra.mxu0 0
    %293 = vmatprep.subr.bf16.mxu0 0
    %294 = vmatpush1.bf16.msra.mxu0 0
    %295 = vmatprep.subr.bf16.mxu0 0
    %296 = vmatpush1.bf16.msra.mxu0 0
    %297 = vmatprep.subr.bf16.mxu0 0
    %298 = vmatpush1.bf16.msra.mxu0 0
    %299 = vmatprep.subr.bf16.mxu0 0
    %300 = vmatpush1.bf16.msra.mxu0 0
    %301 = vmatprep.subr.bf16.mxu0 0
    %302 = vmatpush1.bf16.msra.mxu0 0
    %303 = vmatprep.subr.bf16.mxu0 0
    %304 = vmatpush1.bf16.msra.mxu0 0
    %305 = vmatprep.mubr.bf16.mxu0 0
    %306 = vmatmul.mubr.bf16.gmra.mrb[0].mxu0 %v271
    %v307 = vpop.f32.mrb[0].mxu0
    %v308 = vadd.f32 0.0, %v307
    %v309 = vpop.f32.mrb[0].mxu0
    %v310 = vpop.f32.mrb[0].mxu0
    %v311 = vadd.f32 0.0, %v310
    %v312 = vpop.f32.mrb[0].mxu0
    %313 = vdwg.mxu0
    %v314 = vpack.c.bf16 %v311, %v308
    %316 = vrot.lane.b32.xlu0 %v190, 120
    %v317 = vpop.permute.xlu0 %316
    %318 = vrot.lane.b32.xlu0 %v191, 88
    %v319 = vpop.permute.xlu0 %318
    %v321 = vsel %vm195, %v317, 0
    %v324 = vsel %vm195, %v319, 0
    %326 = vmatprep.subr.bf16.mxu0 0
    %327 = vmatpush1.bf16.xpose.msra.mxu0 %v324
    %328 = vmatprep.subr.bf16.mxu0 0
    %329 = vmatpush1.bf16.xpose.msra.mxu0 0
    %330 = vmatprep.subr.bf16.mxu0 0
    %331 = vmatpush1.bf16.xpose.msra.mxu0 0
    %332 = vmatprep.subr.bf16.mxu0 0
    %333 = vmatpush1.bf16.xpose.msra.mxu0 0
    %334 = vmatprep.subr.bf16.mxu0 0
    %335 = vmatpush1.bf16.xpose.msra.mxu0 0
    %336 = vmatprep.subr.bf16.mxu0 0
    %337 = vmatpush1.bf16.xpose.msra.mxu0 0
    %338 = vmatprep.subr.bf16.mxu0 0
    %339 = vmatpush1.bf16.xpose.msra.mxu0 0
    %340 = vmatprep.subr.bf16.mxu0 0
    %341 = vmatpush1.bf16.xpose.msra.mxu0 0
    %342 = vmatprep.subr.bf16.mxu0 0
    %343 = vmatpush1.bf16.xpose.msra.mxu0 0
    %344 = vmatprep.subr.bf16.mxu0 0
    %345 = vmatpush1.bf16.xpose.msra.mxu0 0
    %346 = vmatprep.subr.bf16.mxu0 0
    %347 = vmatpush1.bf16.xpose.msra.mxu0 0
    %348 = vmatprep.subr.bf16.mxu0 0
    %349 = vmatpush1.bf16.xpose.msra.mxu0 0
    %350 = vmatprep.subr.bf16.mxu0 0
    %351 = vmatpush1.bf16.xpose.msra.mxu0 0
    %352 = vmatprep.subr.bf16.mxu0 0
    %353 = vmatpush1.bf16.xpose.msra.mxu0 0
    %354 = vmatprep.subr.bf16.mxu0 0
    %355 = vmatpush1.bf16.xpose.msra.mxu0 0
    %356 = vmatprep.subr.bf16.mxu0 0
    %357 = vmatpush1.bf16.xpose.msra.mxu0 0
    %358 = vmatprep.mubr.bf16.mxu0 0
    %359 = vmatmul.mubr.bf16.gmra.mrb[0].mxu0 %v321
    %v360 = vpop.f32.mrb[0].mxu0
    %v361 = vadd.f32 %v114, %v360
    %v362 = vpop.f32.mrb[0].mxu0
    %v363 = vpop.f32.mrb[0].mxu0
    %v364 = vadd.f32 %v115, %v363
    %v365 = vpop.f32.mrb[0].mxu0
    %366 = vdwg.mxu0
    %v367 = vsel %vm243, %v361, -inf
    %368 = vmax.xlane.f32.xlu0 %v367
    %v369 = vpop.xlane.xlu0 %368
    %v370 = vsel %vm243, %v364, -inf
    %371 = vmax.xlane.f32.xlu0 %v370
    %v372 = vpop.xlane.xlu0 %371
    %v373 = vsub.f32 %v361, %v369
    %v374 = vsub.f32 %v364, %v372
    %v375 = vmul.f32 %v373, 1.442695
    %v376 = vpow.pop %v375
    %v377 = vmul.f32 %v374, 1.442695
    %v378 = vpow.pop %v377
    %v379 = vsel %vm243, %v376, 0.0
    %380 = vadd.xlane.f32.xlu0 %v379
    %v381 = vpop.xlane.xlu0 %380
    %v382 = vsel %vm243, %v378, 0.0
    %383 = vadd.xlane.f32.xlu0 %v382
    %v384 = vpop.xlane.xlu0 %383
    %v385 = vrcp.pop %v381
    %v386 = vmul.f32 %v376, %v385
    %v387 = vrcp.pop %v384
    %v388 = vmul.f32 %v378, %v387
    %v389 = vpack.c.bf16 %v388, %v386
    %390 = vrot.lane.b32.xlu0 %v191, 56
    %v391 = vpop.permute.xlu0 %390
    %v394 = vsel %vm243, %v389, 0
    %396 = vmatprep.subr.bf16.mxu0 0
    %397 = vmatpush1.bf16.msra.mxu0 %v391
    %398 = vmatprep.subr.bf16.mxu0 0
    %399 = vmatpush1.bf16.msra.mxu0 0
    %400 = vmatprep.subr.bf16.mxu0 0
    %401 = vmatpush1.bf16.msra.mxu0 0
    %402 = vmatprep.subr.bf16.mxu0 0
    %403 = vmatpush1.bf16.msra.mxu0 0
    %404 = vmatprep.subr.bf16.mxu0 0
    %405 = vmatpush1.bf16.msra.mxu0 0
    %406 = vmatprep.subr.bf16.mxu0 0
    %407 = vmatpush1.bf16.msra.mxu0 0
    %408 = vmatprep.subr.bf16.mxu0 0
    %409 = vmatpush1.bf16.msra.mxu0 0
    %410 = vmatprep.subr.bf16.mxu0 0
    %411 = vmatpush1.bf16.msra.mxu0 0
    %412 = vmatprep.subr.bf16.mxu0 0
    %413 = vmatpush1.bf16.msra.mxu0 0
    %414 = vmatprep.subr.bf16.mxu0 0
    %415 = vmatpush1.bf16.msra.mxu0 0
    %416 = vmatprep.subr.bf16.mxu0 0
    %417 = vmatpush1.bf16.msra.mxu0 0
    %418 = vmatprep.subr.bf16.mxu0 0
    %419 = vmatpush1.bf16.msra.mxu0 0
    %420 = vmatprep.subr.bf16.mxu0 0
    %421 = vmatpush1.bf16.msra.mxu0 0
    %422 = vmatprep.subr.bf16.mxu0 0
    %423 = vmatpush1.bf16.msra.mxu0 0
    %424 = vmatprep.subr.bf16.mxu0 0
    %425 = vmatpush1.bf16.msra.mxu0 0
    %426 = vmatprep.subr.bf16.mxu0 0
    %427 = vmatpush1.bf16.msra.mxu0 0
    %428 = vmatprep.mubr.bf16.mxu0 0
    %429 = vmatmul.mubr.bf16.gmra.mrb[0].mxu0 %v394
    %v430 = vpop.f32.mrb[0].mxu0
    %v431 = vadd.f32 0.0, %v430
    %v432 = vpop.f32.mrb[0].mxu0
    %v433 = vpop.f32.mrb[0].mxu0
    %v434 = vadd.f32 0.0, %v433
    %v435 = vpop.f32.mrb[0].mxu0
    %436 = vdwg.mxu0
    %v437 = vpack.c.bf16 %v434, %v431
    %v439 = vsel %vm195, %v437, 0
    %vm441 = vcmask 1043456
    %v443 = vsel %vm441, %v187, 0
    %445 = vmatprep.subr.bf16.mxu0 0
    %446 = vmatpush1.bf16.msra.mxu0 %v443
    %447 = vmatprep.subr.bf16.mxu0 0
    %448 = vmatpush1.bf16.msra.mxu0 0
    %449 = vmatprep.subr.bf16.mxu0 0
    %450 = vmatpush1.bf16.msra.mxu0 0
    %451 = vmatprep.subr.bf16.mxu0 0
    %452 = vmatpush1.bf16.msra.mxu0 0
    %453 = vmatprep.subr.bf16.mxu0 0
    %454 = vmatpush1.bf16.msra.mxu0 0
    %455 = vmatprep.subr.bf16.mxu0 0
    %456 = vmatpush1.bf16.msra.mxu0 0
    %457 = vmatprep.subr.bf16.mxu0 0
    %458 = vmatpush1.bf16.msra.mxu0 0
    %459 = vmatprep.subr.bf16.mxu0 0
    %460 = vmatpush1.bf16.msra.mxu0 0
    %461 = vmatprep.subr.bf16.mxu0 0
    %462 = vmatpush1.bf16.msra.mxu0 0
    %463 = vmatprep.subr.bf16.mxu0 0
    %464 = vmatpush1.bf16.msra.mxu0 0
    %465 = vmatprep.subr.bf16.mxu0 0
    %466 = vmatpush1.bf16.msra.mxu0 0
    %467 = vmatprep.subr.bf16.mxu0 0
    %468 = vmatpush1.bf16.msra.mxu0 0
    %469 = vmatprep.subr.bf16.mxu0 0
    %470 = vmatpush1.bf16.msra.mxu0 0
    %471 = vmatprep.subr.bf16.mxu0 0
    %472 = vmatpush1.bf16.msra.mxu0 0
    %473 = vmatprep.subr.bf16.mxu0 0
    %474 = vmatpush1.bf16.msra.mxu0 0
    %475 = vmatprep.subr.bf16.mxu0 0
    %476 = vmatpush1.bf16.msra.mxu0 0
    %477 = vmatprep.mubr.bf16.mxu0 0
    %478 = vmatmul.mubr.bf16.gmra.mrb[0].mxu0 %v439
    %v479 = vpop.f32.mrb[0].mxu0
    %v480 = vadd.f32 0.0, %v479
    %v481 = vpop.f32.mrb[0].mxu0
    %v482 = vpop.f32.mrb[0].mxu0
    %v483 = vadd.f32 0.0, %v482
    %v484 = vpop.f32.mrb[0].mxu0
    %485 = vdwg.mxu0
    %v487 = vsel %vm195, %v314, 0
    %v490 = vsel %vm441, %v186, 0
    %492 = vmatprep.subr.bf16.mxu0 0
    %493 = vmatpush1.bf16.msra.mxu0 %v490
    %494 = vmatprep.subr.bf16.mxu0 0
    %495 = vmatpush1.bf16.msra.mxu0 0
    %496 = vmatprep.subr.bf16.mxu0 0
    %497 = vmatpush1.bf16.msra.mxu0 0
    %498 = vmatprep.subr.bf16.mxu0 0
    %499 = vmatpush1.bf16.msra.mxu0 0
    %500 = vmatprep.subr.bf16.mxu0 0
    %501 = vmatpush1.bf16.msra.mxu0 0
    %502 = vmatprep.subr.bf16.mxu0 0
    %503 = vmatpush1.bf16.msra.mxu0 0
    %504 = vmatprep.subr.bf16.mxu0 0
    %505 = vmatpush1.bf16.msra.mxu0 0
    %506 = vmatprep.subr.bf16.mxu0 0
    %507 = vmatpush1.bf16.msra.mxu0 0
    %508 = vmatprep.subr.bf16.mxu0 0
    %509 = vmatpush1.bf16.msra.mxu0 0
    %510 = vmatprep.subr.bf16.mxu0 0
    %511 = vmatpush1.bf16.msra.mxu0 0
    %512 = vmatprep.subr.bf16.mxu0 0
    %513 = vmatpush1.bf16.msra.mxu0 0
    %514 = vmatprep.subr.bf16.mxu0 0
    %515 = vmatpush1.bf16.msra.mxu0 0
    %516 = vmatprep.subr.bf16.mxu0 0
    %517 = vmatpush1.bf16.msra.mxu0 0
    %518 = vmatprep.subr.bf16.mxu0 0
    %519 = vmatpush1.bf16.msra.mxu0 0
    %520 = vmatprep.subr.bf16.mxu0 0
    %521 = vmatpush1.bf16.msra.mxu0 0
    %522 = vmatprep.subr.bf16.mxu0 0
    %523 = vmatpush1.bf16.msra.mxu0 0
    %524 = vmatprep.mubr.bf16.mxu0 0
    %525 = vmatmul.mubr.bf16.gmra.mrb[0].mxu0 %v487
    %v526 = vpop.f32.mrb[0].mxu0
    %v527 = vadd.f32 %v480, %v526
    %v528 = vpop.f32.mrb[0].mxu0
    %v529 = vpop.f32.mrb[0].mxu0
    %v530 = vadd.f32 %v483, %v529
    %v531 = vpop.f32.mrb[0].mxu0
    %532 = vdwg.mxu0
    %533 = vrot.lane.b32.xlu0 %v190, 112
    %v534 = vpop.permute.xlu0 %533
    %535 = vrot.lane.b32.xlu0 %v191, 80
    %v536 = vpop.permute.xlu0 %535
    %v538 = vsel %vm195, %v534, 0
    %v541 = vsel %vm195, %v536, 0
    %543 = vmatprep.subr.bf16.mxu0 0
    %544 = vmatpush1.bf16.xpose.msra.mxu0 %v541
    %545 = vmatprep.subr.bf16.mxu0 0
    %546 = vmatpush1.bf16.xpose.msra.mxu0 0
    %547 = vmatprep.subr.bf16.mxu0 0
    %548 = vmatpush1.bf16.xpose.msra.mxu0 0
    %549 = vmatprep.subr.bf16.mxu0 0
    %550 = vmatpush1.bf16.xpose.msra.mxu0 0
    %551 = vmatprep.subr.bf16.mxu0 0
    %552 = vmatpush1.bf16.xpose.msra.mxu0 0
    %553 = vmatprep.subr.bf16.mxu0 0
    %554 = vmatpush1.bf16.xpose.msra.mxu0 0
    %555 = vmatprep.subr.bf16.mxu0 0
    %556 = vmatpush1.bf16.xpose.msra.mxu0 0
    %557 = vmatprep.subr.bf16.mxu0 0
    %558 = vmatpush1.bf16.xpose.msra.mxu0 0
    %559 = vmatprep.subr.bf16.mxu0 0
    %560 = vmatpush1.bf16.xpose.msra.mxu0 0
    %561 = vmatprep.subr.bf16.mxu0 0
    %562 = vmatpush1.bf16.xpose.msra.mxu0 0
    %563 = vmatprep.subr.bf16.mxu0 0
    %564 = vmatpush1.bf16.xpose.msra.mxu0 0
    %565 = vmatprep.subr.bf16.mxu0 0
    %566 = vmatpush1.bf16.xpose.msra.mxu0 0
    %567 = vmatprep.subr.bf16.mxu0 0
    %568 = vmatpush1.bf16.xpose.msra.mxu0 0
    %569 = vmatprep.subr.bf16.mxu0 0
    %570 = vmatpush1.bf16.xpose.msra.mxu0 0
    %571 = vmatprep.subr.bf16.mxu0 0
    %572 = vmatpush1.bf16.xpose.msra.mxu0 0
    %573 = vmatprep.subr.bf16.mxu0 0
    %574 = vmatpush1.bf16.xpose.msra.mxu0 0
    %575 = vmatprep.mubr.bf16.mxu0 0
    %576 = vmatmul.mubr.bf16.gmra.mrb[0].mxu0 %v538
    %v577 = vpop.f32.mrb[0].mxu0
    %v578 = vadd.f32 %v114, %v577
    %v579 = vpop.f32.mrb[0].mxu0
    %v580 = vpop.f32.mrb[0].mxu0
    %v581 = vadd.f32 %v115, %v580
    %v582 = vpop.f32.mrb[0].mxu0
    %583 = vdwg.mxu0
    %v584 = vsel %vm243, %v578, -inf
    %585 = vmax.xlane.f32.xlu0 %v584
    %v586 = vpop.xlane.xlu0 %585
    %v587 = vsel %vm243, %v581, -inf
    %588 = vmax.xlane.f32.xlu0 %v587
    %v589 = vpop.xlane.xlu0 %588
    %v590 = vsub.f32 %v578, %v586
    %v591 = vsub.f32 %v581, %v589
    %v592 = vmul.f32 %v590, 1.442695
    %v593 = vpow.pop %v592
    %v594 = vmul.f32 %v591, 1.442695
    %v595 = vpow.pop %v594
    %v596 = vsel %vm243, %v593, 0.0
    %597 = vadd.xlane.f32.xlu0 %v596
    %v598 = vpop.xlane.xlu0 %597
    %v599 = vsel %vm243, %v595, 0.0
    %600 = vadd.xlane.f32.xlu0 %v599
    %v601 = vpop.xlane.xlu0 %600
    %v602 = vrcp.pop %v598
    %v603 = vmul.f32 %v593, %v602
    %v604 = vrcp.pop %v601
    %v605 = vmul.f32 %v595, %v604
    %v606 = vpack.c.bf16 %v605, %v603
    %607 = vrot.lane.b32.xlu0 %v191, 48
    %v608 = vpop.permute.xlu0 %607
    %v611 = vsel %vm243, %v606, 0
    %613 = vmatprep.subr.bf16.mxu0 0
    %614 = vmatpush1.bf16.msra.mxu0 %v608
    %615 = vmatprep.subr.bf16.mxu0 0
    %616 = vmatpush1.bf16.msra.mxu0 0
    %617 = vmatprep.subr.bf16.mxu0 0
    %618 = vmatpush1.bf16.msra.mxu0 0
    %619 = vmatprep.subr.bf16.mxu0 0
    %620 = vmatpush1.bf16.msra.mxu0 0
    %621 = vmatprep.subr.bf16.mxu0 0
    %622 = vmatpush1.bf16.msra.mxu0 0
    %623 = vmatprep.subr.bf16.mxu0 0
    %624 = vmatpush1.bf16.msra.mxu0 0
    %625 = vmatprep.subr.bf16.mxu0 0
    %626 = vmatpush1.bf16.msra.mxu0 0
    %627 = vmatprep.subr.bf16.mxu0 0
    %628 = vmatpush1.bf16.msra.mxu0 0
    %629 = vmatprep.subr.bf16.mxu0 0
    %630 = vmatpush1.bf16.msra.mxu0 0
    %631 = vmatprep.subr.bf16.mxu0 0
    %632 = vmatpush1.bf16.msra.mxu0 0
    %633 = vmatprep.subr.bf16.mxu0 0
    %634 = vmatpush1.bf16.msra.mxu0 0
    %635 = vmatprep.subr.bf16.mxu0 0
    %636 = vmatpush1.bf16.msra.mxu0 0
    %637 = vmatprep.subr.bf16.mxu0 0
    %638 = vmatpush1.bf16.msra.mxu0 0
    %639 = vmatprep.subr.bf16.mxu0 0
    %640 = vmatpush1.bf16.msra.mxu0 0
    %641 = vmatprep.subr.bf16.mxu0 0
    %642 = vmatpush1.bf16.msra.mxu0 0
    %643 = vmatprep.subr.bf16.mxu0 0
    %644 = vmatpush1.bf16.msra.mxu0 0
    %645 = vmatprep.mubr.bf16.mxu0 0
    %646 = vmatmul.mubr.bf16.gmra.mrb[0].mxu0 %v611
    %v647 = vpop.f32.mrb[0].mxu0
    %v648 = vadd.f32 0.0, %v647
    %v649 = vpop.f32.mrb[0].mxu0
    %v650 = vpop.f32.mrb[0].mxu0
    %v651 = vadd.f32 0.0, %v650
    %v652 = vpop.f32.mrb[0].mxu0
    %653 = vdwg.mxu0
    %v654 = vpack.c.bf16 %v651, %v648
    %v656 = vsel %vm195, %v654, 0
    %v659 = vsel %vm441, %v188, 0
    %661 = vmatprep.subr.bf16.mxu0 0
    %662 = vmatpush1.bf16.msra.mxu0 %v659
    %663 = vmatprep.subr.bf16.mxu0 0
    %664 = vmatpush1.bf16.msra.mxu0 0
    %665 = vmatprep.subr.bf16.mxu0 0
    %666 = vmatpush1.bf16.msra.mxu0 0
    %667 = vmatprep.subr.bf16.mxu0 0
    %668 = vmatpush1.bf16.msra.mxu0 0
    %669 = vmatprep.subr.bf16.mxu0 0
    %670 = vmatpush1.bf16.msra.mxu0 0
    %671 = vmatprep.subr.bf16.mxu0 0
    %672 = vmatpush1.bf16.msra.mxu0 0
    %673 = vmatprep.subr.bf16.mxu0 0
    %674 = vmatpush1.bf16.msra.mxu0 0
    %675 = vmatprep.subr.bf16.mxu0 0
    %676 = vmatpush1.bf16.msra.mxu0 0
    %677 = vmatprep.subr.bf16.mxu0 0
    %678 = vmatpush1.bf16.msra.mxu0 0
    %679 = vmatprep.subr.bf16.mxu0 0
    %680 = vmatpush1.bf16.msra.mxu0 0
    %681 = vmatprep.subr.bf16.mxu0 0
    %682 = vmatpush1.bf16.msra.mxu0 0
    %683 = vmatprep.subr.bf16.mxu0 0
    %684 = vmatpush1.bf16.msra.mxu0 0
    %685 = vmatprep.subr.bf16.mxu0 0
    %686 = vmatpush1.bf16.msra.mxu0 0
    %687 = vmatprep.subr.bf16.mxu0 0
    %688 = vmatpush1.bf16.msra.mxu0 0
    %689 = vmatprep.subr.bf16.mxu0 0
    %690 = vmatpush1.bf16.msra.mxu0 0
    %691 = vmatprep.subr.bf16.mxu0 0
    %692 = vmatpush1.bf16.msra.mxu0 0
    %693 = vmatprep.mubr.bf16.mxu0 0
    %694 = vmatmul.mubr.bf16.gmra.mrb[0].mxu0 %v656
    %v695 = vpop.f32.mrb[0].mxu0
    %v696 = vadd.f32 0.0, %v695
    %v697 = vpop.f32.mrb[0].mxu0
    %v698 = vpop.f32.mrb[0].mxu0
    %v699 = vadd.f32 0.0, %v698
    %v700 = vpop.f32.mrb[0].mxu0
    %701 = vdwg.mxu0
    %v702 = vadd.f32 %v527, %v696
    %v703 = vadd.f32 %v530, %v699
    %704 = vrot.lane.b32.xlu0 %v190, 104
    %v705 = vpop.permute.xlu0 %704
    %706 = vrot.lane.b32.xlu0 %v191, 72
    %v707 = vpop.permute.xlu0 %706
    %v709 = vsel %vm195, %v705, 0
    %v712 = vsel %vm195, %v707, 0
    %714 = vmatprep.subr.bf16.mxu0 0
    %715 = vmatpush1.bf16.xpose.msra.mxu0 %v712
    %716 = vmatprep.subr.bf16.mxu0 0
    %717 = vmatpush1.bf16.xpose.msra.mxu0 0
    %718 = vmatprep.subr.bf16.mxu0 0
    %719 = vmatpush1.bf16.xpose.msra.mxu0 0
    %720 = vmatprep.subr.bf16.mxu0 0
    %721 = vmatpush1.bf16.xpose.msra.mxu0 0
    %722 = vmatprep.subr.bf16.mxu0 0
    %723 = vmatpush1.bf16.xpose.msra.mxu0 0
    %724 = vmatprep.subr.bf16.mxu0 0
    %725 = vmatpush1.bf16.xpose.msra.mxu0 0
    %726 = vmatprep.subr.bf16.mxu0 0
    %727 = vmatpush1.bf16.xpose.msra.mxu0 0
    %728 = vmatprep.subr.bf16.mxu0 0
    %729 = vmatpush1.bf16.xpose.msra.mxu0 0
    %730 = vmatprep.subr.bf16.mxu0 0
    %731 = vmatpush1.bf16.xpose.msra.mxu0 0
    %732 = vmatprep.subr.bf16.mxu0 0
    %733 = vmatpush1.bf16.xpose.msra.mxu0 0
    %734 = vmatprep.subr.bf16.mxu0 0
    %735 = vmatpush1.bf16.xpose.msra.mxu0 0
    %736 = vmatprep.subr.bf16.mxu0 0
    %737 = vmatpush1.bf16.xpose.msra.mxu0 0
    %738 = vmatprep.subr.bf16.mxu0 0
    %739 = vmatpush1.bf16.xpose.msra.mxu0 0
    %740 = vmatprep.subr.bf16.mxu0 0
    %741 = vmatpush1.bf16.xpose.msra.mxu0 0
    %742 = vmatprep.subr.bf16.mxu0 0
    %743 = vmatpush1.bf16.xpose.msra.mxu0 0
    %744 = vmatprep.subr.bf16.mxu0 0
    %745 = vmatpush1.bf16.xpose.msra.mxu0 0
    %746 = vmatprep.mubr.bf16.mxu0 0
    %747 = vmatmul.mubr.bf16.gmra.mrb[0].mxu0 %v709
    %v748 = vpop.f32.mrb[0].mxu0
    %v749 = vadd.f32 %v114, %v748
    %v750 = vpop.f32.mrb[0].mxu0
    %v751 = vpop.f32.mrb[0].mxu0
    %v752 = vadd.f32 %v115, %v751
    %v753 = vpop.f32.mrb[0].mxu0
    %754 = vdwg.mxu0
    %v755 = vsel %vm243, %v749, -inf
    %756 = vmax.xlane.f32.xlu0 %v755
    %v757 = vpop.xlane.xlu0 %756
    %v758 = vsel %vm243, %v752, -inf
    %759 = vmax.xlane.f32.xlu0 %v758
    %v760 = vpop.xlane.xlu0 %759
    %v761 = vsub.f32 %v749, %v757
    %v762 = vsub.f32 %v752, %v760
    %v763 = vmul.f32 %v761, 1.442695
    %v764 = vpow.pop %v763
    %v765 = vmul.f32 %v762, 1.442695
    %v766 = vpow.pop %v765
    %v767 = vsel %vm243, %v764, 0.0
    %768 = vadd.xlane.f32.xlu0 %v767
    %v769 = vpop.xlane.xlu0 %768
    %v770 = vsel %vm243, %v766, 0.0
    %771 = vadd.xlane.f32.xlu0 %v770
    %v772 = vpop.xlane.xlu0 %771
    %v773 = vrcp.pop %v769
    %v774 = vmul.f32 %v764, %v773
    %v775 = vrcp.pop %v772
    %v776 = vmul.f32 %v766, %v775
    %v777 = vpack.c.bf16 %v776, %v774
    %778 = vrot.lane.b32.xlu0 %v191, 40
    %v779 = vpop.permute.xlu0 %778
    %v782 = vsel %vm243, %v777, 0
    %784 = vmatprep.subr.bf16.mxu0 0
    %785 = vmatpush1.bf16.msra.mxu0 %v779
    %786 = vmatprep.subr.bf16.mxu0 0
    %787 = vmatpush1.bf16.msra.mxu0 0
    %788 = vmatprep.subr.bf16.mxu0 0
    %789 = vmatpush1.bf16.msra.mxu0 0
    %790 = vmatprep.subr.bf16.mxu0 0
    %791 = vmatpush1.bf16.msra.mxu0 0
    %792 = vmatprep.subr.bf16.mxu0 0
    %793 = vmatpush1.bf16.msra.mxu0 0
    %794 = vmatprep.subr.bf16.mxu0 0
    %795 = vmatpush1.bf16.msra.mxu0 0
    %796 = vmatprep.subr.bf16.mxu0 0
    %797 = vmatpush1.bf16.msra.mxu0 0
    %798 = vmatprep.subr.bf16.mxu0 0
    %799 = vmatpush1.bf16.msra.mxu0 0
    %800 = vmatprep.subr.bf16.mxu0 0
    %801 = vmatpush1.bf16.msra.mxu0 0
    %802 = vmatprep.subr.bf16.mxu0 0
    %803 = vmatpush1.bf16.msra.mxu0 0
    %804 = vmatprep.subr.bf16.mxu0 0
    %805 = vmatpush1.bf16.msra.mxu0 0
    %806 = vmatprep.subr.bf16.mxu0 0
    %807 = vmatpush1.bf16.msra.mxu0 0
    %808 = vmatprep.subr.bf16.mxu0 0
    %809 = vmatpush1.bf16.msra.mxu0 0
    %810 = vmatprep.subr.bf16.mxu0 0
    %811 = vmatpush1.bf16.msra.mxu0 0
    %812 = vmatprep.subr.bf16.mxu0 0
    %813 = vmatpush1.bf16.msra.mxu0 0
    %814 = vmatprep.subr.bf16.mxu0 0
    %815 = vmatpush1.bf16.msra.mxu0 0
    %816 = vmatprep.mubr.bf16.mxu0 0
    %817 = vmatmul.mubr.bf16.gmra.mrb[0].mxu0 %v782
    %v818 = vpop.f32.mrb[0].mxu0
    %v819 = vadd.f32 0.0, %v818
    %v820 = vpop.f32.mrb[0].mxu0
    %v821 = vpop.f32.mrb[0].mxu0
    %v822 = vadd.f32 0.0, %v821
    %v823 = vpop.f32.mrb[0].mxu0
    %824 = vdwg.mxu0
    %v825 = vpack.c.bf16 %v822, %v819
    %v827 = vsel %vm195, %v825, 0
    %v830 = vsel %vm441, %v189, 0
    %832 = vmatprep.subr.bf16.mxu0 0
    %833 = vmatpush1.bf16.msra.mxu0 %v830
    %834 = vmatprep.subr.bf16.mxu0 0
    %835 = vmatpush1.bf16.msra.mxu0 0
    %836 = vmatprep.subr.bf16.mxu0 0
    %837 = vmatpush1.bf16.msra.mxu0 0
    %838 = vmatprep.subr.bf16.mxu0 0
    %839 = vmatpush1.bf16.msra.mxu0 0
    %840 = vmatprep.subr.bf16.mxu0 0
    %841 = vmatpush1.bf16.msra.mxu0 0
    %842 = vmatprep.subr.bf16.mxu0 0
    %843 = vmatpush1.bf16.msra.mxu0 0
    %844 = vmatprep.subr.bf16.mxu0 0
    %845 = vmatpush1.bf16.msra.mxu0 0
    %846 = vmatprep.subr.bf16.mxu0 0
    %847 = vmatpush1.bf16.msra.mxu0 0
    %848 = vmatprep.subr.bf16.mxu0 0
    %849 = vmatpush1.bf16.msra.mxu0 0
    %850 = vmatprep.subr.bf16.mxu0 0
    %851 = vmatpush1.bf16.msra.mxu0 0
    %852 = vmatprep.subr.bf16.mxu0 0
    %853 = vmatpush1.bf16.msra.mxu0 0
    %854 = vmatprep.subr.bf16.mxu0 0
    %855 = vmatpush1.bf16.msra.mxu0 0
    %856 = vmatprep.subr.bf16.mxu0 0
    %857 = vmatpush1.bf16.msra.mxu0 0
    %858 = vmatprep.subr.bf16.mxu0 0
    %859 = vmatpush1.bf16.msra.mxu0 0
    %860 = vmatprep.subr.bf16.mxu0 0
    %861 = vmatpush1.bf16.msra.mxu0 0
    %862 = vmatprep.subr.bf16.mxu0 0
    %863 = vmatpush1.bf16.msra.mxu0 0
    %864 = vmatprep.mubr.bf16.mxu0 0
    %865 = vmatmul.mubr.bf16.gmra.mrb[0].mxu0 %v827
    %v866 = vpop.f32.mrb[0].mxu0
    %v867 = vadd.f32 0.0, %v866
    %v868 = vpop.f32.mrb[0].mxu0
    %v869 = vpop.f32.mrb[0].mxu0
    %v870 = vadd.f32 0.0, %v869
    %v871 = vpop.f32.mrb[0].mxu0
    %872 = vdwg.mxu0
    %v873 = vadd.f32 %v702, %v867
    %v874 = vadd.f32 %v703, %v870
    %v875 = vld [vmem:[%s8] sm:$0x1]
    %v877 = vlaneseq
    %v878 = vshrl.u32 %v877, 7
    %v879 = vsub.s32 0, %v878
    %v880 = vrot.slane %v875, %v879
    %v882 = vadd.f32 %v873, %v880
    %v883 = vadd.f32 %v874, %v880
    %v884 = vadd.f32 %v882, %v112
    %v885 = vadd.f32 %v883, %v113
    %v886 = vld [vmem:[%s9] sm:$0x1]
    %v887 = vld [vmem:[%s10] sm:$0x1]
    %v888 = vsel %vm70, %v884, 0.0
    %889 = vadd.xlane.f32.xlu0 %v888
    %v890 = vpop.xlane.xlu0 %889
    %v891 = vsel %vm70, %v885, 0.0
    %892 = vadd.xlane.f32.xlu0 %v891
    %v893 = vpop.xlane.xlu0 %892
    %v894 = vmul.f32 %v890, %v77
    %v895 = vmul.f32 %v893, %v77
    %v896 = vsub.f32 %v884, %v894
    %v897 = vsub.f32 %v885, %v895
    %v898 = vmul.f32 %v896, %v896
    %v899 = vmul.f32 %v897, %v897
    %v900 = vsel %vm70, %v898, 0.0
    %901 = vadd.xlane.f32.xlu0 %v900
    %v902 = vpop.xlane.xlu0 %901
    %v903 = vsel %vm70, %v899, 0.0
    %904 = vadd.xlane.f32.xlu0 %v903
    %v905 = vpop.xlane.xlu0 %904
    %v906 = vmul.f32 %v902, %v77
    %v907 = vmul.f32 %v905, %v77
    %v908 = vadd.f32 %v906, 1e-12
    %v909 = vadd.f32 %v907, 1e-12
    %v910 = vrsqrt.pop %v908
    %v911 = vrsqrt.pop %v909
    %v912 = vmul.f32 %v896, %v910
    %v913 = vmul.f32 %v897, %v911
    %v915 = vlaneseq
    %v916 = vshrl.u32 %v915, 7
    %v917 = vsub.s32 0, %v916
    %v918 = vrot.slane %v886, %v917
    %v920 = vmul.f32 %v912, %v918
    %v921 = vmul.f32 %v913, %v918
    %v923 = vlaneseq
    %v924 = vshrl.u32 %v923, 7
    %v925 = vsub.s32 0, %v924
    %v926 = vrot.slane %v887, %v925
    %v928 = vadd.f32 %v920, %v926
    %v929 = vadd.f32 %v921, %v926
    %v930 = vpack.c.bf16 %v929, %v928
    %v931 = vld [vmem:[%s11] sm:$0xf]
    %v932 = vld [vmem:[%s11 + $0x4] sm:$0xf]
    %v933 = vld [vmem:[%s11 + $0x8] sm:$0xf]
    %v934 = vld [vmem:[%s11 + $0xc] sm:$0xf]
    %v935 = vld [vmem:[%s12] sm:$0x1]
    %v937 = vlaneseq
    %v938 = vshrl.u32 %v937, 7
    %v939 = vsub.s32 0, %v938
    %v940 = vrot.slane %v935, %v939
    %v946 = vunpack.c.l.b16 %v931
    %v947 = vunpack.c.l.b16 %v932
    %v948 = vunpack.c.l.b16 %v933
    %v949 = vunpack.c.l.b16 %v934
    %v950 = vpack.c.b16 %v947, %v946
    %v951 = vpack.c.b16 %v949, %v948
    %v955 = vsel %vm70, %v930, 0
    %957 = vmatprep.subr.bf16.mxu0 0
    %958 = vmatpush1.bf16.msra.mxu0 %v950
    %959 = vmatprep.subr.bf16.mxu0 0
    %960 = vmatpush1.bf16.msra.mxu0 %v951
    %961 = vmatprep.subr.bf16.mxu0 0
    %962 = vmatpush1.bf16.msra.mxu0 0
    %963 = vmatprep.subr.bf16.mxu0 0
    %964 = vmatpush1.bf16.msra.mxu0 0
    %965 = vmatprep.subr.bf16.mxu0 0
    %966 = vmatpush1.bf16.msra.mxu0 0
    %967 = vmatprep.subr.bf16.mxu0 0
    %968 = vmatpush1.bf16.msra.mxu0 0
    %969 = vmatprep.subr.bf16.mxu0 0
    %970 = vmatpush1.bf16.msra.mxu0 0
    %971 = vmatprep.subr.bf16.mxu0 0
    %972 = vmatpush1.bf16.msra.mxu0 0
    %973 = vmatprep.subr.bf16.mxu0 0
    %974 = vmatpush1.bf16.msra.mxu0 0
    %975 = vmatprep.subr.bf16.mxu0 0
    %976 = vmatpush1.bf16.msra.mxu0 0
    %977 = vmatprep.subr.bf16.mxu0 0
    %978 = vmatpush1.bf16.msra.mxu0 0
    %979 = vmatprep.subr.bf16.mxu0 0
    %980 = vmatpush1.bf16.msra.mxu0 0
    %981 = vmatprep.subr.bf16.mxu0 0
    %982 = vmatpush1.bf16.msra.mxu0 0
    %983 = vmatprep.subr.bf16.mxu0 0
    %984 = vmatpush1.bf16.msra.mxu0 0
    %985 = vmatprep.subr.bf16.mxu0 0
    %986 = vmatpush1.bf16.msra.mxu0 0
    %987 = vmatprep.subr.bf16.mxu0 0
    %988 = vmatpush1.bf16.msra.mxu0 0
    %989 = vmatprep.mubr.bf16.mxu0 0
    %990 = vmatmul.mubr.bf16.gmra.mrb[0].mxu0 %v955
    %v991 = vpop.f32.mrb[0].mxu0
    %v992 = vadd.f32 %v940, %v991
    %v993 = vpop.f32.mrb[0].mxu0
    %v994 = vpop.f32.mrb[0].mxu0
    %v995 = vadd.f32 %v940, %v994
    %v996 = vpop.f32.mrb[0].mxu0
    %997 = vdwg.mxu0
    %v998 = vmul.f32 %v992, 0.5
    %v999 = vmul.f32 %v995, 0.5
    %v1000 = vmul.f32 %v992, 0.044715
    %v1001 = vmul.f32 %v995, 0.044715
    %v1002 = vmul.f32 %v1000, %v992
    %v1003 = vmul.f32 %v1001, %v995
    %v1004 = vmul.f32 %v1002, %v992
    %v1005 = vmul.f32 %v1003, %v995
    %v1006 = vadd.f32 %v992, %v1004
    %v1007 = vadd.f32 %v995, %v1005
    %v1008 = vmul.f32 %v1006, 0.7978846
    %v1009 = vmul.f32 %v1007, 0.7978846
    %v1010 = vtanh.pop %v1008
    %v1011 = vtanh.pop %v1009
    %v1012 = vadd.f32 %v1010, 1.0
    %v1013 = vadd.f32 %v1011, 1.0
    %v1014 = vmul.f32 %v998, %v1012
    %v1015 = vmul.f32 %v999, %v1013
    %v1016 = vpack.c.bf16 %v1015, %v1014
    %v1017 = vld [vmem:[%s13] sm:$0xf]
    %v1018 = vld [vmem:[%s13 + $0x4] sm:$0xf]
    %v1019 = vld [vmem:[%s13 + $0x8] sm:$0xf]
    %v1020 = vld [vmem:[%s13 + $0xc] sm:$0xf]
    %v1021 = vld [vmem:[%s13 + $0x10] sm:$0xf]
    %v1022 = vld [vmem:[%s13 + $0x14] sm:$0xf]
    %v1023 = vld [vmem:[%s13 + $0x18] sm:$0xf]
    %v1024 = vld [vmem:[%s13 + $0x1c] sm:$0xf]
    %v1025 = vld [vmem:[%s13 + $0x20] sm:$0xf]
    %v1026 = vld [vmem:[%s13 + $0x24] sm:$0xf]
    %v1027 = vld [vmem:[%s13 + $0x28] sm:$0xf]
    %v1028 = vld [vmem:[%s13 + $0x2c] sm:$0xf]
    %v1029 = vld [vmem:[%s13 + $0x30] sm:$0xf]
    %v1030 = vld [vmem:[%s13 + $0x34] sm:$0xf]
    %v1031 = vld [vmem:[%s13 + $0x38] sm:$0xf]
    %v1032 = vld [vmem:[%s13 + $0x3c] sm:$0xf]
    %v1033 = vld [vmem:[%s14] sm:$0x1]
    %v1035 = vlaneseq
    %v1036 = vshrl.u32 %v1035, 7
    %v1037 = vsub.s32 0, %v1036
    %v1038 = vrot.slane %v1033, %v1037
    %v1056 = vunpack.c.l.b16 %v1017
    %v1057 = vunpack.c.l.b16 %v1018
    %v1058 = vunpack.c.l.b16 %v1019
    %v1059 = vunpack.c.l.b16 %v1020
    %v1060 = vunpack.c.l.b16 %v1021
    %v1061 = vunpack.c.l.b16 %v1022
    %v1062 = vunpack.c.l.b16 %v1023
    %v1063 = vunpack.c.l.b16 %v1024
    %v1064 = vunpack.c.l.b16 %v1025
    %v1065 = vunpack.c.l.b16 %v1026
    %v1066 = vunpack.c.l.b16 %v1027
    %v1067 = vunpack.c.l.b16 %v1028
    %v1068 = vunpack.c.l.b16 %v1029
    %v1069 = vunpack.c.l.b16 %v1030
    %v1070 = vunpack.c.l.b16 %v1031
    %v1071 = vunpack.c.l.b16 %v1032
    %v1072 = vpack.c.b16 %v1057, %v1056
    %v1073 = vpack.c.b16 %v1059, %v1058
    %v1074 = vpack.c.b16 %v1061, %v1060
    %v1075 = vpack.c.b16 %v1063, %v1062
    %v1076 = vpack.c.b16 %v1065, %v1064
    %v1077 = vpack.c.b16 %v1067, %v1066
    %v1078 = vpack.c.b16 %v1069, %v1068
    %v1079 = vpack.c.b16 %v1071, %v1070
    %1088 = vmatprep.subr.bf16.mxu0 0
    %1089 = vmatpush1.bf16.msra.mxu0 %v1072
    %1090 = vmatprep.subr.bf16.mxu0 0
    %1091 = vmatpush1.bf16.msra.mxu0 %v1073
    %1092 = vmatprep.subr.bf16.mxu0 0
    %1093 = vmatpush1.bf16.msra.mxu0 %v1074
    %1094 = vmatprep.subr.bf16.mxu0 0
    %1095 = vmatpush1.bf16.msra.mxu0 %v1075
    %1096 = vmatprep.subr.bf16.mxu0 0
    %1097 = vmatpush1.bf16.msra.mxu0 %v1076
    %1098 = vmatprep.subr.bf16.mxu0 0
    %1099 = vmatpush1.bf16.msra.mxu0 %v1077
    %1100 = vmatprep.subr.bf16.mxu0 0
    %1101 = vmatpush1.bf16.msra.mxu0 %v1078
    %1102 = vmatprep.subr.bf16.mxu0 0
    %1103 = vmatpush1.bf16.msra.mxu0 %v1079
    %1104 = vmatprep.subr.bf16.mxu0 0
    %1105 = vmatpush1.bf16.msra.mxu0 0
    %1106 = vmatprep.subr.bf16.mxu0 0
    %1107 = vmatpush1.bf16.msra.mxu0 0
    %1108 = vmatprep.subr.bf16.mxu0 0
    %1109 = vmatpush1.bf16.msra.mxu0 0
    %1110 = vmatprep.subr.bf16.mxu0 0
    %1111 = vmatpush1.bf16.msra.mxu0 0
    %1112 = vmatprep.subr.bf16.mxu0 0
    %1113 = vmatpush1.bf16.msra.mxu0 0
    %1114 = vmatprep.subr.bf16.mxu0 0
    %1115 = vmatpush1.bf16.msra.mxu0 0
    %1116 = vmatprep.subr.bf16.mxu0 0
    %1117 = vmatpush1.bf16.msra.mxu0 0
    %1118 = vmatprep.subr.bf16.mxu0 0
    %1119 = vmatpush1.bf16.msra.mxu0 0
    %1120 = vmatprep.mubr.bf16.mxu0 0
    %1121 = vmatmul.mubr.bf16.gmra.mrb[0].mxu0 %v1016
    %v1122 = vpop.f32.mrb[0].mxu0
    %v1123 = vadd.f32 %v1038, %v1122
    %v1124 = vpop.f32.mrb[0].mxu0
    %v1125 = vpop.f32.mrb[0].mxu0
    %v1126 = vadd.f32 %v1038, %v1125
    %v1127 = vpop.f32.mrb[0].mxu0
    %1128 = vdwg.mxu0
    %v1129 = vadd.f32 %v1123, %v928
    %v1130 = vadd.f32 %v1126, %v929
    %v1131 = vld [vmem:[%s15] sm:$0x1]
    %v1132 = vld [vmem:[%s16] sm:$0x1]
    %v1133 = vsel %vm70, %v1129, 0.0
    %1134 = vadd.xlane.f32.xlu0 %v1133
    %v1135 = vpop.xlane.xlu0 %1134
    %v1136 = vsel %vm70, %v1130, 0.0
    %1137 = vadd.xlane.f32.xlu0 %v1136
    %v1138 = vpop.xlane.xlu0 %1137
    %v1139 = vmul.f32 %v1135, %v77
    %v1140 = vmul.f32 %v1138, %v77
    %v1141 = vsub.f32 %v1129, %v1139
    %v1142 = vsub.f32 %v1130, %v1140
    %v1143 = vmul.f32 %v1141, %v1141
    %v1144 = vmul.f32 %v1142, %v1142
    %v1145 = vsel %vm70, %v1143, 0.0
    %1146 = vadd.xlane.f32.xlu0 %v1145
    %v1147 = vpop.xlane.xlu0 %1146
    %v1148 = vsel %vm70, %v1144, 0.0
    %1149 = vadd.xlane.f32.xlu0 %v1148
    %v1150 = vpop.xlane.xlu0 %1149
    %v1151 = vmul.f32 %v1147, %v77
    %v1152 = vmul.f32 %v1150, %v77
    %v1153 = vadd.f32 %v1151, 1e-12
    %v1154 = vadd.f32 %v1152, 1e-12
    %v1155 = vrsqrt.pop %v1153
    %v1156 = vrsqrt.pop %v1154
    %v1157 = vmul.f32 %v1141, %v1155
    %v1158 = vmul.f32 %v1142, %v1156
    %v1160 = vlaneseq
    %v1161 = vshrl.u32 %v1160, 7
    %v1162 = vsub.s32 0, %v1161
    %v1163 = vrot.slane %v1131, %v1162
    %v1165 = vmul.f32 %v1157, %v1163
    %v1166 = vmul.f32 %v1158, %v1163
    %v1168 = vlaneseq
    %v1169 = vshrl.u32 %v1168, 7
    %v1170 = vsub.s32 0, %v1169
    %v1171 = vrot.slane %v1132, %v1170
    %v1173 = vadd.f32 %v1165, %v1171
    %v1174 = vadd.f32 %v1166, %v1171
    %v1175 = vpack.c.bf16 %v1174, %v1173
    %s1176 = scalar_lea.vmem %s5, 16
    %v1177 = vld [vmem:[%s1176] sm:$0xf]
    %v1178 = vld [vmem:[%s1176 + $0x4] sm:$0xf]
    %v1179 = vld [vmem:[%s1176 + $0x8] sm:$0xf]
    %v1180 = vld [vmem:[%s1176 + $0xc] sm:$0xf]
    %s1181 = scalar_lea.vmem %s6, 1
    %v1182 = vld [vmem:[%s1181] sm:$0x1]
    %v1184 = vlaneseq
    %v1185 = vshrl.u32 %v1184, 7
    %v1186 = vsub.s32 0, %v1185
    %v1187 = vrot.slane %v1182, %v1186
    %v1193 = vunpack.c.l.b16 %v1177
    %v1194 = vunpack.c.l.b16 %v1178
    %v1195 = vunpack.c.l.b16 %v1179
    %v1196 = vunpack.c.l.b16 %v1180
    %v1197 = vpack.c.b16 %v1194, %v1193
    %v1198 = vpack.c.b16 %v1196, %v1195
    %v1202 = vsel %vm70, %v1175, 0
    %1204 = vmatprep.subr.bf16.mxu0 0
    %1205 = vmatpush1.bf16.msra.mxu0 %v1197
    %1206 = vmatprep.subr.bf16.mxu0 0
    %1207 = vmatpush1.bf16.msra.mxu0 %v1198
    %1208 = vmatprep.subr.bf16.mxu0 0
    %1209 = vmatpush1.bf16.msra.mxu0 0
    %1210 = vmatprep.subr.bf16.mxu0 0
    %1211 = vmatpush1.bf16.msra.mxu0 0
    %1212 = vmatprep.subr.bf16.mxu0 0
    %1213 = vmatpush1.bf16.msra.mxu0 0
    %1214 = vmatprep.subr.bf16.mxu0 0
    %1215 = vmatpush1.bf16.msra.mxu0 0
    %1216 = vmatprep.subr.bf16.mxu0 0
    %1217 = vmatpush1.bf16.msra.mxu0 0
    %1218 = vmatprep.subr.bf16.mxu0 0
    %1219 = vmatpush1.bf16.msra.mxu0 0
    %1220 = vmatprep.subr.bf16.mxu0 0
    %1221 = vmatpush1.bf16.msra.mxu0 0
    %1222 = vmatprep.subr.bf16.mxu0 0
    %1223 = vmatpush1.bf16.msra.mxu0 0
    %1224 = vmatprep.subr.bf16.mxu0 0
    %1225 = vmatpush1.bf16.msra.mxu0 0
    %1226 = vmatprep.subr.bf16.mxu0 0
    %1227 = vmatpush1.bf16.msra.mxu0 0
    %1228 = vmatprep.subr.bf16.mxu0 0
    %1229 = vmatpush1.bf16.msra.mxu0 0
    %1230 = vmatprep.subr.bf16.mxu0 0
    %1231 = vmatpush1.bf16.msra.mxu0 0
    %1232 = vmatprep.subr.bf16.mxu0 0
    %1233 = vmatpush1.bf16.msra.mxu0 0
    %1234 = vmatprep.subr.bf16.mxu0 0
    %1235 = vmatpush1.bf16.msra.mxu0 0
    %1236 = vmatprep.mubr.bf16.mxu0 0
    %1237 = vmatmul.mubr.bf16.gmra.mrb[0].mxu0 %v1202
    %v1238 = vpop.f32.mrb[0].mxu0
    %v1239 = vadd.f32 %v1187, %v1238
    %v1240 = vpop.f32.mrb[0].mxu0
    %v1241 = vpop.f32.mrb[0].mxu0
    %v1242 = vadd.f32 %v1187, %v1241
    %v1243 = vpop.f32.mrb[0].mxu0
    %1244 = vdwg.mxu0
    %v1245 = vmul.f32 %v1239, 0.35355338
    %v1246 = vmul.f32 %v1242, 0.35355338
    %s1247 = scalar_lea.vmem %s7, 16
    %v1248 = vld [vmem:[%s1247] sm:$0xf]
    %v1249 = vld [vmem:[%s1247 + $0x4] sm:$0xf]
    %v1250 = vld [vmem:[%s1247 + $0x8] sm:$0xf]
    %v1251 = vld [vmem:[%s1247 + $0xc] sm:$0xf]
    %v1252 = vpack.c.bf16 %v1246, %v1245
    %v1253 = vpack.c.bf16 %v1242, %v1239
    %1255 = vrot.lane.b32.xlu0 %v1253, 96
    %v1256 = vpop.permute.xlu0 %1255
    %v1258 = vsel %vm195, %v1252, 0
    %v1261 = vsel %vm195, %v1256, 0
    %1263 = vmatprep.subr.bf16.mxu0 0
    %1264 = vmatpush1.bf16.xpose.msra.mxu0 %v1261
    %1265 = vmatprep.subr.bf16.mxu0 0
    %1266 = vmatpush1.bf16.xpose.msra.mxu0 0
    %1267 = vmatprep.subr.bf16.mxu0 0
    %1268 = vmatpush1.bf16.xpose.msra.mxu0 0
    %1269 = vmatprep.subr.bf16.mxu0 0
    %1270 = vmatpush1.bf16.xpose.msra.mxu0 0
    %1271 = vmatprep.subr.bf16.mxu0 0
    %1272 = vmatpush1.bf16.xpose.msra.mxu0 0
    %1273 = vmatprep.subr.bf16.mxu0 0
    %1274 = vmatpush1.bf16.xpose.msra.mxu0 0
    %1275 = vmatprep.subr.bf16.mxu0 0
    %1276 = vmatpush1.bf16.xpose.msra.mxu0 0
    %1277 = vmatprep.subr.bf16.mxu0 0
    %1278 = vmatpush1.bf16.xpose.msra.mxu0 0
    %1279 = vmatprep.subr.bf16.mxu0 0
    %1280 = vmatpush1.bf16.xpose.msra.mxu0 0
    %1281 = vmatprep.subr.bf16.mxu0 0
    %1282 = vmatpush1.bf16.xpose.msra.mxu0 0
    %1283 = vmatprep.subr.bf16.mxu0 0
    %1284 = vmatpush1.bf16.xpose.msra.mxu0 0
    %1285 = vmatprep.subr.bf16.mxu0 0
    %1286 = vmatpush1.bf16.xpose.msra.mxu0 0
    %1287 = vmatprep.subr.bf16.mxu0 0
    %1288 = vmatpush1.bf16.xpose.msra.mxu0 0
    %1289 = vmatprep.subr.bf16.mxu0 0
    %1290 = vmatpush1.bf16.xpose.msra.mxu0 0
    %1291 = vmatprep.subr.bf16.mxu0 0
    %1292 = vmatpush1.bf16.xpose.msra.mxu0 0
    %1293 = vmatprep.subr.bf16.mxu0 0
    %1294 = vmatpush1.bf16.xpose.msra.mxu0 0
    %1295 = vmatprep.mubr.bf16.mxu0 0
    %1296 = vmatmul.mubr.bf16.gmra.mrb[0].mxu0 %v1258
    %v1297 = vpop.f32.mrb[0].mxu0
    %v1298 = vadd.f32 %v114, %v1297
    %v1299 = vpop.f32.mrb[0].mxu0
    %v1300 = vpop.f32.mrb[0].mxu0
    %v1301 = vadd.f32 %v115, %v1300
    %v1302 = vpop.f32.mrb[0].mxu0
    %1303 = vdwg.mxu0
    %v1304 = vsel %vm243, %v1298, -inf
    %1305 = vmax.xlane.f32.xlu0 %v1304
    %v1306 = vpop.xlane.xlu0 %1305
    %v1307 = vsel %vm243, %v1301, -inf
    %1308 = vmax.xlane.f32.xlu0 %v1307
    %v1309 = vpop.xlane.xlu0 %1308
    %v1310 = vsub.f32 %v1298, %v1306
    %v1311 = vsub.f32 %v1301, %v1309
    %v1312 = vmul.f32 %v1310, 1.442695
    %v1313 = vpow.pop %v1312
    %v1314 = vmul.f32 %v1311, 1.442695
    %v1315 = vpow.pop %v1314
    %v1316 = vsel %vm243, %v1313, 0.0
    %1317 = vadd.xlane.f32.xlu0 %v1316
    %v1318 = vpop.xlane.xlu0 %1317
    %v1319 = vsel %vm243, %v1315, 0.0
    %1320 = vadd.xlane.f32.xlu0 %v1319
    %v1321 = vpop.xlane.xlu0 %1320
    %v1322 = vrcp.pop %v1318
    %v1323 = vmul.f32 %v1313, %v1322
    %v1324 = vrcp.pop %v1321
    %v1325 = vmul.f32 %v1315, %v1324
    %v1326 = vpack.c.bf16 %v1325, %v1323
    %1327 = vrot.lane.b32.xlu0 %v1253, 64
    %v1328 = vpop.permute.xlu0 %1327
    %v1331 = vsel %vm243, %v1326, 0
    %1333 = vmatprep.subr.bf16.mxu0 0
    %1334 = vmatpush1.bf16.msra.mxu0 %v1328
    %1335 = vmatprep.subr.bf16.mxu0 0
    %1336 = vmatpush1.bf16.msra.mxu0 0
    %1337 = vmatprep.subr.bf16.mxu0 0
    %1338 = vmatpush1.bf16.msra.mxu0 0
    %1339 = vmatprep.subr.bf16.mxu0 0
    %1340 = vmatpush1.bf16.msra.mxu0 0
    %1341 = vmatprep.subr.bf16.mxu0 0
    %1342 = vmatpush1.bf16.msra.mxu0 0
    %1343 = vmatprep.subr.bf16.mxu0 0
    %1344 = vmatpush1.bf16.msra.mxu0 0
    %1345 = vmatprep.subr.bf16.mxu0 0
    %1346 = vmatpush1.bf16.msra.mxu0 0
    %1347 = vmatprep.subr.bf16.mxu0 0
    %1348 = vmatpush1.bf16.msra.mxu0 0
    %1349 = vmatprep.subr.bf16.mxu0 0
    %1350 = vmatpush1.bf16.msra.mxu0 0
    %1351 = vmatprep.subr.bf16.mxu0 0
    %1352 = vmatpush1.bf16.msra.mxu0 0
    %1353 = vmatprep.subr.bf16.mxu0 0
    %1354 = vmatpush1.bf16.msra.mxu0 0
    %1355 = vmatprep.subr.bf16.mxu0 0
    %1356 = vmatpush1.bf16.msra.mxu0 0
    %1357 = vmatprep.subr.bf16.mxu0 0
    %1358 = vmatpush1.bf16.msra.mxu0 0
    %1359 = vmatprep.subr.bf16.mxu0 0
    %1360 = vmatpush1.bf16.msra.mxu0 0
    %1361 = vmatprep.subr.bf16.mxu0 0
    %1362 = vmatpush1.bf16.msra.mxu0 0
    %1363 = vmatprep.subr.bf16.mxu0 0
    %1364 = vmatpush1.bf16.msra.mxu0 0
    %1365 = vmatprep.mubr.bf16.mxu0 0
    %1366 = vmatmul.mubr.bf16.gmra.mrb[0].mxu0 %v1331
    %v1367 = vpop.f32.mrb[0].mxu0
    %v1368 = vadd.f32 0.0, %v1367
    %v1369 = vpop.f32.mrb[0].mxu0
    %v1370 = vpop.f32.mrb[0].mxu0
    %v1371 = vadd.f32 0.0, %v1370
    %v1372 = vpop.f32.mrb[0].mxu0
    %1373 = vdwg.mxu0
    %v1374 = vpack.c.bf16 %v1371, %v1368
    %1376 = vrot.lane.b32.xlu0 %v1252, 120
    %v1377 = vpop.permute.xlu0 %1376
    %1378 = vrot.lane.b32.xlu0 %v1253, 88
    %v1379 = vpop.permute.xlu0 %1378
    %v1381 = vsel %vm195, %v1377, 0
    %v1384 = vsel %vm195, %v1379, 0
    %1386 = vmatprep.subr.bf16.mxu0 0
    %1387 = vmatpush1.bf16.xpose.msra.mxu0 %v1384
    %1388 = vmatprep.subr.bf16.mxu0 0
    %1389 = vmatpush1.bf16.xpose.msra.mxu0 0
    %1390 = vmatprep.subr.bf16.mxu0 0
    %1391 = vmatpush1.bf16.xpose.msra.mxu0 0
    %1392 = vmatprep.subr.bf16.mxu0 0
    %1393 = vmatpush1.bf16.xpose.msra.mxu0 0
    %1394 = vmatprep.subr.bf16.mxu0 0
    %1395 = vmatpush1.bf16.xpose.msra.mxu0 0
    %1396 = vmatprep.subr.bf16.mxu0 0
    %1397 = vmatpush1.bf16.xpose.msra.mxu0 0
    %1398 = vmatprep.subr.bf16.mxu0 0
    %1399 = vmatpush1.bf16.xpose.msra.mxu0 0
    %1400 = vmatprep.subr.bf16.mxu0 0
    %1401 = vmatpush1.bf16.xpose.msra.mxu0 0
    %1402 = vmatprep.subr.bf16.mxu0 0
    %1403 = vmatpush1.bf16.xpose.msra.mxu0 0
    %1404 = vmatprep.subr.bf16.mxu0 0
    %1405 = vmatpush1.bf16.xpose.msra.mxu0 0
    %1406 = vmatprep.subr.bf16.mxu0 0
    %1407 = vmatpush1.bf16.xpose.msra.mxu0 0
    %1408 = vmatprep.subr.bf16.mxu0 0
    %1409 = vmatpush1.bf16.xpose.msra.mxu0 0
    %1410 = vmatprep.subr.bf16.mxu0 0
    %1411 = vmatpush1.bf16.xpose.msra.mxu0 0
    %1412 = vmatprep.subr.bf16.mxu0 0
    %1413 = vmatpush1.bf16.xpose.msra.mxu0 0
    %1414 = vmatprep.subr.bf16.mxu0 0
    %1415 = vmatpush1.bf16.xpose.msra.mxu0 0
    %1416 = vmatprep.subr.bf16.mxu0 0
    %1417 = vmatpush1.bf16.xpose.msra.mxu0 0
    %1418 = vmatprep.mubr.bf16.mxu0 0
    %1419 = vmatmul.mubr.bf16.gmra.mrb[0].mxu0 %v1381
    %v1420 = vpop.f32.mrb[0].mxu0
    %v1421 = vadd.f32 %v114, %v1420
    %v1422 = vpop.f32.mrb[0].mxu0
    %v1423 = vpop.f32.mrb[0].mxu0
    %v1424 = vadd.f32 %v115, %v1423
    %v1425 = vpop.f32.mrb[0].mxu0
    %1426 = vdwg.mxu0
    %v1427 = vsel %vm243, %v1421, -inf
    %1428 = vmax.xlane.f32.xlu0 %v1427
    %v1429 = vpop.xlane.xlu0 %1428
    %v1430 = vsel %vm243, %v1424, -inf
    %1431 = vmax.xlane.f32.xlu0 %v1430
    %v1432 = vpop.xlane.xlu0 %1431
    %v1433 = vsub.f32 %v1421, %v1429
    %v1434 = vsub.f32 %v1424, %v1432
    %v1435 = vmul.f32 %v1433, 1.442695
    %v1436 = vpow.pop %v1435
    %v1437 = vmul.f32 %v1434, 1.442695
    %v1438 = vpow.pop %v1437
    %v1439 = vsel %vm243, %v1436, 0.0
    %1440 = vadd.xlane.f32.xlu0 %v1439
    %v1441 = vpop.xlane.xlu0 %1440
    %v1442 = vsel %vm243, %v1438, 0.0
    %1443 = vadd.xlane.f32.xlu0 %v1442
    %v1444 = vpop.xlane.xlu0 %1443
    %v1445 = vrcp.pop %v1441
    %v1446 = vmul.f32 %v1436, %v1445
    %v1447 = vrcp.pop %v1444
    %v1448 = vmul.f32 %v1438, %v1447
    %v1449 = vpack.c.bf16 %v1448, %v1446
    %1450 = vrot.lane.b32.xlu0 %v1253, 56
    %v1451 = vpop.permute.xlu0 %1450
    %v1454 = vsel %vm243, %v1449, 0
    %1456 = vmatprep.subr.bf16.mxu0 0
    %1457 = vmatpush1.bf16.msra.mxu0 %v1451
    %1458 = vmatprep.subr.bf16.mxu0 0
    %1459 = vmatpush1.bf16.msra.mxu0 0
    %1460 = vmatprep.subr.bf16.mxu0 0
    %1461 = vmatpush1.bf16.msra.mxu0 0
    %1462 = vmatprep.subr.bf16.mxu0 0
    %1463 = vmatpush1.bf16.msra.mxu0 0
    %1464 = vmatprep.subr.bf16.mxu0 0
    %1465 = vmatpush1.bf16.msra.mxu0 0
    %1466 = vmatprep.subr.bf16.mxu0 0
    %1467 = vmatpush1.bf16.msra.mxu0 0
    %1468 = vmatprep.subr.bf16.mxu0 0
    %1469 = vmatpush1.bf16.msra.mxu0 0
    %1470 = vmatprep.subr.bf16.mxu0 0
    %1471 = vmatpush1.bf16.msra.mxu0 0
    %1472 = vmatprep.subr.bf16.mxu0 0
    %1473 = vmatpush1.bf16.msra.mxu0 0
    %1474 = vmatprep.subr.bf16.mxu0 0
    %1475 = vmatpush1.bf16.msra.mxu0 0
    %1476 = vmatprep.subr.bf16.mxu0 0
    %1477 = vmatpush1.bf16.msra.mxu0 0
    %1478 = vmatprep.subr.bf16.mxu0 0
    %1479 = vmatpush1.bf16.msra.mxu0 0
    %1480 = vmatprep.subr.bf16.mxu0 0
    %1481 = vmatpush1.bf16.msra.mxu0 0
    %1482 = vmatprep.subr.bf16.mxu0 0
    %1483 = vmatpush1.bf16.msra.mxu0 0
    %1484 = vmatprep.subr.bf16.mxu0 0
    %1485 = vmatpush1.bf16.msra.mxu0 0
    %1486 = vmatprep.subr.bf16.mxu0 0
    %1487 = vmatpush1.bf16.msra.mxu0 0
    %1488 = vmatprep.mubr.bf16.mxu0 0
    %1489 = vmatmul.mubr.bf16.gmra.mrb[0].mxu0 %v1454
    %v1490 = vpop.f32.mrb[0].mxu0
    %v1491 = vadd.f32 0.0, %v1490
    %v1492 = vpop.f32.mrb[0].mxu0
    %v1493 = vpop.f32.mrb[0].mxu0
    %v1494 = vadd.f32 0.0, %v1493
    %v1495 = vpop.f32.mrb[0].mxu0
    %1496 = vdwg.mxu0
    %v1497 = vpack.c.bf16 %v1494, %v1491
    %v1499 = vsel %vm195, %v1497, 0
    %v1502 = vsel %vm441, %v1249, 0
    %1504 = vmatprep.subr.bf16.mxu0 0
    %1505 = vmatpush1.bf16.msra.mxu0 %v1502
    %1506 = vmatprep.subr.bf16.mxu0 0
    %1507 = vmatpush1.bf16.msra.mxu0 0
    %1508 = vmatprep.subr.bf16.mxu0 0
    %1509 = vmatpush1.bf16.msra.mxu0 0
    %1510 = vmatprep.subr.bf16.mxu0 0
    %1511 = vmatpush1.bf16.msra.mxu0 0
    %1512 = vmatprep.subr.bf16.mxu0 0
    %1513 = vmatpush1.bf16.msra.mxu0 0
    %1514 = vmatprep.subr.bf16.mxu0 0
    %1515 = vmatpush1.bf16.msra.mxu0 0
    %1516 = vmatprep.subr.bf16.mxu0 0
    %1517 = vmatpush1.bf16.msra.mxu0 0
    %1518 = vmatprep.subr.bf16.mxu0 0
    %1519 = vmatpush1.bf16.msra.mxu0 0
    %1520 = vmatprep.subr.bf16.mxu0 0
    %1521 = vmatpush1.bf16.msra.mxu0 0
    %1522 = vmatprep.subr.bf16.mxu0 0
    %1523 = vmatpush1.bf16.msra.mxu0 0
    %1524 = vmatprep.subr.bf16.mxu0 0
    %1525 = vmatpush1.bf16.msra.mxu0 0
    %1526 = vmatprep.subr.bf16.mxu0 0
    %1527 = vmatpush1.bf16.msra.mxu0 0
    %1528 = vmatprep.subr.bf16.mxu0 0
    %1529 = vmatpush1.bf16.msra.mxu0 0
    %1530 = vmatprep.subr.bf16.mxu0 0
    %1531 = vmatpush1.bf16.msra.mxu0 0
    %1532 = vmatprep.subr.bf16.mxu0 0
    %1533 = vmatpush1.bf16.msra.mxu0 0
    %1534 = vmatprep.subr.bf16.mxu0 0
    %1535 = vmatpush1.bf16.msra.mxu0 0
    %1536 = vmatprep.mubr.bf16.mxu0 0
    %1537 = vmatmul.mubr.bf16.gmra.mrb[0].mxu0 %v1499
    %v1538 = vpop.f32.mrb[0].mxu0
    %v1539 = vadd.f32 0.0, %v1538
    %v1540 = vpop.f32.mrb[0].mxu0
    %v1541 = vpop.f32.mrb[0].mxu0
    %v1542 = vadd.f32 0.0, %v1541
    %v1543 = vpop.f32.mrb[0].mxu0
    %1544 = vdwg.mxu0
    %v1546 = vsel %vm195, %v1374, 0
    %v1549 = vsel %vm441, %v1248, 0
    %1551 = vmatprep.subr.bf16.mxu0 0
    %1552 = vmatpush1.bf16.msra.mxu0 %v1549
    %1553 = vmatprep.subr.bf16.mxu0 0
    %1554 = vmatpush1.bf16.msra.mxu0 0
    %1555 = vmatprep.subr.bf16.mxu0 0
    %1556 = vmatpush1.bf16.msra.mxu0 0
    %1557 = vmatprep.subr.bf16.mxu0 0
    %1558 = vmatpush1.bf16.msra.mxu0 0
    %1559 = vmatprep.subr.bf16.mxu0 0
    %1560 = vmatpush1.bf16.msra.mxu0 0
    %1561 = vmatprep.subr.bf16.mxu0 0
    %1562 = vmatpush1.bf16.msra.mxu0 0
    %1563 = vmatprep.subr.bf16.mxu0 0
    %1564 = vmatpush1.bf16.msra.mxu0 0
    %1565 = vmatprep.subr.bf16.mxu0 0
    %1566 = vmatpush1.bf16.msra.mxu0 0
    %1567 = vmatprep.subr.bf16.mxu0 0
    %1568 = vmatpush1.bf16.msra.mxu0 0
    %1569 = vmatprep.subr.bf16.mxu0 0
    %1570 = vmatpush1.bf16.msra.mxu0 0
    %1571 = vmatprep.subr.bf16.mxu0 0
    %1572 = vmatpush1.bf16.msra.mxu0 0
    %1573 = vmatprep.subr.bf16.mxu0 0
    %1574 = vmatpush1.bf16.msra.mxu0 0
    %1575 = vmatprep.subr.bf16.mxu0 0
    %1576 = vmatpush1.bf16.msra.mxu0 0
    %1577 = vmatprep.subr.bf16.mxu0 0
    %1578 = vmatpush1.bf16.msra.mxu0 0
    %1579 = vmatprep.subr.bf16.mxu0 0
    %1580 = vmatpush1.bf16.msra.mxu0 0
    %1581 = vmatprep.subr.bf16.mxu0 0
    %1582 = vmatpush1.bf16.msra.mxu0 0
    %1583 = vmatprep.mubr.bf16.mxu0 0
    %1584 = vmatmul.mubr.bf16.gmra.mrb[0].mxu0 %v1546
    %v1585 = vpop.f32.mrb[0].mxu0
    %v1586 = vadd.f32 %v1539, %v1585
    %v1587 = vpop.f32.mrb[0].mxu0
    %v1588 = vpop.f32.mrb[0].mxu0
    %v1589 = vadd.f32 %v1542, %v1588
    %v1590 = vpop.f32.mrb[0].mxu0
    %1591 = vdwg.mxu0
    %1592 = vrot.lane.b32.xlu0 %v1252, 112
    %v1593 = vpop.permute.xlu0 %1592
    %1594 = vrot.lane.b32.xlu0 %v1253, 80
    %v1595 = vpop.permute.xlu0 %1594
    %v1597 = vsel %vm195, %v1593, 0
    %v1600 = vsel %vm195, %v1595, 0
    %1602 = vmatprep.subr.bf16.mxu0 0
    %1603 = vmatpush1.bf16.xpose.msra.mxu0 %v1600
    %1604 = vmatprep.subr.bf16.mxu0 0
    %1605 = vmatpush1.bf16.xpose.msra.mxu0 0
    %1606 = vmatprep.subr.bf16.mxu0 0
    %1607 = vmatpush1.bf16.xpose.msra.mxu0 0
    %1608 = vmatprep.subr.bf16.mxu0 0
    %1609 = vmatpush1.bf16.xpose.msra.mxu0 0
    %1610 = vmatprep.subr.bf16.mxu0 0
    %1611 = vmatpush1.bf16.xpose.msra.mxu0 0
    %1612 = vmatprep.subr.bf16.mxu0 0
    %1613 = vmatpush1.bf16.xpose.msra.mxu0 0
    %1614 = vmatprep.subr.bf16.mxu0 0
    %1615 = vmatpush1.bf16.xpose.msra.mxu0 0
    %1616 = vmatprep.subr.bf16.mxu0 0
    %1617 = vmatpush1.bf16.xpose.msra.mxu0 0
    %1618 = vmatprep.subr.bf16.mxu0 0
    %1619 = vmatpush1.bf16.xpose.msra.mxu0 0
    %1620 = vmatprep.subr.bf16.mxu0 0
    %1621 = vmatpush1.bf16.xpose.msra.mxu0 0
    %1622 = vmatprep.subr.bf16.mxu0 0
    %1623 = vmatpush1.bf16.xpose.msra.mxu0 0
    %1624 = vmatprep.subr.bf16.mxu0 0
    %1625 = vmatpush1.bf16.xpose.msra.mxu0 0
    %1626 = vmatprep.subr.bf16.mxu0 0
    %1627 = vmatpush1.bf16.xpose.msra.mxu0 0
    %1628 = vmatprep.subr.bf16.mxu0 0
    %1629 = vmatpush1.bf16.xpose.msra.mxu0 0
    %1630 = vmatprep.subr.bf16.mxu0 0
    %1631 = vmatpush1.bf16.xpose.msra.mxu0 0
    %1632 = vmatprep.subr.bf16.mxu0 0
    %1633 = vmatpush1.bf16.xpose.msra.mxu0 0
    %1634 = vmatprep.mubr.bf16.mxu0 0
    %1635 = vmatmul.mubr.bf16.gmra.mrb[0].mxu0 %v1597
    %v1636 = vpop.f32.mrb[0].mxu0
    %v1637 = vadd.f32 %v114, %v1636
    %v1638 = vpop.f32.mrb[0].mxu0
    %v1639 = vpop.f32.mrb[0].mxu0
    %v1640 = vadd.f32 %v115, %v1639
    %v1641 = vpop.f32.mrb[0].mxu0
    %1642 = vdwg.mxu0
    %v1643 = vsel %vm243, %v1637, -inf
    %1644 = vmax.xlane.f32.xlu0 %v1643
    %v1645 = vpop.xlane.xlu0 %1644
    %v1646 = vsel %vm243, %v1640, -inf
    %1647 = vmax.xlane.f32.xlu0 %v1646
    %v1648 = vpop.xlane.xlu0 %1647
    %v1649 = vsub.f32 %v1637, %v1645
    %v1650 = vsub.f32 %v1640, %v1648
    %v1651 = vmul.f32 %v1649, 1.442695
    %v1652 = vpow.pop %v1651
    %v1653 = vmul.f32 %v1650, 1.442695
    %v1654 = vpow.pop %v1653
    %v1655 = vsel %vm243, %v1652, 0.0
    %1656 = vadd.xlane.f32.xlu0 %v1655
    %v1657 = vpop.xlane.xlu0 %1656
    %v1658 = vsel %vm243, %v1654, 0.0
    %1659 = vadd.xlane.f32.xlu0 %v1658
    %v1660 = vpop.xlane.xlu0 %1659
    %v1661 = vrcp.pop %v1657
    %v1662 = vmul.f32 %v1652, %v1661
    %v1663 = vrcp.pop %v1660
    %v1664 = vmul.f32 %v1654, %v1663
    %v1665 = vpack.c.bf16 %v1664, %v1662
    %1666 = vrot.lane.b32.xlu0 %v1253, 48
    %v1667 = vpop.permute.xlu0 %1666
    %v1670 = vsel %vm243, %v1665, 0
    %1672 = vmatprep.subr.bf16.mxu0 0
    %1673 = vmatpush1.bf16.msra.mxu0 %v1667
    %1674 = vmatprep.subr.bf16.mxu0 0
    %1675 = vmatpush1.bf16.msra.mxu0 0
    %1676 = vmatprep.subr.bf16.mxu0 0
    %1677 = vmatpush1.bf16.msra.mxu0 0
    %1678 = vmatprep.subr.bf16.mxu0 0
    %1679 = vmatpush1.bf16.msra.mxu0 0
    %1680 = vmatprep.subr.bf16.mxu0 0
    %1681 = vmatpush1.bf16.msra.mxu0 0
    %1682 = vmatprep.subr.bf16.mxu0 0
    %1683 = vmatpush1.bf16.msra.mxu0 0
    %1684 = vmatprep.subr.bf16.mxu0 0
    %1685 = vmatpush1.bf16.msra.mxu0 0
    %1686 = vmatprep.subr.bf16.mxu0 0
    %1687 = vmatpush1.bf16.msra.mxu0 0
    %1688 = vmatprep.subr.bf16.mxu0 0
    %1689 = vmatpush1.bf16.msra.mxu0 0
    %1690 = vmatprep.subr.bf16.mxu0 0
    %1691 = vmatpush1.bf16.msra.mxu0 0
    %1692 = vmatprep.subr.bf16.mxu0 0
    %1693 = vmatpush1.bf16.msra.mxu0 0
    %1694 = vmatprep.subr.bf16.mxu0 0
    %1695 = vmatpush1.bf16.msra.mxu0 0
    %1696 = vmatprep.subr.bf16.mxu0 0
    %1697 = vmatpush1.bf16.msra.mxu0 0
    %1698 = vmatprep.subr.bf16.mxu0 0
    %1699 = vmatpush1.bf16.msra.mxu0 0
    %1700 = vmatprep.subr.bf16.mxu0 0
    %1701 = vmatpush1.bf16.msra.mxu0 0
    %1702 = vmatprep.subr.bf16.mxu0 0
    %1703 = vmatpush1.bf16.msra.mxu0 0
    %1704 = vmatprep.mubr.bf16.mxu0 0
    %1705 = vmatmul.mubr.bf16.gmra.mrb[0].mxu0 %v1670
    %v1706 = vpop.f32.mrb[0].mxu0
    %v1707 = vadd.f32 0.0, %v1706
    %v1708 = vpop.f32.mrb[0].mxu0
    %v1709 = vpop.f32.mrb[0].mxu0
    %v1710 = vadd.f32 0.0, %v1709
    %v1711 = vpop.f32.mrb[0].mxu0
    %1712 = vdwg.mxu0
    %v1713 = vpack.c.bf16 %v1710, %v1707
    %v1715 = vsel %vm195, %v1713, 0
    %v1718 = vsel %vm441, %v1250, 0
    %1720 = vmatprep.subr.bf16.mxu0 0
    %1721 = vmatpush1.bf16.msra.mxu0 %v1718
    %1722 = vmatprep.subr.bf16.mxu0 0
    %1723 = vmatpush1.bf16.msra.mxu0 0
    %1724 = vmatprep.subr.bf16.mxu0 0
    %1725 = vmatpush1.bf16.msra.mxu0 0
    %1726 = vmatprep.subr.bf16.mxu0 0
    %1727 = vmatpush1.bf16.msra.mxu0 0
    %1728 = vmatprep.subr.bf16.mxu0 0
    %1729 = vmatpush1.bf16.msra.mxu0 0
    %1730 = vmatprep.subr.bf16.mxu0 0
    %1731 = vmatpush1.bf16.msra.mxu0 0
    %1732 = vmatprep.subr.bf16.mxu0 0
    %1733 = vmatpush1.bf16.msra.mxu0 0
    %1734 = vmatprep.subr.bf16.mxu0 0
    %1735 = vmatpush1.bf16.msra.mxu0 0
    %1736 = vmatprep.subr.bf16.mxu0 0
    %1737 = vmatpush1.bf16.msra.mxu0 0
    %1738 = vmatprep.subr.bf16.mxu0 0
    %1739 = vmatpush1.bf16.msra.mxu0 0
    %1740 = vmatprep.subr.bf16.mxu0 0
    %1741 = vmatpush1.bf16.msra.mxu0 0
    %1742 = vmatprep.subr.bf16.mxu0 0
    %1743 = vmatpush1.bf16.msra.mxu0 0
    %1744 = vmatprep.subr.bf16.mxu0 0
    %1745 = vmatpush1.bf16.msra.mxu0 0
    %1746 = vmatprep.subr.bf16.mxu0 0
    %1747 = vmatpush1.bf16.msra.mxu0 0
    %1748 = vmatprep.subr.bf16.mxu0 0
    %1749 = vmatpush1.bf16.msra.mxu0 0
    %1750 = vmatprep.subr.bf16.mxu0 0
    %1751 = vmatpush1.bf16.msra.mxu0 0
    %1752 = vmatprep.mubr.bf16.mxu0 0
    %1753 = vmatmul.mubr.bf16.gmra.mrb[0].mxu0 %v1715
    %v1754 = vpop.f32.mrb[0].mxu0
    %v1755 = vadd.f32 0.0, %v1754
    %v1756 = vpop.f32.mrb[0].mxu0
    %v1757 = vpop.f32.mrb[0].mxu0
    %v1758 = vadd.f32 0.0, %v1757
    %v1759 = vpop.f32.mrb[0].mxu0
    %1760 = vdwg.mxu0
    %v1761 = vadd.f32 %v1586, %v1755
    %v1762 = vadd.f32 %v1589, %v1758
    %1763 = vrot.lane.b32.xlu0 %v1252, 104
    %v1764 = vpop.permute.xlu0 %1763
    %1765 = vrot.lane.b32.xlu0 %v1253, 72
    %v1766 = vpop.permute.xlu0 %1765
    %v1768 = vsel %vm195, %v1764, 0
    %v1771 = vsel %vm195, %v1766, 0
    %1773 = vmatprep.subr.bf16.mxu0 0
    %1774 = vmatpush1.bf16.xpose.msra.mxu0 %v1771
    %1775 = vmatprep.subr.bf16.mxu0 0
    %1776 = vmatpush1.bf16.xpose.msra.mxu0 0
    %1777 = vmatprep.subr.bf16.mxu0 0
    %1778 = vmatpush1.bf16.xpose.msra.mxu0 0
    %1779 = vmatprep.subr.bf16.mxu0 0
    %1780 = vmatpush1.bf16.xpose.msra.mxu0 0
    %1781 = vmatprep.subr.bf16.mxu0 0
    %1782 = vmatpush1.bf16.xpose.msra.mxu0 0
    %1783 = vmatprep.subr.bf16.mxu0 0
    %1784 = vmatpush1.bf16.xpose.msra.mxu0 0
    %1785 = vmatprep.subr.bf16.mxu0 0
    %1786 = vmatpush1.bf16.xpose.msra.mxu0 0
    %1787 = vmatprep.subr.bf16.mxu0 0
    %1788 = vmatpush1.bf16.xpose.msra.mxu0 0
    %1789 = vmatprep.subr.bf16.mxu0 0
    %1790 = vmatpush1.bf16.xpose.msra.mxu0 0
    %1791 = vmatprep.subr.bf16.mxu0 0
    %1792 = vmatpush1.bf16.xpose.msra.mxu0 0
    %1793 = vmatprep.subr.bf16.mxu0 0
    %1794 = vmatpush1.bf16.xpose.msra.mxu0 0
    %1795 = vmatprep.subr.bf16.mxu0 0
    %1796 = vmatpush1.bf16.xpose.msra.mxu0 0
    %1797 = vmatprep.subr.bf16.mxu0 0
    %1798 = vmatpush1.bf16.xpose.msra.mxu0 0
    %1799 = vmatprep.subr.bf16.mxu0 0
    %1800 = vmatpush1.bf16.xpose.msra.mxu0 0
    %1801 = vmatprep.subr.bf16.mxu0 0
    %1802 = vmatpush1.bf16.xpose.msra.mxu0 0
    %1803 = vmatprep.subr.bf16.mxu0 0
    %1804 = vmatpush1.bf16.xpose.msra.mxu0 0
    %1805 = vmatprep.mubr.bf16.mxu0 0
    %1806 = vmatmul.mubr.bf16.gmra.mrb[0].mxu0 %v1768
    %v1807 = vpop.f32.mrb[0].mxu0
    %v1808 = vadd.f32 %v114, %v1807
    %v1809 = vpop.f32.mrb[0].mxu0
    %v1810 = vpop.f32.mrb[0].mxu0
    %v1811 = vadd.f32 %v115, %v1810
    %v1812 = vpop.f32.mrb[0].mxu0
    %1813 = vdwg.mxu0
    %v1814 = vsel %vm243, %v1808, -inf
    %1815 = vmax.xlane.f32.xlu0 %v1814
    %v1816 = vpop.xlane.xlu0 %1815
    %v1817 = vsel %vm243, %v1811, -inf
    %1818 = vmax.xlane.f32.xlu0 %v1817
    %v1819 = vpop.xlane.xlu0 %1818
    %v1820 = vsub.f32 %v1808, %v1816
    %v1821 = vsub.f32 %v1811, %v1819
    %v1822 = vmul.f32 %v1820, 1.442695
    %v1823 = vpow.pop %v1822
    %v1824 = vmul.f32 %v1821, 1.442695
    %v1825 = vpow.pop %v1824
    %v1826 = vsel %vm243, %v1823, 0.0
    %1827 = vadd.xlane.f32.xlu0 %v1826
    %v1828 = vpop.xlane.xlu0 %1827
    %v1829 = vsel %vm243, %v1825, 0.0
    %1830 = vadd.xlane.f32.xlu0 %v1829
    %v1831 = vpop.xlane.xlu0 %1830
    %v1832 = vrcp.pop %v1828
    %v1833 = vmul.f32 %v1823, %v1832
    %v1834 = vrcp.pop %v1831
    %v1835 = vmul.f32 %v1825, %v1834
    %v1836 = vpack.c.bf16 %v1835, %v1833
    %1837 = vrot.lane.b32.xlu0 %v1253, 40
    %v1838 = vpop.permute.xlu0 %1837
    %v1841 = vsel %vm243, %v1836, 0
    %1843 = vmatprep.subr.bf16.mxu0 0
    %1844 = vmatpush1.bf16.msra.mxu0 %v1838
    %1845 = vmatprep.subr.bf16.mxu0 0
    %1846 = vmatpush1.bf16.msra.mxu0 0
    %1847 = vmatprep.subr.bf16.mxu0 0
    %1848 = vmatpush1.bf16.msra.mxu0 0
    %1849 = vmatprep.subr.bf16.mxu0 0
    %1850 = vmatpush1.bf16.msra.mxu0 0
    %1851 = vmatprep.subr.bf16.mxu0 0
    %1852 = vmatpush1.bf16.msra.mxu0 0
    %1853 = vmatprep.subr.bf16.mxu0 0
    %1854 = vmatpush1.bf16.msra.mxu0 0
    %1855 = vmatprep.subr.bf16.mxu0 0
    %1856 = vmatpush1.bf16.msra.mxu0 0
    %1857 = vmatprep.subr.bf16.mxu0 0
    %1858 = vmatpush1.bf16.msra.mxu0 0
    %1859 = vmatprep.subr.bf16.mxu0 0
    %1860 = vmatpush1.bf16.msra.mxu0 0
    %1861 = vmatprep.subr.bf16.mxu0 0
    %1862 = vmatpush1.bf16.msra.mxu0 0
    %1863 = vmatprep.subr.bf16.mxu0 0
    %1864 = vmatpush1.bf16.msra.mxu0 0
    %1865 = vmatprep.subr.bf16.mxu0 0
    %1866 = vmatpush1.bf16.msra.mxu0 0
    %1867 = vmatprep.subr.bf16.mxu0 0
    %1868 = vmatpush1.bf16.msra.mxu0 0
    %1869 = vmatprep.subr.bf16.mxu0 0
    %1870 = vmatpush1.bf16.msra.mxu0 0
    %1871 = vmatprep.subr.bf16.mxu0 0
    %1872 = vmatpush1.bf16.msra.mxu0 0
    %1873 = vmatprep.subr.bf16.mxu0 0
    %1874 = vmatpush1.bf16.msra.mxu0 0
    %1875 = vmatprep.mubr.bf16.mxu0 0
    %1876 = vmatmul.mubr.bf16.gmra.mrb[0].mxu0 %v1841
    %v1877 = vpop.f32.mrb[0].mxu0
    %v1878 = vadd.f32 0.0, %v1877
    %v1879 = vpop.f32.mrb[0].mxu0
    %v1880 = vpop.f32.mrb[0].mxu0
    %v1881 = vadd.f32 0.0, %v1880
    %v1882 = vpop.f32.mrb[0].mxu0
    %1883 = vdwg.mxu0
    %v1884 = vpack.c.bf16 %v1881, %v1878
    %v1886 = vsel %vm195, %v1884, 0
    %v1889 = vsel %vm441, %v1251, 0
    %1891 = vmatprep.subr.bf16.mxu0 0
    %1892 = vmatpush1.bf16.msra.mxu0 %v1889
    %1893 = vmatprep.subr.bf16.mxu0 0
    %1894 = vmatpush1.bf16.msra.mxu0 0
    %1895 = vmatprep.subr.bf16.mxu0 0
    %1896 = vmatpush1.bf16.msra.mxu0 0
    %1897 = vmatprep.subr.bf16.mxu0 0
    %1898 = vmatpush1.bf16.msra.mxu0 0
    %1899 = vmatprep.subr.bf16.mxu0 0
    %1900 = vmatpush1.bf16.msra.mxu0 0
    %1901 = vmatprep.subr.bf16.mxu0 0
    %1902 = vmatpush1.bf16.msra.mxu0 0
    %1903 = vmatprep.subr.bf16.mxu0 0
    %1904 = vmatpush1.bf16.msra.mxu0 0
    %1905 = vmatprep.subr.bf16.mxu0 0
    %1906 = vmatpush1.bf16.msra.mxu0 0
    %1907 = vmatprep.subr.bf16.mxu0 0
    %1908 = vmatpush1.bf16.msra.mxu0 0
    %1909 = vmatprep.subr.bf16.mxu0 0
    %1910 = vmatpush1.bf16.msra.mxu0 0
    %1911 = vmatprep.subr.bf16.mxu0 0
    %1912 = vmatpush1.bf16.msra.mxu0 0
    %1913 = vmatprep.subr.bf16.mxu0 0
    %1914 = vmatpush1.bf16.msra.mxu0 0
    %1915 = vmatprep.subr.bf16.mxu0 0
    %1916 = vmatpush1.bf16.msra.mxu0 0
    %1917 = vmatprep.subr.bf16.mxu0 0
    %1918 = vmatpush1.bf16.msra.mxu0 0
    %1919 = vmatprep.subr.bf16.mxu0 0
    %1920 = vmatpush1.bf16.msra.mxu0 0
    %1921 = vmatprep.subr.bf16.mxu0 0
    %1922 = vmatpush1.bf16.msra.mxu0 0
    %1923 = vmatprep.mubr.bf16.mxu0 0
    %1924 = vmatmul.mubr.bf16.gmra.mrb[0].mxu0 %v1886
    %v1925 = vpop.f32.mrb[0].mxu0
    %v1926 = vadd.f32 0.0, %v1925
    %v1927 = vpop.f32.mrb[0].mxu0
    %v1928 = vpop.f32.mrb[0].mxu0
    %v1929 = vadd.f32 0.0, %v1928
    %v1930 = vpop.f32.mrb[0].mxu0
    %1931 = vdwg.mxu0
    %v1932 = vadd.f32 %v1761, %v1926
    %v1933 = vadd.f32 %v1762, %v1929
    %s1934 = scalar_lea.vmem %s8, 1
    %v1935 = vld [vmem:[%s1934] sm:$0x1]
    %v1937 = vlaneseq
    %v1938 = vshrl.u32 %v1937, 7
    %v1939 = vsub.s32 0, %v1938
    %v1940 = vrot.slane %v1935, %v1939
    %v1942 = vadd.f32 %v1932, %v1940
    %v1943 = vadd.f32 %v1933, %v1940
    %v1944 = vadd.f32 %v1942, %v1173
    %v1945 = vadd.f32 %v1943, %v1174
    %s1946 = scalar_lea.vmem %s9, 1
    %v1947 = vld [vmem:[%s1946] sm:$0x1]
    %s1948 = scalar_lea.vmem %s10, 1
    %v1949 = vld [vmem:[%s1948] sm:$0x1]
    %v1950 = vsel %vm70, %v1944, 0.0
    %1951 = vadd.xlane.f32.xlu0 %v1950
    %v1952 = vpop.xlane.xlu0 %1951
    %v1953 = vsel %vm70, %v1945, 0.0
    %1954 = vadd.xlane.f32.xlu0 %v1953
    %v1955 = vpop.xlane.xlu0 %1954
    %v1956 = vmul.f32 %v1952, %v77
    %v1957 = vmul.f32 %v1955, %v77
    %v1958 = vsub.f32 %v1944, %v1956
    %v1959 = vsub.f32 %v1945, %v1957
    %v1960 = vmul.f32 %v1958, %v1958
    %v1961 = vmul.f32 %v1959, %v1959
    %v1962 = vsel %vm70, %v1960, 0.0
    %1963 = vadd.xlane.f32.xlu0 %v1962
    %v1964 = vpop.xlane.xlu0 %1963
    %v1965 = vsel %vm70, %v1961, 0.0
    %1966 = vadd.xlane.f32.xlu0 %v1965
    %v1967 = vpop.xlane.xlu0 %1966
    %v1968 = vmul.f32 %v1964, %v77
    %v1969 = vmul.f32 %v1967, %v77
    %v1970 = vadd.f32 %v1968, 1e-12
    %v1971 = vadd.f32 %v1969, 1e-12
    %v1972 = vrsqrt.pop %v1970
    %v1973 = vrsqrt.pop %v1971
    %v1974 = vmul.f32 %v1958, %v1972
    %v1975 = vmul.f32 %v1959, %v1973
    %v1977 = vlaneseq
    %v1978 = vshrl.u32 %v1977, 7
    %v1979 = vsub.s32 0, %v1978
    %v1980 = vrot.slane %v1947, %v1979
    %v1982 = vmul.f32 %v1974, %v1980
    %v1983 = vmul.f32 %v1975, %v1980
    %v1985 = vlaneseq
    %v1986 = vshrl.u32 %v1985, 7
    %v1987 = vsub.s32 0, %v1986
    %v1988 = vrot.slane %v1949, %v1987
    %v1990 = vadd.f32 %v1982, %v1988
    %v1991 = vadd.f32 %v1983, %v1988
    %v1992 = vpack.c.bf16 %v1991, %v1990
    %s1993 = scalar_lea.vmem %s11, 16
    %v1994 = vld [vmem:[%s1993] sm:$0xf]
    %v1995 = vld [vmem:[%s1993 + $0x4] sm:$0xf]
    %v1996 = vld [vmem:[%s1993 + $0x8] sm:$0xf]
    %v1997 = vld [vmem:[%s1993 + $0xc] sm:$0xf]
    %s1998 = scalar_lea.vmem %s12, 1
    %v1999 = vld [vmem:[%s1998] sm:$0x1]
    %v2001 = vlaneseq
    %v2002 = vshrl.u32 %v2001, 7
    %v2003 = vsub.s32 0, %v2002
    %v2004 = vrot.slane %v1999, %v2003
    %v2010 = vunpack.c.l.b16 %v1994
    %v2011 = vunpack.c.l.b16 %v1995
    %v2012 = vunpack.c.l.b16 %v1996
    %v2013 = vunpack.c.l.b16 %v1997
    %v2014 = vpack.c.b16 %v2011, %v2010
    %v2015 = vpack.c.b16 %v2013, %v2012
    %v2019 = vsel %vm70, %v1992, 0
    %2021 = vmatprep.subr.bf16.mxu0 0
    %2022 = vmatpush1.bf16.msra.mxu0 %v2014
    %2023 = vmatprep.subr.bf16.mxu0 0
    %2024 = vmatpush1.bf16.msra.mxu0 %v2015
    %2025 = vmatprep.subr.bf16.mxu0 0
    %2026 = vmatpush1.bf16.msra.mxu0 0
    %2027 = vmatprep.subr.bf16.mxu0 0
    %2028 = vmatpush1.bf16.msra.mxu0 0
    %2029 = vmatprep.subr.bf16.mxu0 0
    %2030 = vmatpush1.bf16.msra.mxu0 0
    %2031 = vmatprep.subr.bf16.mxu0 0
    %2032 = vmatpush1.bf16.msra.mxu0 0
    %2033 = vmatprep.subr.bf16.mxu0 0
    %2034 = vmatpush1.bf16.msra.mxu0 0
    %2035 = vmatprep.subr.bf16.mxu0 0
    %2036 = vmatpush1.bf16.msra.mxu0 0
    %2037 = vmatprep.subr.bf16.mxu0 0
    %2038 = vmatpush1.bf16.msra.mxu0 0
    %2039 = vmatprep.subr.bf16.mxu0 0
    %2040 = vmatpush1.bf16.msra.mxu0 0
    %2041 = vmatprep.subr.bf16.mxu0 0
    %2042 = vmatpush1.bf16.msra.mxu0 0
    %2043 = vmatprep.subr.bf16.mxu0 0
    %2044 = vmatpush1.bf16.msra.mxu0 0
    %2045 = vmatprep.subr.bf16.mxu0 0
    %2046 = vmatpush1.bf16.msra.mxu0 0
    %2047 = vmatprep.subr.bf16.mxu0 0
    %2048 = vmatpush1.bf16.msra.mxu0 0
    %2049 = vmatprep.subr.bf16.mxu0 0
    %2050 = vmatpush1.bf16.msra.mxu0 0
    %2051 = vmatprep.subr.bf16.mxu0 0
    %2052 = vmatpush1.bf16.msra.mxu0 0
    %2053 = vmatprep.mubr.bf16.mxu0 0
    %2054 = vmatmul.mubr.bf16.gmra.mrb[0].mxu0 %v2019
    %v2055 = vpop.f32.mrb[0].mxu0
    %v2056 = vadd.f32 %v2004, %v2055
    %v2057 = vpop.f32.mrb[0].mxu0
    %v2058 = vpop.f32.mrb[0].mxu0
    %v2059 = vadd.f32 %v2004, %v2058
    %v2060 = vpop.f32.mrb[0].mxu0
    %2061 = vdwg.mxu0
    %v2062 = vmul.f32 %v2056, 0.5
    %v2063 = vmul.f32 %v2059, 0.5
    %v2064 = vmul.f32 %v2056, 0.044715
    %v2065 = vmul.f32 %v2059, 0.044715
    %v2066 = vmul.f32 %v2064, %v2056
    %v2067 = vmul.f32 %v2065, %v2059
    %v2068 = vmul.f32 %v2066, %v2056
    %v2069 = vmul.f32 %v2067, %v2059
    %v2070 = vadd.f32 %v2056, %v2068
    %v2071 = vadd.f32 %v2059, %v2069
    %v2072 = vmul.f32 %v2070, 0.7978846
    %v2073 = vmul.f32 %v2071, 0.7978846
    %v2074 = vtanh.pop %v2072
    %v2075 = vtanh.pop %v2073
    %v2076 = vadd.f32 %v2074, 1.0
    %v2077 = vadd.f32 %v2075, 1.0
    %v2078 = vmul.f32 %v2062, %v2076
    %v2079 = vmul.f32 %v2063, %v2077
    %v2080 = vpack.c.bf16 %v2079, %v2078
    %s2081 = scalar_lea.vmem %s13, 64
    %v2082 = vld [vmem:[%s2081] sm:$0xf]
    %v2083 = vld [vmem:[%s2081 + $0x4] sm:$0xf]
    %v2084 = vld [vmem:[%s2081 + $0x8] sm:$0xf]
    %v2085 = vld [vmem:[%s2081 + $0xc] sm:$0xf]
    %v2086 = vld [vmem:[%s2081 + $0x10] sm:$0xf]
    %v2087 = vld [vmem:[%s2081 + $0x14] sm:$0xf]
    %v2088 = vld [vmem:[%s2081 + $0x18] sm:$0xf]
    %v2089 = vld [vmem:[%s2081 + $0x1c] sm:$0xf]
    %v2090 = vld [vmem:[%s2081 + $0x20] sm:$0xf]
    %v2091 = vld [vmem:[%s2081 + $0x24] sm:$0xf]
    %v2092 = vld [vmem:[%s2081 + $0x28] sm:$0xf]
    %v2093 = vld [vmem:[%s2081 + $0x2c] sm:$0xf]
    %v2094 = vld [vmem:[%s2081 + $0x30] sm:$0xf]
    %v2095 = vld [vmem:[%s2081 + $0x34] sm:$0xf]
    %v2096 = vld [vmem:[%s2081 + $0x38] sm:$0xf]
    %v2097 = vld [vmem:[%s2081 + $0x3c] sm:$0xf]
    %s2098 = scalar_lea.vmem %s14, 1
    %v2099 = vld [vmem:[%s2098] sm:$0x1]
    %v2101 = vlaneseq
    %v2102 = vshrl.u32 %v2101, 7
    %v2103 = vsub.s32 0, %v2102
    %v2104 = vrot.slane %v2099, %v2103
    %v2122 = vunpack.c.l.b16 %v2082
    %v2123 = vunpack.c.l.b16 %v2083
    %v2124 = vunpack.c.l.b16 %v2084
    %v2125 = vunpack.c.l.b16 %v2085
    %v2126 = vunpack.c.l.b16 %v2086
    %v2127 = vunpack.c.l.b16 %v2087
    %v2128 = vunpack.c.l.b16 %v2088
    %v2129 = vunpack.c.l.b16 %v2089
    %v2130 = vunpack.c.l.b16 %v2090
    %v2131 = vunpack.c.l.b16 %v2091
    %v2132 = vunpack.c.l.b16 %v2092
    %v2133 = vunpack.c.l.b16 %v2093
    %v2134 = vunpack.c.l.b16 %v2094
    %v2135 = vunpack.c.l.b16 %v2095
    %v2136 = vunpack.c.l.b16 %v2096
    %v2137 = vunpack.c.l.b16 %v2097
    %v2138 = vpack.c.b16 %v2123, %v2122
    %v2139 = vpack.c.b16 %v2125, %v2124
    %v2140 = vpack.c.b16 %v2127, %v2126
    %v2141 = vpack.c.b16 %v2129, %v2128
    %v2142 = vpack.c.b16 %v2131, %v2130
    %v2143 = vpack.c.b16 %v2133, %v2132
    %v2144 = vpack.c.b16 %v2135, %v2134
    %v2145 = vpack.c.b16 %v2137, %v2136
    %2154 = vmatprep.subr.bf16.mxu0 0
    %2155 = vmatpush1.bf16.msra.mxu0 %v2138
    %2156 = vmatprep.subr.bf16.mxu0 0
    %2157 = vmatpush1.bf16.msra.mxu0 %v2139
    %2158 = vmatprep.subr.bf16.mxu0 0
    %2159 = vmatpush1.bf16.msra.mxu0 %v2140
    %2160 = vmatprep.subr.bf16.mxu0 0
    %2161 = vmatpush1.bf16.msra.mxu0 %v2141
    %2162 = vmatprep.subr.bf16.mxu0 0
    %2163 = vmatpush1.bf16.msra.mxu0 %v2142
    %2164 = vmatprep.subr.bf16.mxu0 0
    %2165 = vmatpush1.bf16.msra.mxu0 %v2143
    %2166 = vmatprep.subr.bf16.mxu0 0
    %2167 = vmatpush1.bf16.msra.mxu0 %v2144
    %2168 = vmatprep.subr.bf16.mxu0 0
    %2169 = vmatpush1.bf16.msra.mxu0 %v2145
    %2170 = vmatprep.subr.bf16.mxu0 0
    %2171 = vmatpush1.bf16.msra.mxu0 0
    %2172 = vmatprep.subr.bf16.mxu0 0
    %2173 = vmatpush1.bf16.msra.mxu0 0
    %2174 = vmatprep.subr.bf16.mxu0 0
    %2175 = vmatpush1.bf16.msra.mxu0 0
    %2176 = vmatprep.subr.bf16.mxu0 0
    %2177 = vmatpush1.bf16.msra.mxu0 0
    %2178 = vmatprep.subr.bf16.mxu0 0
    %2179 = vmatpush1.bf16.msra.mxu0 0
    %2180 = vmatprep.subr.bf16.mxu0 0
    %2181 = vmatpush1.bf16.msra.mxu0 0
    %2182 = vmatprep.subr.bf16.mxu0 0
    %2183 = vmatpush1.bf16.msra.mxu0 0
    %2184 = vmatprep.subr.bf16.mxu0 0
    %2185 = vmatpush1.bf16.msra.mxu0 0
    %2186 = vmatprep.mubr.bf16.mxu0 0
    %2187 = vmatmul.mubr.bf16.gmra.mrb[0].mxu0 %v2080
    %v2188 = vpop.f32.mrb[0].mxu0
    %v2189 = vadd.f32 %v2104, %v2188
    %v2190 = vpop.f32.mrb[0].mxu0
    %v2191 = vpop.f32.mrb[0].mxu0
    %v2192 = vadd.f32 %v2104, %v2191
    %v2193 = vpop.f32.mrb[0].mxu0
    %2194 = vdwg.mxu0
    %v2195 = vadd.f32 %v2189, %v1990
    %v2196 = vadd.f32 %v2192, %v1991
    %s2197 = scalar_lea.vmem %s15, 1
    %v2198 = vld [vmem:[%s2197] sm:$0x1]
    %s2199 = scalar_lea.vmem %s16, 1
    %v2200 = vld [vmem:[%s2199] sm:$0x1]
    %v2201 = vsel %vm70, %v2195, 0.0
    %2202 = vadd.xlane.f32.xlu0 %v2201
    %v2203 = vpop.xlane.xlu0 %2202
    %v2204 = vsel %vm70, %v2196, 0.0
    %2205 = vadd.xlane.f32.xlu0 %v2204
    %v2206 = vpop.xlane.xlu0 %2205
    %v2207 = vmul.f32 %v2203, %v77
    %v2208 = vmul.f32 %v2206, %v77
    %v2209 = vsub.f32 %v2195, %v2207
    %v2210 = vsub.f32 %v2196, %v2208
    %v2211 = vmul.f32 %v2209, %v2209
    %v2212 = vmul.f32 %v2210, %v2210
    %v2213 = vsel %vm70, %v2211, 0.0
    %2214 = vadd.xlane.f32.xlu0 %v2213
    %v2215 = vpop.xlane.xlu0 %2214
    %v2216 = vsel %vm70, %v2212, 0.0
    %2217 = vadd.xlane.f32.xlu0 %v2216
    %v2218 = vpop.xlane.xlu0 %2217
    %v2219 = vmul.f32 %v2215, %v77
    %v2220 = vmul.f32 %v2218, %v77
    %v2221 = vadd.f32 %v2219, 1e-12
    %v2222 = vadd.f32 %v2220, 1e-12
    %v2223 = vrsqrt.pop %v2221
    %v2224 = vrsqrt.pop %v2222
    %v2225 = vmul.f32 %v2209, %v2223
    %v2226 = vmul.f32 %v2210, %v2224
    %v2228 = vlaneseq
    %v2229 = vshrl.u32 %v2228, 7
    %v2230 = vsub.s32 0, %v2229
    %v2231 = vrot.slane %v2198, %v2230
    %v2233 = vmul.f32 %v2225, %v2231
    %v2234 = vmul.f32 %v2226, %v2231
    %v2236 = vlaneseq
    %v2237 = vshrl.u32 %v2236, 7
    %v2238 = vsub.s32 0, %v2237
    %v2239 = vrot.slane %v2200, %v2238
    %v2241 = vadd.f32 %v2233, %v2239
    %v2242 = vadd.f32 %v2234, %v2239
    %v2243 = vpack.c.bf16 %v2242, %v2241
    %v2244 = vld [vmem:[%s17] sm:$0xf]
    %v2245 = vld [vmem:[%s17 + $0x4] sm:$0xf]
    %v2246 = vld [vmem:[%s17 + $0x8] sm:$0xf]
    %v2247 = vld [vmem:[%s17 + $0xc] sm:$0xf]
    %v2248 = vld [vmem:[%s18] sm:$0x1]
    %v2250 = vlaneseq
    %v2251 = vshrl.u32 %v2250, 7
    %v2252 = vsub.s32 0, %v2251
    %v2253 = vrot.slane %v2248, %v2252
    %v2259 = vunpack.c.l.b16 %v2244
    %v2260 = vunpack.c.l.b16 %v2245
    %v2261 = vunpack.c.l.b16 %v2246
    %v2262 = vunpack.c.l.b16 %v2247
    %v2263 = vpack.c.b16 %v2260, %v2259
    %v2264 = vpack.c.b16 %v2262, %v2261
    %v2268 = vsel %vm70, %v2243, 0
    %2270 = vmatprep.subr.bf16.mxu0 0
    %2271 = vmatpush1.bf16.msra.mxu0 %v2263
    %2272 = vmatprep.subr.bf16.mxu0 0
    %2273 = vmatpush1.bf16.msra.mxu0 %v2264
    %2274 = vmatprep.subr.bf16.mxu0 0
    %2275 = vmatpush1.bf16.msra.mxu0 0
    %2276 = vmatprep.subr.bf16.mxu0 0
    %2277 = vmatpush1.bf16.msra.mxu0 0
    %2278 = vmatprep.subr.bf16.mxu0 0
    %2279 = vmatpush1.bf16.msra.mxu0 0
    %2280 = vmatprep.subr.bf16.mxu0 0
    %2281 = vmatpush1.bf16.msra.mxu0 0
    %2282 = vmatprep.subr.bf16.mxu0 0
    %2283 = vmatpush1.bf16.msra.mxu0 0
    %2284 = vmatprep.subr.bf16.mxu0 0
    %2285 = vmatpush1.bf16.msra.mxu0 0
    %2286 = vmatprep.subr.bf16.mxu0 0
    %2287 = vmatpush1.bf16.msra.mxu0 0
    %2288 = vmatprep.subr.bf16.mxu0 0
    %2289 = vmatpush1.bf16.msra.mxu0 0
    %2290 = vmatprep.subr.bf16.mxu0 0
    %2291 = vmatpush1.bf16.msra.mxu0 0
    %2292 = vmatprep.subr.bf16.mxu0 0
    %2293 = vmatpush1.bf16.msra.mxu0 0
    %2294 = vmatprep.subr.bf16.mxu0 0
    %2295 = vmatpush1.bf16.msra.mxu0 0
    %2296 = vmatprep.subr.bf16.mxu0 0
    %2297 = vmatpush1.bf16.msra.mxu0 0
    %2298 = vmatprep.subr.bf16.mxu0 0
    %2299 = vmatpush1.bf16.msra.mxu0 0
    %2300 = vmatprep.subr.bf16.mxu0 0
    %2301 = vmatpush1.bf16.msra.mxu0 0
    %2302 = vmatprep.mubr.bf16.mxu0 0
    %2303 = vmatmul.mubr.bf16.gmra.mrb[0].mxu0 %v2268
    %v2304 = vpop.f32.mrb[0].mxu0
    %v2305 = vadd.f32 %v2253, %v2304
    %v2306 = vpop.f32.mrb[0].mxu0
    %v2307 = vpop.f32.mrb[0].mxu0
    %v2308 = vadd.f32 %v2253, %v2307
    %v2309 = vpop.f32.mrb[0].mxu0
    %2310 = vdwg.mxu0
    %v2311 = vlaneseq
    %v2312 = vand.u32 %v2311, 127
    %vm2313 = vcmp.lt.s32.totalorder %v2312, 9
    %v2314 = vsel %vm2313, %v2305, -1e+30
    %v2315 = vsel %vm2313, %v2308, -1e+30
    %2316 = vmax.xlane.f32.xlu0 %v2314
    %v2317 = vpop.xlane.xlu0 %2316
    %2318 = vmax.xlane.f32.xlu0 %v2315
    %v2319 = vpop.xlane.xlu0 %2318
    %vm2320 = vcmp.eq.f32.partialorder %v2314, %v2317
    %vm2321 = vcmp.eq.f32.partialorder %v2315, %v2319
    %v2322 = vsel %vm2320, %v2312, 128
    %v2323 = vsel %vm2321, %v2312, 128
    %v2324 = vand.u32 %v2322, 65535
    %v2325 = vshra.s32 %v2322, 16
    %v2326 = vcvt.s32.f32 %v2324
    %v2327 = vcvt.s32.f32 %v2325
    %2328 = vmin.xlane.f32.xlu0 %v2327
    %v2329 = vpop.xlane.xlu0 %2328
    %vm2330 = vcmp.eq.f32.partialorder %v2327, %v2329
    %v2331 = vsel %vm2330, %v2326, inf
    %2332 = vmin.xlane.f32.xlu0 %v2331
    %v2333 = vpop.xlane.xlu0 %2332
    %v2334 = vcvt.f32.s32 %v2333
    %v2335 = vcvt.f32.s32 %v2329
    %v2336 = vshll.u32 %v2335, 16
    %v2337 = vadd.s32 %v2336, %v2334
    %v2338 = vand.u32 %v2323, 65535
    %v2339 = vshra.s32 %v2323, 16
    %v2340 = vcvt.s32.f32 %v2338
    %v2341 = vcvt.s32.f32 %v2339
    %2342 = vmin.xlane.f32.xlu0 %v2341
    %v2343 = vpop.xlane.xlu0 %2342
    %vm2344 = vcmp.eq.f32.partialorder %v2341, %v2343
    %v2345 = vsel %vm2344, %v2340, inf
    %2346 = vmin.xlane.f32.xlu0 %v2345
    %v2347 = vpop.xlane.xlu0 %2346
    %v2348 = vcvt.f32.s32 %v2347
    %v2349 = vcvt.f32.s32 %v2343
    %v2350 = vshll.u32 %v2349, 16
    %v2351 = vadd.s32 %v2350, %v2348
    %vm2352 = vcmask 7168
    %2353 = vst.msk [vmem:[%s20] sm:$0xff] %vm2352, %v2337
    %2354 = vst.msk [vmem:[%s20 + $0x8] sm:$0xff] %vm2352, %v2351
    %v2355 = vld [vmem:[%s2] sm:$0xff]
    %v2356 = vld [vmem:[%s2 + $0x8] sm:$0xff]
    %v2357 = vsub.f32 %v2314, %v2317
    %v2358 = vsub.f32 %v2315, %v2319
    %v2359 = vmul.f32 %v2357, 1.442695
    %v2360 = vpow.pop %v2359
    %v2361 = vmul.f32 %v2358, 1.442695
    %v2362 = vpow.pop %v2361
    %2363 = vadd.xlane.f32.xlu0 %v2360
    %v2364 = vpop.xlane.xlu0 %2363
    %2365 = vadd.xlane.f32.xlu0 %v2362
    %v2366 = vpop.xlane.xlu0 %2365
    %v2367 = vlog2.pop %v2364
    %v2368 = vmul.f32 %v2367, 0.6931472
    %v2369 = vlog2.pop %v2366
    %v2370 = vmul.f32 %v2369, 0.6931472
    %v2371 = vadd.f32 %v2368, %v2317
    %v2372 = vadd.f32 %v2370, %v2319
    %v2373 = vsub.f32 %v2305, %v2371
    %v2374 = vsub.f32 %v2308, %v2372
    %2375 = vset.pattern.permute.xlu0 0
    %2376 = vperm.xlu0 %2375, %v2355
    %v2377 = vpop.permute.xlu0 %2376
    %2378 = vset.pattern.permute.xlu0 0
    %2379 = vperm.xlu0 %2378, %v2356
    %v2380 = vpop.permute.xlu0 %2379
    %vm2381 = vcmp.eq.s32.totalorder %v2312, %v2377
    %vm2382 = vcmp.eq.s32.totalorder %v2312, %v2380
    %v2383 = vsel %vm2381, 1, 0
    %v2384 = vsel %vm2382, 1, 0
    %v2385 = vcvt.s32.f32 %v2383
    %v2386 = vcvt.s32.f32 %v2384
    %v2387 = vmul.f32 %v2385, %v2373
    %v2388 = vmul.f32 %v2386, %v2374
    %2389 = vadd.xlane.f32.xlu0 %v2387
    %v2390 = vpop.xlane.xlu0 %2389
    %2391 = vadd.xlane.f32.xlu0 %v2388
    %v2392 = vpop.xlane.xlu0 %2391
    %vm2393 = vcmp.ne.s32.totalorder %v2355, 4294967196
    %vm2394 = vcmp.ne.s32.totalorder %v2356, 4294967196
    %v2395 = vsel %vm2393, 1, 0
    %v2396 = vsel %vm2394, 1, 0
    %v2397 = vcvt.s32.f32 %v2395
    %v2398 = vcvt.s32.f32 %v2396
    %v2399 = vsub.f32 0.0, %v2390
    %v2400 = vsub.f32 0.0, %v2392
    %v2401 = vmul.f32 %v2399, %v2397
    %v2402 = vmul.f32 %v2400, %v2398
    %v2403 = vsel %vm2352, %v2401, 0.0
    %v2404 = vsel %vm2352, %v2402, 0.0
    %v2405 = vadd.f32 %v2403, %v2404
    %2406 = vadd.xlane.f32.xlu0 %v2405
    %v2407 = vpop.xlane.xlu0 %2406
    %v2408 = vrot.slane %v2407, 4
    %v2409 = vadd.f32 %v2407, %v2408
    %v2410 = vrot.slane %v2409, 2
    %v2411 = vadd.f32 %v2409, %v2410
    %v2412 = vrot.slane %v2411, 1
    %v2413 = vadd.f32 %v2411, %v2412
    %s2414 = vtos %v2413
    %v2415 = vsel %vm2352, %v2397, 0.0
    %v2416 = vsel %vm2352, %v2398, 0.0
    %v2417 = vadd.f32 %v2415, %v2416
    %2418 = vadd.xlane.f32.xlu0 %v2417
    %v2419 = vpop.xlane.xlu0 %2418
    %v2420 = vrot.slane %v2419, 4
    %v2421 = vadd.f32 %v2419, %v2420
    %v2422 = vrot.slane %v2421, 2
    %v2423 = vadd.f32 %v2421, %v2422
    %v2424 = vrot.slane %v2423, 1
    %v2425 = vadd.f32 %v2423, %v2424
    %s2426 = vtos %v2425
    %v2427 = vstv %s2426
    %v2428 = vrcp.pop %v2427
    %s2429 = vtos %v2428
    %s2430 = smul.f32 %s2414, %s2429
    %s2431 = scalar_lea.smem [#allocation2], 0
    %2432 = sst [smem:[%s2431]] %s2430
    // Predicated region
    $region78: #{_forward_impl.1} parent=1 // pred_check
      _
    $region79: #{_forward_impl.1} parent=1 // pred_check_branch
      %2434 = sbr.rel (0) target = $region81
    $region80: #{_forward_impl.1} parent=1 // pred_region
      %s2436 = ssub.s32 16, 16
      %2437 = vsyncadd [#allocation3], %s2436
      %2440 = dma.smem_to_hbm [#allocation2], 16, %s19, [#allocation3]
    $region81: #{_forward_impl.1} parent=1 // pred_fallthru
      _
    // Predicated region
    $region82: #{_forward_impl.1} parent=1 // pred_check
      _
    $region83: #{_forward_impl.1} parent=1 // pred_check_branch
      %2442 = sbr.rel (0) target = $region85
    $region84: #{_forward_impl.1} parent=1 // pred_region
      _
    $region85: #{_forward_impl.1} parent=1 // pred_fallthru
      _
    // Predicated region
    $region86: #{_forward_impl.1} parent=1 // pred_check
      _
    $region87: #{_forward_impl.1} parent=1 // pred_check_branch
      %2444 = sbr.rel (0) target = $region89
    $region88: #{_forward_impl.1} parent=1 // pred_region
      %2445 = dma.done [#allocation3], 16
    $region89: #{_forward_impl.1} parent=1 // pred_fallthru
      _
    // Predicated region
    $region90: #{_forward_impl.1} parent=1 // pred_check
      _
    $region91: #{_forward_impl.1} parent=1 // pred_check_branch
      %2447 = sbr.rel (0) target = $region93
    $region92: #{_forward_impl.1} parent=1 // pred_region
      _
    $region93: #{_forward_impl.1} parent=1 // pred_fallthru
      _
    %2448 = sfence
    %2449 = vsyncpa [#allocation3], 1

</llo_original>
